<compile_context>
chip_gen: v5e
topology: v5e:2x2
jax: 0.10.0
libtpu: 0.0.40
codegen_flags: <defaults>
</compile_context>

<pallas_src>
import functools

import jax
import jax.numpy as jnp
from jax.experimental import pallas as pl
from jax.experimental.pallas import tpu as pltpu


def _round_up(n, m):
    return ((n + m - 1) // m) * m


# ----------------------------- fused forward kernel -----------------------------
def _make_fused_kernel(n_layers, T, B, Hp):
    """Kernel over padded hidden width Hp (multiple of 128). Runs once (grid=(1,))."""
    G = 4 * Hp
    BT = B * T

    def kernel(*refs):
        x_ref, h0_ref, c0_ref = refs[0:3]
        layer_refs = refs[3:3 + 3 * n_layers]
        wfc_ref = refs[3 + 3 * n_layers]
        bfc_ref = refs[4 + 3 * n_layers]
        out_ref = refs[5 + 3 * n_layers]
        hN_ref = refs[6 + 3 * n_layers]
        cN_ref = refs[7 + 3 * n_layers]
        hseq_sc = refs[8 + 3 * n_layers]      # VMEM (B, T, Hp) f32

        x = x_ref[...]                                   # (B, T, D) bf16
        cur = x.reshape(BT, x.shape[-1])                 # (B*T, D); row = b*T + t

        for l in range(n_layers):
            wih = layer_refs[3 * l][...]                 # (Din_pad, 4Hp) bf16
            whh = layer_refs[3 * l + 1][...]             # (Hp, 4Hp)    bf16
            b = layer_refs[3 * l + 2][...]               # (1, 4Hp)     f32

            # Hoisted input projection: one MXU matmul for the whole sequence.
            gx = jnp.dot(cur, wih, preferred_element_type=jnp.float32) + b
            gx = gx.reshape(B, T, G)                     # batch-major, f32

            h = h0_ref[l].astype(jnp.float32)            # (B, Hp)
            c = c0_ref[l].astype(jnp.float32)            # (B, Hp)

            # Sequential recurrence: statically unrolled over T.
            for t in range(T):
                gates = gx[:, t, :] + jnp.dot(
                    h.astype(jnp.bfloat16), whh,
                    preferred_element_type=jnp.float32)  # (B, 4Hp) f32
                # PyTorch gate order: input, forget, cell(g), output.
                # Gate slices at Hp (=k*128) boundaries -> pure vreg selects.
                i_g = jax.nn.sigmoid(gates[:, 0 * Hp:1 * Hp])
                f_g = jax.nn.sigmoid(gates[:, 1 * Hp:2 * Hp])
                g_g = jnp.tanh(gates[:, 2 * Hp:3 * Hp])
                o_g = jax.nn.sigmoid(gates[:, 3 * Hp:4 * Hp])
                c = f_g * c + i_g * g_g
                h = o_g * jnp.tanh(c)
                hseq_sc[:, t:t + 1, :] = h[:, None, :]   # keep sequence in VMEM

            hN_ref[l] = h.astype(hN_ref.dtype)
            cN_ref[l] = c.astype(cN_ref.dtype)

            # Inter-layer (and post-RNN) dropout: identity (eval mode).
            cur = hseq_sc[...].reshape(BT, Hp).astype(jnp.bfloat16)

        # FC + log_softmax over flattened rows; row order b*T+t matches
        # torch's r_output.contiguous().view(-1, n_hidden).
        logits = jnp.dot(cur, wfc_ref[...],
                         preferred_element_type=jnp.float32) + bfc_ref[...]
        m = jnp.max(logits, axis=-1, keepdims=True)
        s = logits - m
        lse = jnp.log(jnp.sum(jnp.exp(s), axis=-1, keepdims=True))
        out_ref[...] = (s - lse).astype(out_ref.dtype)

    return kernel


# ------------------------------- wrapper ---------------------------------------
@functools.partial(jax.jit, static_argnames=("n_layers", "n_hidden", "vocab"))
def semichar_rnn_forward(x, h0, c0, params, *, n_layers, n_hidden, vocab):
    """x: (B, T, input_size) batch_first. h0/c0: (n_layers, B, n_hidden).

    Returns (log_probs (B*T, vocab), (h_n, c_n)) matching the torch module.
    """
    B, T, _ = x.shape
    Hp = params["whh_t"][0].shape[0]         # padded hidden (multiple of 128)
    Vp = params["wfc_t"].shape[1]             # padded vocab  (multiple of 128)

    x_bf = x.astype(jnp.bfloat16)             # bf16 MXU operand, f32 accumulation
    pad_h = Hp - n_hidden
    h0p = jnp.pad(h0.astype(jnp.float32), ((0, 0), (0, 0), (0, pad_h)))
    c0p = jnp.pad(c0.astype(jnp.float32), ((0, 0), (0, 0), (0, pad_h)))

    flat_w = []
    for l in range(n_layers):
        flat_w += [params["wih_t"][l], params["whh_t"][l], params["b"][l]]
    inputs = [x_bf, h0p, c0p, *flat_w, params["wfc_t"], params["bfc"]]

    def full_spec(shape):
        nd = len(shape)
        return pl.BlockSpec(shape, lambda i, _nd=nd: (0,) * _nd)

    out_shapes = (
        jax.ShapeDtypeStruct((B * T, Vp), jnp.float32),
        jax.ShapeDtypeStruct((n_layers, B, Hp), jnp.float32),
        jax.ShapeDtypeStruct((n_layers, B, Hp), jnp.float32),
    )

    kernel = _make_fused_kernel(n_layers, T, B, Hp)
    logp_p, hNp, cNp = pl.pallas_call(
        kernel,
        out_shape=out_shapes,
        grid_spec=pltpu.PrefetchScalarGridSpec(
            num_scalar_prefetch=0,
            grid=(1,),
            in_specs=[full_spec(a.shape) for a in inputs],
            out_specs=[full_spec(o.shape) for o in out_shapes],
            scratch_shapes=[pltpu.VMEM((B, T, Hp), jnp.float32)],
        ),
        compiler_params=pltpu.CompilerParams(
            dimension_semantics=("arbitrary",)),
    )(*inputs)

    logp = logp_p[:, :vocab]
    hidden = (hNp[:, :, :n_hidden], cNp[:, :, :n_hidden])
    return logp, hidden


# ------------------------------- param setup ------------------------------------
def init_params(key, input_size, n_hidden, n_layers, vocab):
    """PyTorch-style uniform(-1/sqrt(H), 1/sqrt(H)) init, pre-transposed and
    zero-padded to a 128-aligned gate/vocab layout; matmul weights stored bf16."""
    H = n_hidden
    Hp = _round_up(H, 128)
    Vp = _round_up(vocab, 128)
    bound = 1.0 / (H ** 0.5)

    wih_t, whh_t, bias = [], [], []
    for l in range(n_layers):
        d_in = input_size if l == 0 else H
        d_in_p = input_size if l == 0 else Hp
        key, k1, k2, k3, k4 = jax.random.split(key, 5)
        w_ih = jax.random.uniform(k1, (4 * H, d_in), jnp.float32, -bound, bound)
        w_hh = jax.random.uniform(k2, (4 * H, H), jnp.float32, -bound, bound)
        b_ih = jax.random.uniform(k3, (4 * H,), jnp.float32, -bound, bound)
        b_hh = jax.random.uniform(k4, (4 * H,), jnp.float32, -bound, bound)

        w_ih_t = jnp.zeros((d_in_p, 4 * Hp), jnp.float32)
        w_hh_t = jnp.zeros((Hp, 4 * Hp), jnp.float32)
        b = jnp.zeros((1, 4 * Hp), jnp.float32)
        bsum = b_ih + b_hh
        for g in range(4):  # place gate g at lane-aligned columns [g*Hp, g*Hp+H)
            w_ih_t = w_ih_t.at[:d_in, g * Hp:g * Hp + H].set(
                w_ih.T[:, g * H:(g + 1) * H])
            w_hh_t = w_hh_t.at[:H, g * Hp:g * Hp + H].set(
                w_hh.T[:, g * H:(g + 1) * H])
            b = b.at[0, g * Hp:g * Hp + H].set(bsum[g * H:(g + 1) * H])
        wih_t.append(w_ih_t.astype(jnp.bfloat16))
        whh_t.append(w_hh_t.astype(jnp.bfloat16))
        bias.append(b)

    key, k5, k6 = jax.random.split(key, 3)
    w_fc = jax.random.uniform(k5, (vocab, H), jnp.float32, -bound, bound)
    b_fc = jax.random.uniform(k6, (vocab,), jnp.float32, -bound, bound)
    wfc_t = jnp.zeros((Hp, Vp), jnp.float32).at[:H, :vocab].set(w_fc.T)
    # Padded vocab columns get a very negative bias so they vanish in softmax.
    bfc = jnp.full((1, Vp), -1e30, jnp.float32).at[0, :vocab].set(b_fc)

    return {
        "wih_t": wih_t,                        # [L] x (Din_pad, 4*Hp) bf16
        "whh_t": whh_t,                        # [L] x (Hp, 4*Hp)      bf16
        "b": bias,                             # [L] x (1, 4*Hp)       f32 (b_ih+b_hh)
        "wfc_t": wfc_t.astype(jnp.bfloat16),   # (Hp, Vp)              bf16
        "bfc": bfc,                            # (1, Vp)               f32
    }


if __name__ == "__main__":
    # Small synthetic dataset_params: 16 chars -> input_size = 3*16 = 48; 32 words.
    n_chars = 16
    n_words = 32
    input_size = 3 * n_chars
    n_hidden = 32
    n_layers = 2
    batch = 2
    seq = 8

    key = jax.random.PRNGKey(0)
    kx, kh, kc, kp = jax.random.split(key, 4)
    x = jax.random.normal(kx, (batch, seq, input_size), jnp.float32)
    h0 = jax.random.normal(kh, (n_layers, batch, n_hidden), jnp.float32) * 0.1
    c0 = jax.random.normal(kc, (n_layers, batch, n_hidden), jnp.float32) * 0.1

    params = init_params(kp, input_size, n_hidden, n_layers, n_words)

    logp, (h_n, c_n) = semichar_rnn_forward(
        x, h0, c0, params,
        n_layers=n_layers, n_hidden=n_hidden, vocab=n_words)
    jax.block_until_ready((logp, h_n, c_n))

    assert logp.shape == (batch * seq, n_words)
    assert h_n.shape == (n_layers, batch, n_hidden)
    assert c_n.shape == (n_layers, batch, n_hidden)
    # log_softmax rows should sum (in prob space) to ~1
    assert jnp.allclose(jnp.sum(jnp.exp(logp), axis=-1), 1.0, atol=1e-4)
    print("KERNEL_OK")
</pallas_src>

<mosaic_0001>
module attributes {stable_mosaic.version = 11 : i64} {
  func.func @kernel(%arg0: i32, %arg1: memref<2x8x48xbf16, #tpu.memory_space<vmem>>, %arg2: memref<2x2x128xf32, #tpu.memory_space<vmem>>, %arg3: memref<2x2x128xf32, #tpu.memory_space<vmem>>, %arg4: memref<48x512xbf16, #tpu.memory_space<vmem>>, %arg5: memref<128x512xbf16, #tpu.memory_space<vmem>>, %arg6: memref<1x512xf32, #tpu.memory_space<vmem>>, %arg7: memref<128x512xbf16, #tpu.memory_space<vmem>>, %arg8: memref<128x512xbf16, #tpu.memory_space<vmem>>, %arg9: memref<1x512xf32, #tpu.memory_space<vmem>>, %arg10: memref<128x128xbf16, #tpu.memory_space<vmem>>, %arg11: memref<1x128xf32, #tpu.memory_space<vmem>>, %arg12: memref<16x128xf32, #tpu.memory_space<vmem>>, %arg13: memref<2x2x128xf32, #tpu.memory_space<vmem>>, %arg14: memref<2x2x128xf32, #tpu.memory_space<vmem>>, %arg15: memref<2x8x128xf32, #tpu.memory_space<vmem>>) attributes {dimension_semantics = [#tpu.dimension_semantics<arbitrary>], iteration_bounds = array<i64: 1>, scalar_prefetch = 0 : i64, scratch_operands = 1 : i64, tpu.core_type = #tpu.core_type<tc>, window_params = [{pipeline_mode = #tpu.pipeline_mode<synchronous>, transform_indices = @transform_0, window_bounds = array<i64: 2, 8, 48>}, {pipeline_mode = #tpu.pipeline_mode<synchronous>, transform_indices = @transform_1, window_bounds = array<i64: 2, 2, 128>}, {pipeline_mode = #tpu.pipeline_mode<synchronous>, transform_indices = @transform_2, window_bounds = array<i64: 2, 2, 128>}, {pipeline_mode = #tpu.pipeline_mode<synchronous>, transform_indices = @transform_3, window_bounds = array<i64: 48, 512>}, {pipeline_mode = #tpu.pipeline_mode<synchronous>, transform_indices = @transform_4, window_bounds = array<i64: 128, 512>}, {pipeline_mode = #tpu.pipeline_mode<synchronous>, transform_indices = @transform_5, window_bounds = array<i64: 1, 512>}, {pipeline_mode = #tpu.pipeline_mode<synchronous>, transform_indices = @transform_6, window_bounds = array<i64: 128, 512>}, {pipeline_mode = #tpu.pipeline_mode<synchronous>, transform_indices = @transform_7, window_bounds = array<i64: 128, 512>}, {pipeline_mode = #tpu.pipeline_mode<synchronous>, transform_indices = @transform_8, window_bounds = array<i64: 1, 512>}, {pipeline_mode = #tpu.pipeline_mode<synchronous>, transform_indices = @transform_9, window_bounds = array<i64: 128, 128>}, {pipeline_mode = #tpu.pipeline_mode<synchronous>, transform_indices = @transform_10, window_bounds = array<i64: 1, 128>}, {pipeline_mode = #tpu.pipeline_mode<synchronous>, transform_indices = @transform_11, window_bounds = array<i64: 16, 128>}, {pipeline_mode = #tpu.pipeline_mode<synchronous>, transform_indices = @transform_12, window_bounds = array<i64: 2, 2, 128>}, {pipeline_mode = #tpu.pipeline_mode<synchronous>, transform_indices = @transform_13, window_bounds = array<i64: 2, 2, 128>}]} {
    %c0 = arith.constant 0 : index
    %c0_0 = arith.constant 0 : index
    %c0_1 = arith.constant 0 : index
    %0 = vector.load %arg1[%c0, %c0_0, %c0_1] : memref<2x8x48xbf16, #tpu.memory_space<vmem>>, vector<2x8x48xbf16>
    %1 = vector.shape_cast %0 : vector<2x8x48xbf16> to vector<16x48xbf16>
    %c0_2 = arith.constant 0 : index
    %c0_3 = arith.constant 0 : index
    %2 = vector.load %arg4[%c0_2, %c0_3] : memref<48x512xbf16, #tpu.memory_space<vmem>>, vector<48x512xbf16>
    %c0_4 = arith.constant 0 : index
    %c0_5 = arith.constant 0 : index
    %3 = vector.load %arg5[%c0_4, %c0_5] : memref<128x512xbf16, #tpu.memory_space<vmem>>, vector<128x512xbf16>
    %c0_6 = arith.constant 0 : index
    %c0_7 = arith.constant 0 : index
    %4 = vector.load %arg6[%c0_6, %c0_7] : memref<1x512xf32, #tpu.memory_space<vmem>>, vector<1x512xf32>
    %cst = arith.constant dense<0.000000e+00> : vector<16x512xf32>
    %5 = tpu.matmul %1, %2, %cst {dimension_numbers = #tpu.dot_dimension_numbers<[1], [0], [0], [1], [0, 0, 1, 1], [], []>} : vector<16x48xbf16>, vector<48x512xbf16>, vector<16x512xf32> -> vector<16x512xf32>
    %6 = vector.broadcast %4 : vector<1x512xf32> to vector<16x512xf32>
    %7 = arith.addf %5, %6 : vector<16x512xf32>
    %8 = vector.shape_cast %7 : vector<16x512xf32> to vector<2x8x512xf32>
    %c0_8 = arith.constant 0 : index
    %c0_9 = arith.constant 0 : index
    %c0_10 = arith.constant 0 : index
    %9 = vector.load %arg2[%c0_8, %c0_9, %c0_10] : memref<2x2x128xf32, #tpu.memory_space<vmem>>, vector<1x2x128xf32>
    %10 = vector.shape_cast %9 : vector<1x2x128xf32> to vector<2x128xf32>
    %c0_11 = arith.constant 0 : index
    %c0_12 = arith.constant 0 : index
    %c0_13 = arith.constant 0 : index
    %11 = vector.load %arg3[%c0_11, %c0_12, %c0_13] : memref<2x2x128xf32, #tpu.memory_space<vmem>>, vector<1x2x128xf32>
    %12 = vector.shape_cast %11 : vector<1x2x128xf32> to vector<2x128xf32>
    %13 = vector.extract_strided_slice %8 {offsets = [0, 0, 0], sizes = [2, 1, 512], strides = [1, 1, 1]} : vector<2x8x512xf32> to vector<2x1x512xf32>
    %14 = vector.shape_cast %13 : vector<2x1x512xf32> to vector<2x512xf32>
    %15 = arith.truncf %10 : vector<2x128xf32> to vector<2x128xbf16>
    %cst_14 = arith.constant dense<0.000000e+00> : vector<2x512xf32>
    %16 = tpu.matmul %15, %3, %cst_14 {dimension_numbers = #tpu.dot_dimension_numbers<[1], [0], [0], [1], [0, 0, 1, 1], [], []>} : vector<2x128xbf16>, vector<128x512xbf16>, vector<2x512xf32> -> vector<2x512xf32>
    %17 = arith.addf %14, %16 : vector<2x512xf32>
    %18 = vector.extract_strided_slice %17 {offsets = [0, 0], sizes = [2, 128], strides = [1, 1]} : vector<2x512xf32> to vector<2x128xf32>
    %19 = arith.negf %18 : vector<2x128xf32>
    %20 = math.exp %19 : vector<2x128xf32>
    %cst_15 = arith.constant 1.000000e+00 : f32
    %21 = vector.broadcast %cst_15 : f32 to vector<2x128xf32>
    %22 = arith.addf %21, %20 : vector<2x128xf32>
    %23 = arith.divf %21, %22 : vector<2x128xf32>
    %24 = vector.extract_strided_slice %17 {offsets = [0, 128], sizes = [2, 128], strides = [1, 1]} : vector<2x512xf32> to vector<2x128xf32>
    %25 = arith.negf %24 : vector<2x128xf32>
    %26 = math.exp %25 : vector<2x128xf32>
    %cst_16 = arith.constant 1.000000e+00 : f32
    %27 = vector.broadcast %cst_16 : f32 to vector<2x128xf32>
    %28 = arith.addf %27, %26 : vector<2x128xf32>
    %29 = arith.divf %27, %28 : vector<2x128xf32>
    %30 = vector.extract_strided_slice %17 {offsets = [0, 256], sizes = [2, 128], strides = [1, 1]} : vector<2x512xf32> to vector<2x128xf32>
    %31 = math.tanh %30 : vector<2x128xf32>
    %32 = vector.extract_strided_slice %17 {offsets = [0, 384], sizes = [2, 128], strides = [1, 1]} : vector<2x512xf32> to vector<2x128xf32>
    %33 = arith.negf %32 : vector<2x128xf32>
    %34 = math.exp %33 : vector<2x128xf32>
    %cst_17 = arith.constant 1.000000e+00 : f32
    %35 = vector.broadcast %cst_17 : f32 to vector<2x128xf32>
    %36 = arith.addf %35, %34 : vector<2x128xf32>
    %37 = arith.divf %35, %36 : vector<2x128xf32>
    %38 = arith.mulf %29, %12 : vector<2x128xf32>
    %39 = arith.mulf %23, %31 : vector<2x128xf32>
    %40 = arith.addf %38, %39 : vector<2x128xf32>
    %41 = math.tanh %40 : vector<2x128xf32>
    %42 = arith.mulf %37, %41 : vector<2x128xf32>
    %43 = vector.shape_cast %42 : vector<2x128xf32> to vector<2x1x128xf32>
    %c0_18 = arith.constant 0 : index
    %c0_19 = arith.constant 0 : index
    %c0_20 = arith.constant 0 : index
    %44 = vector.load %arg15[%c0_18, %c0_19, %c0_20] : memref<2x8x128xf32, #tpu.memory_space<vmem>>, vector<2x1x128xf32>
    tpu.vector_store %arg15[%c0_18, %c0_19, %c0_20], %43 {strides = array<i32>} : memref<2x8x128xf32, #tpu.memory_space<vmem>>, vector<2x1x128xf32>,
    %45 = vector.extract_strided_slice %8 {offsets = [0, 1, 0], sizes = [2, 1, 512], strides = [1, 1, 1]} : vector<2x8x512xf32> to vector<2x1x512xf32>
    %46 = vector.shape_cast %45 : vector<2x1x512xf32> to vector<2x512xf32>
    %47 = arith.truncf %42 : vector<2x128xf32> to vector<2x128xbf16>
    %cst_21 = arith.constant dense<0.000000e+00> : vector<2x512xf32>
    %48 = tpu.matmul %47, %3, %cst_21 {dimension_numbers = #tpu.dot_dimension_numbers<[1], [0], [0], [1], [0, 0, 1, 1], [], []>} : vector<2x128xbf16>, vector<128x512xbf16>, vector<2x512xf32> -> vector<2x512xf32>
    %49 = arith.addf %46, %48 : vector<2x512xf32>
    %50 = vector.extract_strided_slice %49 {offsets = [0, 0], sizes = [2, 128], strides = [1, 1]} : vector<2x512xf32> to vector<2x128xf32>
    %51 = arith.negf %50 : vector<2x128xf32>
    %52 = math.exp %51 : vector<2x128xf32>
    %cst_22 = arith.constant 1.000000e+00 : f32
    %53 = vector.broadcast %cst_22 : f32 to vector<2x128xf32>
    %54 = arith.addf %53, %52 : vector<2x128xf32>
    %55 = arith.divf %53, %54 : vector<2x128xf32>
    %56 = vector.extract_strided_slice %49 {offsets = [0, 128], sizes = [2, 128], strides = [1, 1]} : vector<2x512xf32> to vector<2x128xf32>
    %57 = arith.negf %56 : vector<2x128xf32>
    %58 = math.exp %57 : vector<2x128xf32>
    %cst_23 = arith.constant 1.000000e+00 : f32
    %59 = vector.broadcast %cst_23 : f32 to vector<2x128xf32>
    %60 = arith.addf %59, %58 : vector<2x128xf32>
    %61 = arith.divf %59, %60 : vector<2x128xf32>
    %62 = vector.extract_strided_slice %49 {offsets = [0, 256], sizes = [2, 128], strides = [1, 1]} : vector<2x512xf32> to vector<2x128xf32>
    %63 = math.tanh %62 : vector<2x128xf32>
    %64 = vector.extract_strided_slice %49 {offsets = [0, 384], sizes = [2, 128], strides = [1, 1]} : vector<2x512xf32> to vector<2x128xf32>
    %65 = arith.negf %64 : vector<2x128xf32>
    %66 = math.exp %65 : vector<2x128xf32>
    %cst_24 = arith.constant 1.000000e+00 : f32
    %67 = vector.broadcast %cst_24 : f32 to vector<2x128xf32>
    %68 = arith.addf %67, %66 : vector<2x128xf32>
    %69 = arith.divf %67, %68 : vector<2x128xf32>
    %70 = arith.mulf %61, %40 : vector<2x128xf32>
    %71 = arith.mulf %55, %63 : vector<2x128xf32>
    %72 = arith.addf %70, %71 : vector<2x128xf32>
    %73 = math.tanh %72 : vector<2x128xf32>
    %74 = arith.mulf %69, %73 : vector<2x128xf32>
    %75 = vector.shape_cast %74 : vector<2x128xf32> to vector<2x1x128xf32>
    %c0_25 = arith.constant 0 : index
    %c1 = arith.constant 1 : index
    %c0_26 = arith.constant 0 : index
    %76 = vector.load %arg15[%c0_25, %c1, %c0_26] : memref<2x8x128xf32, #tpu.memory_space<vmem>>, vector<2x1x128xf32>
    tpu.vector_store %arg15[%c0_25, %c1, %c0_26], %75 {strides = array<i32>} : memref<2x8x128xf32, #tpu.memory_space<vmem>>, vector<2x1x128xf32>,
    %77 = vector.extract_strided_slice %8 {offsets = [0, 2, 0], sizes = [2, 1, 512], strides = [1, 1, 1]} : vector<2x8x512xf32> to vector<2x1x512xf32>
    %78 = vector.shape_cast %77 : vector<2x1x512xf32> to vector<2x512xf32>
    %79 = arith.truncf %74 : vector<2x128xf32> to vector<2x128xbf16>
    %cst_27 = arith.constant dense<0.000000e+00> : vector<2x512xf32>
    %80 = tpu.matmul %79, %3, %cst_27 {dimension_numbers = #tpu.dot_dimension_numbers<[1], [0], [0], [1], [0, 0, 1, 1], [], []>} : vector<2x128xbf16>, vector<128x512xbf16>, vector<2x512xf32> -> vector<2x512xf32>
    %81 = arith.addf %78, %80 : vector<2x512xf32>
    %82 = vector.extract_strided_slice %81 {offsets = [0, 0], sizes = [2, 128], strides = [1, 1]} : vector<2x512xf32> to vector<2x128xf32>
    %83 = arith.negf %82 : vector<2x128xf32>
    %84 = math.exp %83 : vector<2x128xf32>
    %cst_28 = arith.constant 1.000000e+00 : f32
    %85 = vector.broadcast %cst_28 : f32 to vector<2x128xf32>
    %86 = arith.addf %85, %84 : vector<2x128xf32>
    %87 = arith.divf %85, %86 : vector<2x128xf32>
    %88 = vector.extract_strided_slice %81 {offsets = [0, 128], sizes = [2, 128], strides = [1, 1]} : vector<2x512xf32> to vector<2x128xf32>
    %89 = arith.negf %88 : vector<2x128xf32>
    %90 = math.exp %89 : vector<2x128xf32>
    %cst_29 = arith.constant 1.000000e+00 : f32
    %91 = vector.broadcast %cst_29 : f32 to vector<2x128xf32>
    %92 = arith.addf %91, %90 : vector<2x128xf32>
    %93 = arith.divf %91, %92 : vector<2x128xf32>
    %94 = vector.extract_strided_slice %81 {offsets = [0, 256], sizes = [2, 128], strides = [1, 1]} : vector<2x512xf32> to vector<2x128xf32>
    %95 = math.tanh %94 : vector<2x128xf32>
    %96 = vector.extract_strided_slice %81 {offsets = [0, 384], sizes = [2, 128], strides = [1, 1]} : vector<2x512xf32> to vector<2x128xf32>
    %97 = arith.negf %96 : vector<2x128xf32>
    %98 = math.exp %97 : vector<2x128xf32>
    %cst_30 = arith.constant 1.000000e+00 : f32
    %99 = vector.broadcast %cst_30 : f32 to vector<2x128xf32>
    %100 = arith.addf %99, %98 : vector<2x128xf32>
    %101 = arith.divf %99, %100 : vector<2x128xf32>
    %102 = arith.mulf %93, %72 : vector<2x128xf32>
    %103 = arith.mulf %87, %95 : vector<2x128xf32>
    %104 = arith.addf %102, %103 : vector<2x128xf32>
    %105 = math.tanh %104 : vector<2x128xf32>
    %106 = arith.mulf %101, %105 : vector<2x128xf32>
    %107 = vector.shape_cast %106 : vector<2x128xf32> to vector<2x1x128xf32>
    %c0_31 = arith.constant 0 : index
    %c2 = arith.constant 2 : index
    %c0_32 = arith.constant 0 : index
    %108 = vector.load %arg15[%c0_31, %c2, %c0_32] : memref<2x8x128xf32, #tpu.memory_space<vmem>>, vector<2x1x128xf32>
    tpu.vector_store %arg15[%c0_31, %c2, %c0_32], %107 {strides = array<i32>} : memref<2x8x128xf32, #tpu.memory_space<vmem>>, vector<2x1x128xf32>,
    %109 = vector.extract_strided_slice %8 {offsets = [0, 3, 0], sizes = [2, 1, 512], strides = [1, 1, 1]} : vector<2x8x512xf32> to vector<2x1x512xf32>
    %110 = vector.shape_cast %109 : vector<2x1x512xf32> to vector<2x512xf32>
    %111 = arith.truncf %106 : vector<2x128xf32> to vector<2x128xbf16>
    %cst_33 = arith.constant dense<0.000000e+00> : vector<2x512xf32>
    %112 = tpu.matmul %111, %3, %cst_33 {dimension_numbers = #tpu.dot_dimension_numbers<[1], [0], [0], [1], [0, 0, 1, 1], [], []>} : vector<2x128xbf16>, vector<128x512xbf16>, vector<2x512xf32> -> vector<2x512xf32>
    %113 = arith.addf %110, %112 : vector<2x512xf32>
    %114 = vector.extract_strided_slice %113 {offsets = [0, 0], sizes = [2, 128], strides = [1, 1]} : vector<2x512xf32> to vector<2x128xf32>
    %115 = arith.negf %114 : vector<2x128xf32>
    %116 = math.exp %115 : vector<2x128xf32>
    %cst_34 = arith.constant 1.000000e+00 : f32
    %117 = vector.broadcast %cst_34 : f32 to vector<2x128xf32>
    %118 = arith.addf %117, %116 : vector<2x128xf32>
    %119 = arith.divf %117, %118 : vector<2x128xf32>
    %120 = vector.extract_strided_slice %113 {offsets = [0, 128], sizes = [2, 128], strides = [1, 1]} : vector<2x512xf32> to vector<2x128xf32>
    %121 = arith.negf %120 : vector<2x128xf32>
    %122 = math.exp %121 : vector<2x128xf32>
    %cst_35 = arith.constant 1.000000e+00 : f32
    %123 = vector.broadcast %cst_35 : f32 to vector<2x128xf32>
    %124 = arith.addf %123, %122 : vector<2x128xf32>
    %125 = arith.divf %123, %124 : vector<2x128xf32>
    %126 = vector.extract_strided_slice %113 {offsets = [0, 256], sizes = [2, 128], strides = [1, 1]} : vector<2x512xf32> to vector<2x128xf32>
    %127 = math.tanh %126 : vector<2x128xf32>
    %128 = vector.extract_strided_slice %113 {offsets = [0, 384], sizes = [2, 128], strides = [1, 1]} : vector<2x512xf32> to vector<2x128xf32>
    %129 = arith.negf %128 : vector<2x128xf32>
    %130 = math.exp %129 : vector<2x128xf32>
    %cst_36 = arith.constant 1.000000e+00 : f32
    %131 = vector.broadcast %cst_36 : f32 to vector<2x128xf32>
    %132 = arith.addf %131, %130 : vector<2x128xf32>
    %133 = arith.divf %131, %132 : vector<2x128xf32>
    %134 = arith.mulf %125, %104 : vector<2x128xf32>
    %135 = arith.mulf %119, %127 : vector<2x128xf32>
    %136 = arith.addf %134, %135 : vector<2x128xf32>
    %137 = math.tanh %136 : vector<2x128xf32>
    %138 = arith.mulf %133, %137 : vector<2x128xf32>
    %139 = vector.shape_cast %138 : vector<2x128xf32> to vector<2x1x128xf32>
    %c0_37 = arith.constant 0 : index
    %c3 = arith.constant 3 : index
    %c0_38 = arith.constant 0 : index
    %140 = vector.load %arg15[%c0_37, %c3, %c0_38] : memref<2x8x128xf32, #tpu.memory_space<vmem>>, vector<2x1x128xf32>
    tpu.vector_store %arg15[%c0_37, %c3, %c0_38], %139 {strides = array<i32>} : memref<2x8x128xf32, #tpu.memory_space<vmem>>, vector<2x1x128xf32>,
    %141 = vector.extract_strided_slice %8 {offsets = [0, 4, 0], sizes = [2, 1, 512], strides = [1, 1, 1]} : vector<2x8x512xf32> to vector<2x1x512xf32>
    %142 = vector.shape_cast %141 : vector<2x1x512xf32> to vector<2x512xf32>
    %143 = arith.truncf %138 : vector<2x128xf32> to vector<2x128xbf16>
    %cst_39 = arith.constant dense<0.000000e+00> : vector<2x512xf32>
    %144 = tpu.matmul %143, %3, %cst_39 {dimension_numbers = #tpu.dot_dimension_numbers<[1], [0], [0], [1], [0, 0, 1, 1], [], []>} : vector<2x128xbf16>, vector<128x512xbf16>, vector<2x512xf32> -> vector<2x512xf32>
    %145 = arith.addf %142, %144 : vector<2x512xf32>
    %146 = vector.extract_strided_slice %145 {offsets = [0, 0], sizes = [2, 128], strides = [1, 1]} : vector<2x512xf32> to vector<2x128xf32>
    %147 = arith.negf %146 : vector<2x128xf32>
    %148 = math.exp %147 : vector<2x128xf32>
    %cst_40 = arith.constant 1.000000e+00 : f32
    %149 = vector.broadcast %cst_40 : f32 to vector<2x128xf32>
    %150 = arith.addf %149, %148 : vector<2x128xf32>
    %151 = arith.divf %149, %150 : vector<2x128xf32>
    %152 = vector.extract_strided_slice %145 {offsets = [0, 128], sizes = [2, 128], strides = [1, 1]} : vector<2x512xf32> to vector<2x128xf32>
    %153 = arith.negf %152 : vector<2x128xf32>
    %154 = math.exp %153 : vector<2x128xf32>
    %cst_41 = arith.constant 1.000000e+00 : f32
    %155 = vector.broadcast %cst_41 : f32 to vector<2x128xf32>
    %156 = arith.addf %155, %154 : vector<2x128xf32>
    %157 = arith.divf %155, %156 : vector<2x128xf32>
    %158 = vector.extract_strided_slice %145 {offsets = [0, 256], sizes = [2, 128], strides = [1, 1]} : vector<2x512xf32> to vector<2x128xf32>
    %159 = math.tanh %158 : vector<2x128xf32>
    %160 = vector.extract_strided_slice %145 {offsets = [0, 384], sizes = [2, 128], strides = [1, 1]} : vector<2x512xf32> to vector<2x128xf32>
    %161 = arith.negf %160 : vector<2x128xf32>
    %162 = math.exp %161 : vector<2x128xf32>
    %cst_42 = arith.constant 1.000000e+00 : f32
    %163 = vector.broadcast %cst_42 : f32 to vector<2x128xf32>
    %164 = arith.addf %163, %162 : vector<2x128xf32>
    %165 = arith.divf %163, %164 : vector<2x128xf32>
    %166 = arith.mulf %157, %136 : vector<2x128xf32>
    %167 = arith.mulf %151, %159 : vector<2x128xf32>
    %168 = arith.addf %166, %167 : vector<2x128xf32>
    %169 = math.tanh %168 : vector<2x128xf32>
    %170 = arith.mulf %165, %169 : vector<2x128xf32>
    %171 = vector.shape_cast %170 : vector<2x128xf32> to vector<2x1x128xf32>
    %c0_43 = arith.constant 0 : index
    %c4 = arith.constant 4 : index
    %c0_44 = arith.constant 0 : index
    %172 = vector.load %arg15[%c0_43, %c4, %c0_44] : memref<2x8x128xf32, #tpu.memory_space<vmem>>, vector<2x1x128xf32>
    tpu.vector_store %arg15[%c0_43, %c4, %c0_44], %171 {strides = array<i32>} : memref<2x8x128xf32, #tpu.memory_space<vmem>>, vector<2x1x128xf32>,
    %173 = vector.extract_strided_slice %8 {offsets = [0, 5, 0], sizes = [2, 1, 512], strides = [1, 1, 1]} : vector<2x8x512xf32> to vector<2x1x512xf32>
    %174 = vector.shape_cast %173 : vector<2x1x512xf32> to vector<2x512xf32>
    %175 = arith.truncf %170 : vector<2x128xf32> to vector<2x128xbf16>
    %cst_45 = arith.constant dense<0.000000e+00> : vector<2x512xf32>
    %176 = tpu.matmul %175, %3, %cst_45 {dimension_numbers = #tpu.dot_dimension_numbers<[1], [0], [0], [1], [0, 0, 1, 1], [], []>} : vector<2x128xbf16>, vector<128x512xbf16>, vector<2x512xf32> -> vector<2x512xf32>
    %177 = arith.addf %174, %176 : vector<2x512xf32>
    %178 = vector.extract_strided_slice %177 {offsets = [0, 0], sizes = [2, 128], strides = [1, 1]} : vector<2x512xf32> to vector<2x128xf32>
    %179 = arith.negf %178 : vector<2x128xf32>
    %180 = math.exp %179 : vector<2x128xf32>
    %cst_46 = arith.constant 1.000000e+00 : f32
    %181 = vector.broadcast %cst_46 : f32 to vector<2x128xf32>
    %182 = arith.addf %181, %180 : vector<2x128xf32>
    %183 = arith.divf %181, %182 : vector<2x128xf32>
    %184 = vector.extract_strided_slice %177 {offsets = [0, 128], sizes = [2, 128], strides = [1, 1]} : vector<2x512xf32> to vector<2x128xf32>
    %185 = arith.negf %184 : vector<2x128xf32>
    %186 = math.exp %185 : vector<2x128xf32>
    %cst_47 = arith.constant 1.000000e+00 : f32
    %187 = vector.broadcast %cst_47 : f32 to vector<2x128xf32>
    %188 = arith.addf %187, %186 : vector<2x128xf32>
    %189 = arith.divf %187, %188 : vector<2x128xf32>
    %190 = vector.extract_strided_slice %177 {offsets = [0, 256], sizes = [2, 128], strides = [1, 1]} : vector<2x512xf32> to vector<2x128xf32>
    %191 = math.tanh %190 : vector<2x128xf32>
    %192 = vector.extract_strided_slice %177 {offsets = [0, 384], sizes = [2, 128], strides = [1, 1]} : vector<2x512xf32> to vector<2x128xf32>
    %193 = arith.negf %192 : vector<2x128xf32>
    %194 = math.exp %193 : vector<2x128xf32>
    %cst_48 = arith.constant 1.000000e+00 : f32
    %195 = vector.broadcast %cst_48 : f32 to vector<2x128xf32>
    %196 = arith.addf %195, %194 : vector<2x128xf32>
    %197 = arith.divf %195, %196 : vector<2x128xf32>
    %198 = arith.mulf %189, %168 : vector<2x128xf32>
    %199 = arith.mulf %183, %191 : vector<2x128xf32>
    %200 = arith.addf %198, %199 : vector<2x128xf32>
    %201 = math.tanh %200 : vector<2x128xf32>
    %202 = arith.mulf %197, %201 : vector<2x128xf32>
    %203 = vector.shape_cast %202 : vector<2x128xf32> to vector<2x1x128xf32>
    %c0_49 = arith.constant 0 : index
    %c5 = arith.constant 5 : index
    %c0_50 = arith.constant 0 : index
    %204 = vector.load %arg15[%c0_49, %c5, %c0_50] : memref<2x8x128xf32, #tpu.memory_space<vmem>>, vector<2x1x128xf32>
    tpu.vector_store %arg15[%c0_49, %c5, %c0_50], %203 {strides = array<i32>} : memref<2x8x128xf32, #tpu.memory_space<vmem>>, vector<2x1x128xf32>,
    %205 = vector.extract_strided_slice %8 {offsets = [0, 6, 0], sizes = [2, 1, 512], strides = [1, 1, 1]} : vector<2x8x512xf32> to vector<2x1x512xf32>
    %206 = vector.shape_cast %205 : vector<2x1x512xf32> to vector<2x512xf32>
    %207 = arith.truncf %202 : vector<2x128xf32> to vector<2x128xbf16>
    %cst_51 = arith.constant dense<0.000000e+00> : vector<2x512xf32>
    %208 = tpu.matmul %207, %3, %cst_51 {dimension_numbers = #tpu.dot_dimension_numbers<[1], [0], [0], [1], [0, 0, 1, 1], [], []>} : vector<2x128xbf16>, vector<128x512xbf16>, vector<2x512xf32> -> vector<2x512xf32>
    %209 = arith.addf %206, %208 : vector<2x512xf32>
    %210 = vector.extract_strided_slice %209 {offsets = [0, 0], sizes = [2, 128], strides = [1, 1]} : vector<2x512xf32> to vector<2x128xf32>
    %211 = arith.negf %210 : vector<2x128xf32>
    %212 = math.exp %211 : vector<2x128xf32>
    %cst_52 = arith.constant 1.000000e+00 : f32
    %213 = vector.broadcast %cst_52 : f32 to vector<2x128xf32>
    %214 = arith.addf %213, %212 : vector<2x128xf32>
    %215 = arith.divf %213, %214 : vector<2x128xf32>
    %216 = vector.extract_strided_slice %209 {offsets = [0, 128], sizes = [2, 128], strides = [1, 1]} : vector<2x512xf32> to vector<2x128xf32>
    %217 = arith.negf %216 : vector<2x128xf32>
    %218 = math.exp %217 : vector<2x128xf32>
    %cst_53 = arith.constant 1.000000e+00 : f32
    %219 = vector.broadcast %cst_53 : f32 to vector<2x128xf32>
    %220 = arith.addf %219, %218 : vector<2x128xf32>
    %221 = arith.divf %219, %220 : vector<2x128xf32>
    %222 = vector.extract_strided_slice %209 {offsets = [0, 256], sizes = [2, 128], strides = [1, 1]} : vector<2x512xf32> to vector<2x128xf32>
    %223 = math.tanh %222 : vector<2x128xf32>
    %224 = vector.extract_strided_slice %209 {offsets = [0, 384], sizes = [2, 128], strides = [1, 1]} : vector<2x512xf32> to vector<2x128xf32>
    %225 = arith.negf %224 : vector<2x128xf32>
    %226 = math.exp %225 : vector<2x128xf32>
    %cst_54 = arith.constant 1.000000e+00 : f32
    %227 = vector.broadcast %cst_54 : f32 to vector<2x128xf32>
    %228 = arith.addf %227, %226 : vector<2x128xf32>
    %229 = arith.divf %227, %228 : vector<2x128xf32>
    %230 = arith.mulf %221, %200 : vector<2x128xf32>
    %231 = arith.mulf %215, %223 : vector<2x128xf32>
    %232 = arith.addf %230, %231 : vector<2x128xf32>
    %233 = math.tanh %232 : vector<2x128xf32>
    %234 = arith.mulf %229, %233 : vector<2x128xf32>
    %235 = vector.shape_cast %234 : vector<2x128xf32> to vector<2x1x128xf32>
    %c0_55 = arith.constant 0 : index
    %c6 = arith.constant 6 : index
    %c0_56 = arith.constant 0 : index
    %236 = vector.load %arg15[%c0_55, %c6, %c0_56] : memref<2x8x128xf32, #tpu.memory_space<vmem>>, vector<2x1x128xf32>
    tpu.vector_store %arg15[%c0_55, %c6, %c0_56], %235 {strides = array<i32>} : memref<2x8x128xf32, #tpu.memory_space<vmem>>, vector<2x1x128xf32>,
    %237 = vector.extract_strided_slice %8 {offsets = [0, 7, 0], sizes = [2, 1, 512], strides = [1, 1, 1]} : vector<2x8x512xf32> to vector<2x1x512xf32>
    %238 = vector.shape_cast %237 : vector<2x1x512xf32> to vector<2x512xf32>
    %239 = arith.truncf %234 : vector<2x128xf32> to vector<2x128xbf16>
    %cst_57 = arith.constant dense<0.000000e+00> : vector<2x512xf32>
    %240 = tpu.matmul %239, %3, %cst_57 {dimension_numbers = #tpu.dot_dimension_numbers<[1], [0], [0], [1], [0, 0, 1, 1], [], []>} : vector<2x128xbf16>, vector<128x512xbf16>, vector<2x512xf32> -> vector<2x512xf32>
    %241 = arith.addf %238, %240 : vector<2x512xf32>
    %242 = vector.extract_strided_slice %241 {offsets = [0, 0], sizes = [2, 128], strides = [1, 1]} : vector<2x512xf32> to vector<2x128xf32>
    %243 = arith.negf %242 : vector<2x128xf32>
    %244 = math.exp %243 : vector<2x128xf32>
    %cst_58 = arith.constant 1.000000e+00 : f32
    %245 = vector.broadcast %cst_58 : f32 to vector<2x128xf32>
    %246 = arith.addf %245, %244 : vector<2x128xf32>
    %247 = arith.divf %245, %246 : vector<2x128xf32>
    %248 = vector.extract_strided_slice %241 {offsets = [0, 128], sizes = [2, 128], strides = [1, 1]} : vector<2x512xf32> to vector<2x128xf32>
    %249 = arith.negf %248 : vector<2x128xf32>
    %250 = math.exp %249 : vector<2x128xf32>
    %cst_59 = arith.constant 1.000000e+00 : f32
    %251 = vector.broadcast %cst_59 : f32 to vector<2x128xf32>
    %252 = arith.addf %251, %250 : vector<2x128xf32>
    %253 = arith.divf %251, %252 : vector<2x128xf32>
    %254 = vector.extract_strided_slice %241 {offsets = [0, 256], sizes = [2, 128], strides = [1, 1]} : vector<2x512xf32> to vector<2x128xf32>
    %255 = math.tanh %254 : vector<2x128xf32>
    %256 = vector.extract_strided_slice %241 {offsets = [0, 384], sizes = [2, 128], strides = [1, 1]} : vector<2x512xf32> to vector<2x128xf32>
    %257 = arith.negf %256 : vector<2x128xf32>
    %258 = math.exp %257 : vector<2x128xf32>
    %cst_60 = arith.constant 1.000000e+00 : f32
    %259 = vector.broadcast %cst_60 : f32 to vector<2x128xf32>
    %260 = arith.addf %259, %258 : vector<2x128xf32>
    %261 = arith.divf %259, %260 : vector<2x128xf32>
    %262 = arith.mulf %253, %232 : vector<2x128xf32>
    %263 = arith.mulf %247, %255 : vector<2x128xf32>
    %264 = arith.addf %262, %263 : vector<2x128xf32>
    %265 = math.tanh %264 : vector<2x128xf32>
    %266 = arith.mulf %261, %265 : vector<2x128xf32>
    %267 = vector.shape_cast %266 : vector<2x128xf32> to vector<2x1x128xf32>
    %c0_61 = arith.constant 0 : index
    %c7 = arith.constant 7 : index
    %c0_62 = arith.constant 0 : index
    %268 = vector.load %arg15[%c0_61, %c7, %c0_62] : memref<2x8x128xf32, #tpu.memory_space<vmem>>, vector<2x1x128xf32>
    tpu.vector_store %arg15[%c0_61, %c7, %c0_62], %267 {strides = array<i32>} : memref<2x8x128xf32, #tpu.memory_space<vmem>>, vector<2x1x128xf32>,
    %c0_63 = arith.constant 0 : index
    %c0_64 = arith.constant 0 : index
    %c0_65 = arith.constant 0 : index
    %269 = vector.load %arg13[%c0_63, %c0_64, %c0_65] : memref<2x2x128xf32, #tpu.memory_space<vmem>>, vector<1x2x128xf32>
    %270 = vector.shape_cast %269 : vector<1x2x128xf32> to vector<2x128xf32>
    %271 = vector.shape_cast %266 : vector<2x128xf32> to vector<1x2x128xf32>
    tpu.vector_store %arg13[%c0_63, %c0_64, %c0_65], %271 {strides = array<i32>} : memref<2x2x128xf32, #tpu.memory_space<vmem>>, vector<1x2x128xf32>,
    %c0_66 = arith.constant 0 : index
    %c0_67 = arith.constant 0 : index
    %c0_68 = arith.constant 0 : index
    %272 = vector.load %arg14[%c0_66, %c0_67, %c0_68] : memref<2x2x128xf32, #tpu.memory_space<vmem>>, vector<1x2x128xf32>
    %273 = vector.shape_cast %272 : vector<1x2x128xf32> to vector<2x128xf32>
    %274 = vector.shape_cast %264 : vector<2x128xf32> to vector<1x2x128xf32>
    tpu.vector_store %arg14[%c0_66, %c0_67, %c0_68], %274 {strides = array<i32>} : memref<2x2x128xf32, #tpu.memory_space<vmem>>, vector<1x2x128xf32>,
    %c0_69 = arith.constant 0 : index
    %c0_70 = arith.constant 0 : index
    %c0_71 = arith.constant 0 : index
    %275 = vector.load %arg15[%c0_69, %c0_70, %c0_71] : memref<2x8x128xf32, #tpu.memory_space<vmem>>, vector<2x8x128xf32>
    %276 = vector.shape_cast %275 : vector<2x8x128xf32> to vector<16x128xf32>
    %277 = arith.truncf %276 : vector<16x128xf32> to vector<16x128xbf16>
    %c0_72 = arith.constant 0 : index
    %c0_73 = arith.constant 0 : index
    %278 = vector.load %arg7[%c0_72, %c0_73] : memref<128x512xbf16, #tpu.memory_space<vmem>>, vector<128x512xbf16>
    %c0_74 = arith.constant 0 : index
    %c0_75 = arith.constant 0 : index
    %279 = vector.load %arg8[%c0_74, %c0_75] : memref<128x512xbf16, #tpu.memory_space<vmem>>, vector<128x512xbf16>
    %c0_76 = arith.constant 0 : index
    %c0_77 = arith.constant 0 : index
    %280 = vector.load %arg9[%c0_76, %c0_77] : memref<1x512xf32, #tpu.memory_space<vmem>>, vector<1x512xf32>
    %cst_78 = arith.constant dense<0.000000e+00> : vector<16x512xf32>
    %281 = tpu.matmul %277, %278, %cst_78 {dimension_numbers = #tpu.dot_dimension_numbers<[1], [0], [0], [1], [0, 0, 1, 1], [], []>} : vector<16x128xbf16>, vector<128x512xbf16>, vector<16x512xf32> -> vector<16x512xf32>
    %282 = vector.broadcast %280 : vector<1x512xf32> to vector<16x512xf32>
    %283 = arith.addf %281, %282 : vector<16x512xf32>
    %284 = vector.shape_cast %283 : vector<16x512xf32> to vector<2x8x512xf32>
    %c1_79 = arith.constant 1 : index
    %c0_80 = arith.constant 0 : index
    %c0_81 = arith.constant 0 : index
    %285 = vector.load %arg2[%c1_79, %c0_80, %c0_81] : memref<2x2x128xf32, #tpu.memory_space<vmem>>, vector<1x2x128xf32>
    %286 = vector.shape_cast %285 : vector<1x2x128xf32> to vector<2x128xf32>
    %c1_82 = arith.constant 1 : index
    %c0_83 = arith.constant 0 : index
    %c0_84 = arith.constant 0 : index
    %287 = vector.load %arg3[%c1_82, %c0_83, %c0_84] : memref<2x2x128xf32, #tpu.memory_space<vmem>>, vector<1x2x128xf32>
    %288 = vector.shape_cast %287 : vector<1x2x128xf32> to vector<2x128xf32>
    %289 = vector.extract_strided_slice %284 {offsets = [0, 0, 0], sizes = [2, 1, 512], strides = [1, 1, 1]} : vector<2x8x512xf32> to vector<2x1x512xf32>
    %290 = vector.shape_cast %289 : vector<2x1x512xf32> to vector<2x512xf32>
    %291 = arith.truncf %286 : vector<2x128xf32> to vector<2x128xbf16>
    %cst_85 = arith.constant dense<0.000000e+00> : vector<2x512xf32>
    %292 = tpu.matmul %291, %279, %cst_85 {dimension_numbers = #tpu.dot_dimension_numbers<[1], [0], [0], [1], [0, 0, 1, 1], [], []>} : vector<2x128xbf16>, vector<128x512xbf16>, vector<2x512xf32> -> vector<2x512xf32>
    %293 = arith.addf %290, %292 : vector<2x512xf32>
    %294 = vector.extract_strided_slice %293 {offsets = [0, 0], sizes = [2, 128], strides = [1, 1]} : vector<2x512xf32> to vector<2x128xf32>
    %295 = arith.negf %294 : vector<2x128xf32>
    %296 = math.exp %295 : vector<2x128xf32>
    %cst_86 = arith.constant 1.000000e+00 : f32
    %297 = vector.broadcast %cst_86 : f32 to vector<2x128xf32>
    %298 = arith.addf %297, %296 : vector<2x128xf32>
    %299 = arith.divf %297, %298 : vector<2x128xf32>
    %300 = vector.extract_strided_slice %293 {offsets = [0, 128], sizes = [2, 128], strides = [1, 1]} : vector<2x512xf32> to vector<2x128xf32>
    %301 = arith.negf %300 : vector<2x128xf32>
    %302 = math.exp %301 : vector<2x128xf32>
    %cst_87 = arith.constant 1.000000e+00 : f32
    %303 = vector.broadcast %cst_87 : f32 to vector<2x128xf32>
    %304 = arith.addf %303, %302 : vector<2x128xf32>
    %305 = arith.divf %303, %304 : vector<2x128xf32>
    %306 = vector.extract_strided_slice %293 {offsets = [0, 256], sizes = [2, 128], strides = [1, 1]} : vector<2x512xf32> to vector<2x128xf32>
    %307 = math.tanh %306 : vector<2x128xf32>
    %308 = vector.extract_strided_slice %293 {offsets = [0, 384], sizes = [2, 128], strides = [1, 1]} : vector<2x512xf32> to vector<2x128xf32>
    %309 = arith.negf %308 : vector<2x128xf32>
    %310 = math.exp %309 : vector<2x128xf32>
    %cst_88 = arith.constant 1.000000e+00 : f32
    %311 = vector.broadcast %cst_88 : f32 to vector<2x128xf32>
    %312 = arith.addf %311, %310 : vector<2x128xf32>
    %313 = arith.divf %311, %312 : vector<2x128xf32>
    %314 = arith.mulf %305, %288 : vector<2x128xf32>
    %315 = arith.mulf %299, %307 : vector<2x128xf32>
    %316 = arith.addf %314, %315 : vector<2x128xf32>
    %317 = math.tanh %316 : vector<2x128xf32>
    %318 = arith.mulf %313, %317 : vector<2x128xf32>
    %319 = vector.shape_cast %318 : vector<2x128xf32> to vector<2x1x128xf32>
    %c0_89 = arith.constant 0 : index
    %c0_90 = arith.constant 0 : index
    %c0_91 = arith.constant 0 : index
    %320 = vector.load %arg15[%c0_89, %c0_90, %c0_91] : memref<2x8x128xf32, #tpu.memory_space<vmem>>, vector<2x1x128xf32>
    tpu.vector_store %arg15[%c0_89, %c0_90, %c0_91], %319 {strides = array<i32>} : memref<2x8x128xf32, #tpu.memory_space<vmem>>, vector<2x1x128xf32>,
    %321 = vector.extract_strided_slice %284 {offsets = [0, 1, 0], sizes = [2, 1, 512], strides = [1, 1, 1]} : vector<2x8x512xf32> to vector<2x1x512xf32>
    %322 = vector.shape_cast %321 : vector<2x1x512xf32> to vector<2x512xf32>
    %323 = arith.truncf %318 : vector<2x128xf32> to vector<2x128xbf16>
    %cst_92 = arith.constant dense<0.000000e+00> : vector<2x512xf32>
    %324 = tpu.matmul %323, %279, %cst_92 {dimension_numbers = #tpu.dot_dimension_numbers<[1], [0], [0], [1], [0, 0, 1, 1], [], []>} : vector<2x128xbf16>, vector<128x512xbf16>, vector<2x512xf32> -> vector<2x512xf32>
    %325 = arith.addf %322, %324 : vector<2x512xf32>
    %326 = vector.extract_strided_slice %325 {offsets = [0, 0], sizes = [2, 128], strides = [1, 1]} : vector<2x512xf32> to vector<2x128xf32>
    %327 = arith.negf %326 : vector<2x128xf32>
    %328 = math.exp %327 : vector<2x128xf32>
    %cst_93 = arith.constant 1.000000e+00 : f32
    %329 = vector.broadcast %cst_93 : f32 to vector<2x128xf32>
    %330 = arith.addf %329, %328 : vector<2x128xf32>
    %331 = arith.divf %329, %330 : vector<2x128xf32>
    %332 = vector.extract_strided_slice %325 {offsets = [0, 128], sizes = [2, 128], strides = [1, 1]} : vector<2x512xf32> to vector<2x128xf32>
    %333 = arith.negf %332 : vector<2x128xf32>
    %334 = math.exp %333 : vector<2x128xf32>
    %cst_94 = arith.constant 1.000000e+00 : f32
    %335 = vector.broadcast %cst_94 : f32 to vector<2x128xf32>
    %336 = arith.addf %335, %334 : vector<2x128xf32>
    %337 = arith.divf %335, %336 : vector<2x128xf32>
    %338 = vector.extract_strided_slice %325 {offsets = [0, 256], sizes = [2, 128], strides = [1, 1]} : vector<2x512xf32> to vector<2x128xf32>
    %339 = math.tanh %338 : vector<2x128xf32>
    %340 = vector.extract_strided_slice %325 {offsets = [0, 384], sizes = [2, 128], strides = [1, 1]} : vector<2x512xf32> to vector<2x128xf32>
    %341 = arith.negf %340 : vector<2x128xf32>
    %342 = math.exp %341 : vector<2x128xf32>
    %cst_95 = arith.constant 1.000000e+00 : f32
    %343 = vector.broadcast %cst_95 : f32 to vector<2x128xf32>
    %344 = arith.addf %343, %342 : vector<2x128xf32>
    %345 = arith.divf %343, %344 : vector<2x128xf32>
    %346 = arith.mulf %337, %316 : vector<2x128xf32>
    %347 = arith.mulf %331, %339 : vector<2x128xf32>
    %348 = arith.addf %346, %347 : vector<2x128xf32>
    %349 = math.tanh %348 : vector<2x128xf32>
    %350 = arith.mulf %345, %349 : vector<2x128xf32>
    %351 = vector.shape_cast %350 : vector<2x128xf32> to vector<2x1x128xf32>
    %c0_96 = arith.constant 0 : index
    %c1_97 = arith.constant 1 : index
    %c0_98 = arith.constant 0 : index
    %352 = vector.load %arg15[%c0_96, %c1_97, %c0_98] : memref<2x8x128xf32, #tpu.memory_space<vmem>>, vector<2x1x128xf32>
    tpu.vector_store %arg15[%c0_96, %c1_97, %c0_98], %351 {strides = array<i32>} : memref<2x8x128xf32, #tpu.memory_space<vmem>>, vector<2x1x128xf32>,
    %353 = vector.extract_strided_slice %284 {offsets = [0, 2, 0], sizes = [2, 1, 512], strides = [1, 1, 1]} : vector<2x8x512xf32> to vector<2x1x512xf32>
    %354 = vector.shape_cast %353 : vector<2x1x512xf32> to vector<2x512xf32>
    %355 = arith.truncf %350 : vector<2x128xf32> to vector<2x128xbf16>
    %cst_99 = arith.constant dense<0.000000e+00> : vector<2x512xf32>
    %356 = tpu.matmul %355, %279, %cst_99 {dimension_numbers = #tpu.dot_dimension_numbers<[1], [0], [0], [1], [0, 0, 1, 1], [], []>} : vector<2x128xbf16>, vector<128x512xbf16>, vector<2x512xf32> -> vector<2x512xf32>
    %357 = arith.addf %354, %356 : vector<2x512xf32>
    %358 = vector.extract_strided_slice %357 {offsets = [0, 0], sizes = [2, 128], strides = [1, 1]} : vector<2x512xf32> to vector<2x128xf32>
    %359 = arith.negf %358 : vector<2x128xf32>
    %360 = math.exp %359 : vector<2x128xf32>
    %cst_100 = arith.constant 1.000000e+00 : f32
    %361 = vector.broadcast %cst_100 : f32 to vector<2x128xf32>
    %362 = arith.addf %361, %360 : vector<2x128xf32>
    %363 = arith.divf %361, %362 : vector<2x128xf32>
    %364 = vector.extract_strided_slice %357 {offsets = [0, 128], sizes = [2, 128], strides = [1, 1]} : vector<2x512xf32> to vector<2x128xf32>
    %365 = arith.negf %364 : vector<2x128xf32>
    %366 = math.exp %365 : vector<2x128xf32>
    %cst_101 = arith.constant 1.000000e+00 : f32
    %367 = vector.broadcast %cst_101 : f32 to vector<2x128xf32>
    %368 = arith.addf %367, %366 : vector<2x128xf32>
    %369 = arith.divf %367, %368 : vector<2x128xf32>
    %370 = vector.extract_strided_slice %357 {offsets = [0, 256], sizes = [2, 128], strides = [1, 1]} : vector<2x512xf32> to vector<2x128xf32>
    %371 = math.tanh %370 : vector<2x128xf32>
    %372 = vector.extract_strided_slice %357 {offsets = [0, 384], sizes = [2, 128], strides = [1, 1]} : vector<2x512xf32> to vector<2x128xf32>
    %373 = arith.negf %372 : vector<2x128xf32>
    %374 = math.exp %373 : vector<2x128xf32>
    %cst_102 = arith.constant 1.000000e+00 : f32
    %375 = vector.broadcast %cst_102 : f32 to vector<2x128xf32>
    %376 = arith.addf %375, %374 : vector<2x128xf32>
    %377 = arith.divf %375, %376 : vector<2x128xf32>
    %378 = arith.mulf %369, %348 : vector<2x128xf32>
    %379 = arith.mulf %363, %371 : vector<2x128xf32>
    %380 = arith.addf %378, %379 : vector<2x128xf32>
    %381 = math.tanh %380 : vector<2x128xf32>
    %382 = arith.mulf %377, %381 : vector<2x128xf32>
    %383 = vector.shape_cast %382 : vector<2x128xf32> to vector<2x1x128xf32>
    %c0_103 = arith.constant 0 : index
    %c2_104 = arith.constant 2 : index
    %c0_105 = arith.constant 0 : index
    %384 = vector.load %arg15[%c0_103, %c2_104, %c0_105] : memref<2x8x128xf32, #tpu.memory_space<vmem>>, vector<2x1x128xf32>
    tpu.vector_store %arg15[%c0_103, %c2_104, %c0_105], %383 {strides = array<i32>} : memref<2x8x128xf32, #tpu.memory_space<vmem>>, vector<2x1x128xf32>,
    %385 = vector.extract_strided_slice %284 {offsets = [0, 3, 0], sizes = [2, 1, 512], strides = [1, 1, 1]} : vector<2x8x512xf32> to vector<2x1x512xf32>
    %386 = vector.shape_cast %385 : vector<2x1x512xf32> to vector<2x512xf32>
    %387 = arith.truncf %382 : vector<2x128xf32> to vector<2x128xbf16>
    %cst_106 = arith.constant dense<0.000000e+00> : vector<2x512xf32>
    %388 = tpu.matmul %387, %279, %cst_106 {dimension_numbers = #tpu.dot_dimension_numbers<[1], [0], [0], [1], [0, 0, 1, 1], [], []>} : vector<2x128xbf16>, vector<128x512xbf16>, vector<2x512xf32> -> vector<2x512xf32>
    %389 = arith.addf %386, %388 : vector<2x512xf32>
    %390 = vector.extract_strided_slice %389 {offsets = [0, 0], sizes = [2, 128], strides = [1, 1]} : vector<2x512xf32> to vector<2x128xf32>
    %391 = arith.negf %390 : vector<2x128xf32>
    %392 = math.exp %391 : vector<2x128xf32>
    %cst_107 = arith.constant 1.000000e+00 : f32
    %393 = vector.broadcast %cst_107 : f32 to vector<2x128xf32>
    %394 = arith.addf %393, %392 : vector<2x128xf32>
    %395 = arith.divf %393, %394 : vector<2x128xf32>
    %396 = vector.extract_strided_slice %389 {offsets = [0, 128], sizes = [2, 128], strides = [1, 1]} : vector<2x512xf32> to vector<2x128xf32>
    %397 = arith.negf %396 : vector<2x128xf32>
    %398 = math.exp %397 : vector<2x128xf32>
    %cst_108 = arith.constant 1.000000e+00 : f32
    %399 = vector.broadcast %cst_108 : f32 to vector<2x128xf32>
    %400 = arith.addf %399, %398 : vector<2x128xf32>
    %401 = arith.divf %399, %400 : vector<2x128xf32>
    %402 = vector.extract_strided_slice %389 {offsets = [0, 256], sizes = [2, 128], strides = [1, 1]} : vector<2x512xf32> to vector<2x128xf32>
    %403 = math.tanh %402 : vector<2x128xf32>
    %404 = vector.extract_strided_slice %389 {offsets = [0, 384], sizes = [2, 128], strides = [1, 1]} : vector<2x512xf32> to vector<2x128xf32>
    %405 = arith.negf %404 : vector<2x128xf32>
    %406 = math.exp %405 : vector<2x128xf32>
    %cst_109 = arith.constant 1.000000e+00 : f32
    %407 = vector.broadcast %cst_109 : f32 to vector<2x128xf32>
    %408 = arith.addf %407, %406 : vector<2x128xf32>
    %409 = arith.divf %407, %408 : vector<2x128xf32>
    %410 = arith.mulf %401, %380 : vector<2x128xf32>
    %411 = arith.mulf %395, %403 : vector<2x128xf32>
    %412 = arith.addf %410, %411 : vector<2x128xf32>
    %413 = math.tanh %412 : vector<2x128xf32>
    %414 = arith.mulf %409, %413 : vector<2x128xf32>
    %415 = vector.shape_cast %414 : vector<2x128xf32> to vector<2x1x128xf32>
    %c0_110 = arith.constant 0 : index
    %c3_111 = arith.constant 3 : index
    %c0_112 = arith.constant 0 : index
    %416 = vector.load %arg15[%c0_110, %c3_111, %c0_112] : memref<2x8x128xf32, #tpu.memory_space<vmem>>, vector<2x1x128xf32>
    tpu.vector_store %arg15[%c0_110, %c3_111, %c0_112], %415 {strides = array<i32>} : memref<2x8x128xf32, #tpu.memory_space<vmem>>, vector<2x1x128xf32>,
    %417 = vector.extract_strided_slice %284 {offsets = [0, 4, 0], sizes = [2, 1, 512], strides = [1, 1, 1]} : vector<2x8x512xf32> to vector<2x1x512xf32>
    %418 = vector.shape_cast %417 : vector<2x1x512xf32> to vector<2x512xf32>
    %419 = arith.truncf %414 : vector<2x128xf32> to vector<2x128xbf16>
    %cst_113 = arith.constant dense<0.000000e+00> : vector<2x512xf32>
    %420 = tpu.matmul %419, %279, %cst_113 {dimension_numbers = #tpu.dot_dimension_numbers<[1], [0], [0], [1], [0, 0, 1, 1], [], []>} : vector<2x128xbf16>, vector<128x512xbf16>, vector<2x512xf32> -> vector<2x512xf32>
    %421 = arith.addf %418, %420 : vector<2x512xf32>
    %422 = vector.extract_strided_slice %421 {offsets = [0, 0], sizes = [2, 128], strides = [1, 1]} : vector<2x512xf32> to vector<2x128xf32>
    %423 = arith.negf %422 : vector<2x128xf32>
    %424 = math.exp %423 : vector<2x128xf32>
    %cst_114 = arith.constant 1.000000e+00 : f32
    %425 = vector.broadcast %cst_114 : f32 to vector<2x128xf32>
    %426 = arith.addf %425, %424 : vector<2x128xf32>
    %427 = arith.divf %425, %426 : vector<2x128xf32>
    %428 = vector.extract_strided_slice %421 {offsets = [0, 128], sizes = [2, 128], strides = [1, 1]} : vector<2x512xf32> to vector<2x128xf32>
    %429 = arith.negf %428 : vector<2x128xf32>
    %430 = math.exp %429 : vector<2x128xf32>
    %cst_115 = arith.constant 1.000000e+00 : f32
    %431 = vector.broadcast %cst_115 : f32 to vector<2x128xf32>
    %432 = arith.addf %431, %430 : vector<2x128xf32>
    %433 = arith.divf %431, %432 : vector<2x128xf32>
    %434 = vector.extract_strided_slice %421 {offsets = [0, 256], sizes = [2, 128], strides = [1, 1]} : vector<2x512xf32> to vector<2x128xf32>
    %435 = math.tanh %434 : vector<2x128xf32>
    %436 = vector.extract_strided_slice %421 {offsets = [0, 384], sizes = [2, 128], strides = [1, 1]} : vector<2x512xf32> to vector<2x128xf32>
    %437 = arith.negf %436 : vector<2x128xf32>
    %438 = math.exp %437 : vector<2x128xf32>
    %cst_116 = arith.constant 1.000000e+00 : f32
    %439 = vector.broadcast %cst_116 : f32 to vector<2x128xf32>
    %440 = arith.addf %439, %438 : vector<2x128xf32>
    %441 = arith.divf %439, %440 : vector<2x128xf32>
    %442 = arith.mulf %433, %412 : vector<2x128xf32>
    %443 = arith.mulf %427, %435 : vector<2x128xf32>
    %444 = arith.addf %442, %443 : vector<2x128xf32>
    %445 = math.tanh %444 : vector<2x128xf32>
    %446 = arith.mulf %441, %445 : vector<2x128xf32>
    %447 = vector.shape_cast %446 : vector<2x128xf32> to vector<2x1x128xf32>
    %c0_117 = arith.constant 0 : index
    %c4_118 = arith.constant 4 : index
    %c0_119 = arith.constant 0 : index
    %448 = vector.load %arg15[%c0_117, %c4_118, %c0_119] : memref<2x8x128xf32, #tpu.memory_space<vmem>>, vector<2x1x128xf32>
    tpu.vector_store %arg15[%c0_117, %c4_118, %c0_119], %447 {strides = array<i32>} : memref<2x8x128xf32, #tpu.memory_space<vmem>>, vector<2x1x128xf32>,
    %449 = vector.extract_strided_slice %284 {offsets = [0, 5, 0], sizes = [2, 1, 512], strides = [1, 1, 1]} : vector<2x8x512xf32> to vector<2x1x512xf32>
    %450 = vector.shape_cast %449 : vector<2x1x512xf32> to vector<2x512xf32>
    %451 = arith.truncf %446 : vector<2x128xf32> to vector<2x128xbf16>
    %cst_120 = arith.constant dense<0.000000e+00> : vector<2x512xf32>
    %452 = tpu.matmul %451, %279, %cst_120 {dimension_numbers = #tpu.dot_dimension_numbers<[1], [0], [0], [1], [0, 0, 1, 1], [], []>} : vector<2x128xbf16>, vector<128x512xbf16>, vector<2x512xf32> -> vector<2x512xf32>
    %453 = arith.addf %450, %452 : vector<2x512xf32>
    %454 = vector.extract_strided_slice %453 {offsets = [0, 0], sizes = [2, 128], strides = [1, 1]} : vector<2x512xf32> to vector<2x128xf32>
    %455 = arith.negf %454 : vector<2x128xf32>
    %456 = math.exp %455 : vector<2x128xf32>
    %cst_121 = arith.constant 1.000000e+00 : f32
    %457 = vector.broadcast %cst_121 : f32 to vector<2x128xf32>
    %458 = arith.addf %457, %456 : vector<2x128xf32>
    %459 = arith.divf %457, %458 : vector<2x128xf32>
    %460 = vector.extract_strided_slice %453 {offsets = [0, 128], sizes = [2, 128], strides = [1, 1]} : vector<2x512xf32> to vector<2x128xf32>
    %461 = arith.negf %460 : vector<2x128xf32>
    %462 = math.exp %461 : vector<2x128xf32>
    %cst_122 = arith.constant 1.000000e+00 : f32
    %463 = vector.broadcast %cst_122 : f32 to vector<2x128xf32>
    %464 = arith.addf %463, %462 : vector<2x128xf32>
    %465 = arith.divf %463, %464 : vector<2x128xf32>
    %466 = vector.extract_strided_slice %453 {offsets = [0, 256], sizes = [2, 128], strides = [1, 1]} : vector<2x512xf32> to vector<2x128xf32>
    %467 = math.tanh %466 : vector<2x128xf32>
    %468 = vector.extract_strided_slice %453 {offsets = [0, 384], sizes = [2, 128], strides = [1, 1]} : vector<2x512xf32> to vector<2x128xf32>
    %469 = arith.negf %468 : vector<2x128xf32>
    %470 = math.exp %469 : vector<2x128xf32>
    %cst_123 = arith.constant 1.000000e+00 : f32
    %471 = vector.broadcast %cst_123 : f32 to vector<2x128xf32>
    %472 = arith.addf %471, %470 : vector<2x128xf32>
    %473 = arith.divf %471, %472 : vector<2x128xf32>
    %474 = arith.mulf %465, %444 : vector<2x128xf32>
    %475 = arith.mulf %459, %467 : vector<2x128xf32>
    %476 = arith.addf %474, %475 : vector<2x128xf32>
    %477 = math.tanh %476 : vector<2x128xf32>
    %478 = arith.mulf %473, %477 : vector<2x128xf32>
    %479 = vector.shape_cast %478 : vector<2x128xf32> to vector<2x1x128xf32>
    %c0_124 = arith.constant 0 : index
    %c5_125 = arith.constant 5 : index
    %c0_126 = arith.constant 0 : index
    %480 = vector.load %arg15[%c0_124, %c5_125, %c0_126] : memref<2x8x128xf32, #tpu.memory_space<vmem>>, vector<2x1x128xf32>
    tpu.vector_store %arg15[%c0_124, %c5_125, %c0_126], %479 {strides = array<i32>} : memref<2x8x128xf32, #tpu.memory_space<vmem>>, vector<2x1x128xf32>,
    %481 = vector.extract_strided_slice %284 {offsets = [0, 6, 0], sizes = [2, 1, 512], strides = [1, 1, 1]} : vector<2x8x512xf32> to vector<2x1x512xf32>
    %482 = vector.shape_cast %481 : vector<2x1x512xf32> to vector<2x512xf32>
    %483 = arith.truncf %478 : vector<2x128xf32> to vector<2x128xbf16>
    %cst_127 = arith.constant dense<0.000000e+00> : vector<2x512xf32>
    %484 = tpu.matmul %483, %279, %cst_127 {dimension_numbers = #tpu.dot_dimension_numbers<[1], [0], [0], [1], [0, 0, 1, 1], [], []>} : vector<2x128xbf16>, vector<128x512xbf16>, vector<2x512xf32> -> vector<2x512xf32>
    %485 = arith.addf %482, %484 : vector<2x512xf32>
    %486 = vector.extract_strided_slice %485 {offsets = [0, 0], sizes = [2, 128], strides = [1, 1]} : vector<2x512xf32> to vector<2x128xf32>
    %487 = arith.negf %486 : vector<2x128xf32>
    %488 = math.exp %487 : vector<2x128xf32>
    %cst_128 = arith.constant 1.000000e+00 : f32
    %489 = vector.broadcast %cst_128 : f32 to vector<2x128xf32>
    %490 = arith.addf %489, %488 : vector<2x128xf32>
    %491 = arith.divf %489, %490 : vector<2x128xf32>
    %492 = vector.extract_strided_slice %485 {offsets = [0, 128], sizes = [2, 128], strides = [1, 1]} : vector<2x512xf32> to vector<2x128xf32>
    %493 = arith.negf %492 : vector<2x128xf32>
    %494 = math.exp %493 : vector<2x128xf32>
    %cst_129 = arith.constant 1.000000e+00 : f32
    %495 = vector.broadcast %cst_129 : f32 to vector<2x128xf32>
    %496 = arith.addf %495, %494 : vector<2x128xf32>
    %497 = arith.divf %495, %496 : vector<2x128xf32>
    %498 = vector.extract_strided_slice %485 {offsets = [0, 256], sizes = [2, 128], strides = [1, 1]} : vector<2x512xf32> to vector<2x128xf32>
    %499 = math.tanh %498 : vector<2x128xf32>
    %500 = vector.extract_strided_slice %485 {offsets = [0, 384], sizes = [2, 128], strides = [1, 1]} : vector<2x512xf32> to vector<2x128xf32>
    %501 = arith.negf %500 : vector<2x128xf32>
    %502 = math.exp %501 : vector<2x128xf32>
    %cst_130 = arith.constant 1.000000e+00 : f32
    %503 = vector.broadcast %cst_130 : f32 to vector<2x128xf32>
    %504 = arith.addf %503, %502 : vector<2x128xf32>
    %505 = arith.divf %503, %504 : vector<2x128xf32>
    %506 = arith.mulf %497, %476 : vector<2x128xf32>
    %507 = arith.mulf %491, %499 : vector<2x128xf32>
    %508 = arith.addf %506, %507 : vector<2x128xf32>
    %509 = math.tanh %508 : vector<2x128xf32>
    %510 = arith.mulf %505, %509 : vector<2x128xf32>
    %511 = vector.shape_cast %510 : vector<2x128xf32> to vector<2x1x128xf32>
    %c0_131 = arith.constant 0 : index
    %c6_132 = arith.constant 6 : index
    %c0_133 = arith.constant 0 : index
    %512 = vector.load %arg15[%c0_131, %c6_132, %c0_133] : memref<2x8x128xf32, #tpu.memory_space<vmem>>, vector<2x1x128xf32>
    tpu.vector_store %arg15[%c0_131, %c6_132, %c0_133], %511 {strides = array<i32>} : memref<2x8x128xf32, #tpu.memory_space<vmem>>, vector<2x1x128xf32>,
    %513 = vector.extract_strided_slice %284 {offsets = [0, 7, 0], sizes = [2, 1, 512], strides = [1, 1, 1]} : vector<2x8x512xf32> to vector<2x1x512xf32>
    %514 = vector.shape_cast %513 : vector<2x1x512xf32> to vector<2x512xf32>
    %515 = arith.truncf %510 : vector<2x128xf32> to vector<2x128xbf16>
    %cst_134 = arith.constant dense<0.000000e+00> : vector<2x512xf32>
    %516 = tpu.matmul %515, %279, %cst_134 {dimension_numbers = #tpu.dot_dimension_numbers<[1], [0], [0], [1], [0, 0, 1, 1], [], []>} : vector<2x128xbf16>, vector<128x512xbf16>, vector<2x512xf32> -> vector<2x512xf32>
    %517 = arith.addf %514, %516 : vector<2x512xf32>
    %518 = vector.extract_strided_slice %517 {offsets = [0, 0], sizes = [2, 128], strides = [1, 1]} : vector<2x512xf32> to vector<2x128xf32>
    %519 = arith.negf %518 : vector<2x128xf32>
    %520 = math.exp %519 : vector<2x128xf32>
    %cst_135 = arith.constant 1.000000e+00 : f32
    %521 = vector.broadcast %cst_135 : f32 to vector<2x128xf32>
    %522 = arith.addf %521, %520 : vector<2x128xf32>
    %523 = arith.divf %521, %522 : vector<2x128xf32>
    %524 = vector.extract_strided_slice %517 {offsets = [0, 128], sizes = [2, 128], strides = [1, 1]} : vector<2x512xf32> to vector<2x128xf32>
    %525 = arith.negf %524 : vector<2x128xf32>
    %526 = math.exp %525 : vector<2x128xf32>
    %cst_136 = arith.constant 1.000000e+00 : f32
    %527 = vector.broadcast %cst_136 : f32 to vector<2x128xf32>
    %528 = arith.addf %527, %526 : vector<2x128xf32>
    %529 = arith.divf %527, %528 : vector<2x128xf32>
    %530 = vector.extract_strided_slice %517 {offsets = [0, 256], sizes = [2, 128], strides = [1, 1]} : vector<2x512xf32> to vector<2x128xf32>
    %531 = math.tanh %530 : vector<2x128xf32>
    %532 = vector.extract_strided_slice %517 {offsets = [0, 384], sizes = [2, 128], strides = [1, 1]} : vector<2x512xf32> to vector<2x128xf32>
    %533 = arith.negf %532 : vector<2x128xf32>
    %534 = math.exp %533 : vector<2x128xf32>
    %cst_137 = arith.constant 1.000000e+00 : f32
    %535 = vector.broadcast %cst_137 : f32 to vector<2x128xf32>
    %536 = arith.addf %535, %534 : vector<2x128xf32>
    %537 = arith.divf %535, %536 : vector<2x128xf32>
    %538 = arith.mulf %529, %508 : vector<2x128xf32>
    %539 = arith.mulf %523, %531 : vector<2x128xf32>
    %540 = arith.addf %538, %539 : vector<2x128xf32>
    %541 = math.tanh %540 : vector<2x128xf32>
    %542 = arith.mulf %537, %541 : vector<2x128xf32>
    %543 = vector.shape_cast %542 : vector<2x128xf32> to vector<2x1x128xf32>
    %c0_138 = arith.constant 0 : index
    %c7_139 = arith.constant 7 : index
    %c0_140 = arith.constant 0 : index
    %544 = vector.load %arg15[%c0_138, %c7_139, %c0_140] : memref<2x8x128xf32, #tpu.memory_space<vmem>>, vector<2x1x128xf32>
    tpu.vector_store %arg15[%c0_138, %c7_139, %c0_140], %543 {strides = array<i32>} : memref<2x8x128xf32, #tpu.memory_space<vmem>>, vector<2x1x128xf32>,
    %c1_141 = arith.constant 1 : index
    %c0_142 = arith.constant 0 : index
    %c0_143 = arith.constant 0 : index
    %545 = vector.load %arg13[%c1_141, %c0_142, %c0_143] : memref<2x2x128xf32, #tpu.memory_space<vmem>>, vector<1x2x128xf32>
    %546 = vector.shape_cast %545 : vector<1x2x128xf32> to vector<2x128xf32>
    %547 = vector.shape_cast %542 : vector<2x128xf32> to vector<1x2x128xf32>
    tpu.vector_store %arg13[%c1_141, %c0_142, %c0_143], %547 {strides = array<i32>} : memref<2x2x128xf32, #tpu.memory_space<vmem>>, vector<1x2x128xf32>,
    %c1_144 = arith.constant 1 : index
    %c0_145 = arith.constant 0 : index
    %c0_146 = arith.constant 0 : index
    %548 = vector.load %arg14[%c1_144, %c0_145, %c0_146] : memref<2x2x128xf32, #tpu.memory_space<vmem>>, vector<1x2x128xf32>
    %549 = vector.shape_cast %548 : vector<1x2x128xf32> to vector<2x128xf32>
    %550 = vector.shape_cast %540 : vector<2x128xf32> to vector<1x2x128xf32>
    tpu.vector_store %arg14[%c1_144, %c0_145, %c0_146], %550 {strides = array<i32>} : memref<2x2x128xf32, #tpu.memory_space<vmem>>, vector<1x2x128xf32>,
    %c0_147 = arith.constant 0 : index
    %c0_148 = arith.constant 0 : index
    %c0_149 = arith.constant 0 : index
    %551 = vector.load %arg15[%c0_147, %c0_148, %c0_149] : memref<2x8x128xf32, #tpu.memory_space<vmem>>, vector<2x8x128xf32>
    %552 = vector.shape_cast %551 : vector<2x8x128xf32> to vector<16x128xf32>
    %553 = arith.truncf %552 : vector<16x128xf32> to vector<16x128xbf16>
    %c0_150 = arith.constant 0 : index
    %c0_151 = arith.constant 0 : index
    %554 = vector.load %arg10[%c0_150, %c0_151] : memref<128x128xbf16, #tpu.memory_space<vmem>>, vector<128x128xbf16>
    %cst_152 = arith.constant dense<0.000000e+00> : vector<16x128xf32>
    %555 = tpu.matmul %553, %554, %cst_152 {dimension_numbers = #tpu.dot_dimension_numbers<[1], [0], [0], [1], [0, 0, 1, 1], [], []>} : vector<16x128xbf16>, vector<128x128xbf16>, vector<16x128xf32> -> vector<16x128xf32>
    %c0_153 = arith.constant 0 : index
    %c0_154 = arith.constant 0 : index
    %556 = vector.load %arg11[%c0_153, %c0_154] : memref<1x128xf32, #tpu.memory_space<vmem>>, vector<1x128xf32>
    %557 = vector.broadcast %556 : vector<1x128xf32> to vector<16x128xf32>
    %558 = arith.addf %555, %557 : vector<16x128xf32>
    %cst_155 = arith.constant dense<0xFF800000> : vector<16xf32>
    %559 = vector.multi_reduction <maximumf>, %558, %cst_155 [1] : vector<16x128xf32> to vector<16xf32>
    %560 = vector.shape_cast %559 : vector<16xf32> to vector<16x1xf32>
    %561 = vector.broadcast %560 : vector<16x1xf32> to vector<16x128xf32>
    %562 = arith.subf %558, %561 : vector<16x128xf32>
    %563 = math.exp %562 : vector<16x128xf32>
    %cst_156 = arith.constant dense<0.000000e+00> : vector<16xf32>
    %564 = vector.multi_reduction <add>, %563, %cst_156 [1] : vector<16x128xf32> to vector<16xf32>
    %565 = vector.shape_cast %564 : vector<16xf32> to vector<16x1xf32>
    %566 = math.log %565 : vector<16x1xf32>
    %567 = vector.broadcast %566 : vector<16x1xf32> to vector<16x128xf32>
    %568 = arith.subf %562, %567 : vector<16x128xf32>
    %c0_157 = arith.constant 0 : index
    %c0_158 = arith.constant 0 : index
    %569 = vector.load %arg12[%c0_157, %c0_158] : memref<16x128xf32, #tpu.memory_space<vmem>>, vector<16x128xf32>
    tpu.vector_store %arg12[%c0_157, %c0_158], %568 {strides = array<i32>} : memref<16x128xf32, #tpu.memory_space<vmem>>, vector<16x128xf32>,
    return
  }
  func.func @transform_0(%arg0: i32) -> (i32, i32, i32) {
    %c0_i32 = arith.constant 0 : i32
    %c0_i32_0 = arith.constant 0 : i32
    %c0_i32_1 = arith.constant 0 : i32
    %c0_i32_2 = arith.constant 0 : i32
    return %c0_i32, %c0_i32_0, %c0_i32_1 : i32, i32, i32
  }
  func.func @transform_1(%arg0: i32) -> (i32, i32, i32) {
    %c0_i32 = arith.constant 0 : i32
    %c0_i32_0 = arith.constant 0 : i32
    %c0_i32_1 = arith.constant 0 : i32
    %c0_i32_2 = arith.constant 0 : i32
    return %c0_i32, %c0_i32_0, %c0_i32_1 : i32, i32, i32
  }
  func.func @transform_2(%arg0: i32) -> (i32, i32, i32) {
    %c0_i32 = arith.constant 0 : i32
    %c0_i32_0 = arith.constant 0 : i32
    %c0_i32_1 = arith.constant 0 : i32
    %c0_i32_2 = arith.constant 0 : i32
    return %c0_i32, %c0_i32_0, %c0_i32_1 : i32, i32, i32
  }
  func.func @transform_3(%arg0: i32) -> (i32, i32) {
    %c0_i32 = arith.constant 0 : i32
    %c0_i32_0 = arith.constant 0 : i32
    %c0_i32_1 = arith.constant 0 : i32
    return %c0_i32, %c0_i32_0 : i32, i32
  }
  func.func @transform_4(%arg0: i32) -> (i32, i32) {
    %c0_i32 = arith.constant 0 : i32
    %c0_i32_0 = arith.constant 0 : i32
    %c0_i32_1 = arith.constant 0 : i32
    return %c0_i32, %c0_i32_0 : i32, i32
  }
  func.func @transform_5(%arg0: i32) -> (i32, i32) {
    %c0_i32 = arith.constant 0 : i32
    %c0_i32_0 = arith.constant 0 : i32
    %c0_i32_1 = arith.constant 0 : i32
    return %c0_i32, %c0_i32_0 : i32, i32
  }
  func.func @transform_6(%arg0: i32) -> (i32, i32) {
    %c0_i32 = arith.constant 0 : i32
    %c0_i32_0 = arith.constant 0 : i32
    %c0_i32_1 = arith.constant 0 : i32
    return %c0_i32, %c0_i32_0 : i32, i32
  }
  func.func @transform_7(%arg0: i32) -> (i32, i32) {
    %c0_i32 = arith.constant 0 : i32
    %c0_i32_0 = arith.constant 0 : i32
    %c0_i32_1 = arith.constant 0 : i32
    return %c0_i32, %c0_i32_0 : i32, i32
  }
  func.func @transform_8(%arg0: i32) -> (i32, i32) {
    %c0_i32 = arith.constant 0 : i32
    %c0_i32_0 = arith.constant 0 : i32
    %c0_i32_1 = arith.constant 0 : i32
    return %c0_i32, %c0_i32_0 : i32, i32
  }
  func.func @transform_9(%arg0: i32) -> (i32, i32) {
    %c0_i32 = arith.constant 0 : i32
    %c0_i32_0 = arith.constant 0 : i32
    %c0_i32_1 = arith.constant 0 : i32
    return %c0_i32, %c0_i32_0 : i32, i32
  }
  func.func @transform_10(%arg0: i32) -> (i32, i32) {
    %c0_i32 = arith.constant 0 : i32
    %c0_i32_0 = arith.constant 0 : i32
    %c0_i32_1 = arith.constant 0 : i32
    return %c0_i32, %c0_i32_0 : i32, i32
  }
  func.func @transform_11(%arg0: i32) -> (i32, i32) {
    %c0_i32 = arith.constant 0 : i32
    %c0_i32_0 = arith.constant 0 : i32
    %c0_i32_1 = arith.constant 0 : i32
    return %c0_i32, %c0_i32_0 : i32, i32
  }
  func.func @transform_12(%arg0: i32) -> (i32, i32, i32) {
    %c0_i32 = arith.constant 0 : i32
    %c0_i32_0 = arith.constant 0 : i32
    %c0_i32_1 = arith.constant 0 : i32
    %c0_i32_2 = arith.constant 0 : i32
    return %c0_i32, %c0_i32_0, %c0_i32_1 : i32, i32, i32
  }
  func.func @transform_13(%arg0: i32) -> (i32, i32, i32) {
    %c0_i32 = arith.constant 0 : i32
    %c0_i32_0 = arith.constant 0 : i32
    %c0_i32_1 = arith.constant 0 : i32
    %c0_i32_2 = arith.constant 0 : i32
    return %c0_i32, %c0_i32_0, %c0_i32_1 : i32, i32, i32
  }
}

</mosaic_0001>

<llo_original>
// kernel: semichar_rnn_forward.1
$region0: #{semichar_rnn_forward.1}
  #allocation0 [shape = 'u32[]', space=smem, size = 0x4, offset = 0x4, fixed_abs, tag = 'smem constant byte address 0x4 - core index']
  #allocation1 [shape = 'u32[72,128]{1,0:T(1,128)}', space=vmem, size = 0x9000, scoped, tag = 'internal scratch']
  #allocation2 [shape = 'f32[2,8,128]{2,1,0:T(8,128)}', space=vmem, size = 0x2000, scoped, tag = 'scratch operand']
  %s0 = inlined_call_operand.vmem [shape: bf16[2,8,48], index: 0, kind: input, shape index: {}]
  %s1 = inlined_call_operand.vmem [shape: f32[2,2,128], index: 1, kind: input, shape index: {}]
  %s2 = inlined_call_operand.vmem [shape: f32[2,2,128], index: 2, kind: input, shape index: {}]
  %s3 = inlined_call_operand.hbm [shape: bf16[48,512], index: 3, kind: input, shape index: {}]
  %s4 = inlined_call_operand.hbm [shape: bf16[128,512], index: 4, kind: input, shape index: {}]
  %s5 = inlined_call_operand.vmem [shape: f32[1,512], index: 5, kind: input, shape index: {}]
  %s6 = inlined_call_operand.hbm [shape: bf16[128,512], index: 6, kind: input, shape index: {}]
  %s7 = inlined_call_operand.hbm [shape: bf16[128,512], index: 7, kind: input, shape index: {}]
  %s8 = inlined_call_operand.vmem [shape: f32[1,512], index: 8, kind: input, shape index: {}]
  %s9 = inlined_call_operand.hbm [shape: bf16[128,128], index: 9, kind: input, shape index: {}]
  %s10 = inlined_call_operand.vmem [shape: f32[1,128], index: 10, kind: input, shape index: {}]
  %s11 = inlined_call_operand.hbm [shape: f32[16,128], index: 11, kind: output, shape index: {0}]
  %s12 = inlined_call_operand.hbm [shape: f32[2,2,128], index: 12, kind: output, shape index: {1}]
  %s13 = inlined_call_operand.hbm [shape: f32[2,2,128], index: 13, kind: output, shape index: {2}]
  %14 = xla_tuple %s11, %s12, %s13
  %s15 = sld [smem:[#allocation0]]
  $region90: #{semichar_rnn_forward.1} parent=0
    _
  %s17 = ssub.s32 1, %s15
  %s18 = scalar_select 0, %s17, %s15
  $region1: #{semichar_rnn_forward.1} parent=0
    #allocation3 [shape = 'u8[49152]{0}', space=vmem, size = 0xc000, scoped, tag = 'input window, operand 3, single buffered']
    #allocation4 [shape = 's32[1]{0}', space=sflag, size = 0x4, scoped, tag = 'scoped memory for semichar_rnn_forward.1']
    #allocation5 [shape = 's32[1]{0}', space=sflag, size = 0x4, scoped, tag = 'scoped memory for semichar_rnn_forward.1']
    #allocation6 [shape = 'u8[131072]{0}', space=vmem, size = 0x20000, scoped, tag = 'input window, operand 4, single buffered']
    #allocation7 [shape = 's32[1]{0}', space=sflag, size = 0x4, scoped, tag = 'scoped memory for semichar_rnn_forward.1']
    #allocation8 [shape = 'u8[131072]{0}', space=vmem, size = 0x20000, scoped, tag = 'input window, operand 6, single buffered']
    #allocation9 [shape = 'u8[131072]{0}', space=vmem, size = 0x20000, scoped, tag = 'input window, operand 7, single buffered']
    #allocation10 [shape = 's32[1]{0}', space=sflag, size = 0x4, scoped, tag = 'scoped memory for semichar_rnn_forward.1']
    #allocation11 [shape = 'u8[32768]{0}', space=vmem, size = 0x8000, scoped, tag = 'input window, operand 9, single buffered']
    #allocation12 [shape = 'u8[8192]{0}', space=vmem, size = 0x2000, scoped, tag = 'output window, operand 0, single buffered']
    #allocation13 [shape = 'u8[2048]{0}', space=vmem, size = 0x800, scoped, tag = 'output window, operand 1, single buffered']
    #allocation14 [shape = 's32[1]{0}', space=sflag, size = 0x4, scoped, tag = 'scoped memory for semichar_rnn_forward.1']
    #allocation15 [shape = 'u8[2048]{0}', space=vmem, size = 0x800, scoped, tag = 'output window, operand 2, single buffered']
    %19 = vsyncpa [#allocation4], 0
    %20 = vsyncpa [#allocation7], 0
    %21 = vsyncpa [#allocation10], 0
    %22 = vsyncpa [#allocation5], 0
    %23 = vsyncpa [#allocation14], 0
    // Predicated region
    $region2: #{semichar_rnn_forward.1} parent=1 // pred_check
      _
    $region3: #{semichar_rnn_forward.1} parent=1 // pred_check_branch
      %25 = sbr.rel (0) target = $region5
    $region4: #{semichar_rnn_forward.1} parent=1 // pred_region
      _
    $region5: #{semichar_rnn_forward.1} parent=1 // pred_fallthru
      _
    // Predicated region
    $region6: #{semichar_rnn_forward.1} parent=1 // pred_check
      _
    $region7: #{semichar_rnn_forward.1} parent=1 // pred_check_branch
      %27 = sbr.rel (0) target = $region9
    $region8: #{semichar_rnn_forward.1} parent=1 // pred_region
      _
    $region9: #{semichar_rnn_forward.1} parent=1 // pred_fallthru
      _
    // Predicated region
    $region10: #{semichar_rnn_forward.1} parent=1 // pred_check
      _
    $region11: #{semichar_rnn_forward.1} parent=1 // pred_check_branch
      %29 = sbr.rel (0) target = $region13
    $region12: #{semichar_rnn_forward.1} parent=1 // pred_region
      _
    $region13: #{semichar_rnn_forward.1} parent=1 // pred_fallthru
      _
    // Predicated region
    $region14: #{semichar_rnn_forward.1} parent=1 // pred_check
      _
    $region15: #{semichar_rnn_forward.1} parent=1 // pred_check_branch
      %31 = sbr.rel (0) target = $region17
    $region16: #{semichar_rnn_forward.1} parent=1 // pred_region
      %33 = vsyncadd [#allocation4], 0
      %s34 = sshll.u32 %s3, 4
      %s35 = int_to_ptr.hbm [resolvable:$true] %s34
      %s36 = sshll.u32 [#allocation3], 4
      %s37 = int_to_ptr.vmem [resolvable:$true] %s36
      %42 = dma.hbm_to_vmem [thread:$0]  %s35, 1536, %s37, [#allocation4], 256, 256, 16
    $region17: #{semichar_rnn_forward.1} parent=1 // pred_fallthru
      _
    // Predicated region
    $region18: #{semichar_rnn_forward.1} parent=1 // pred_check
      _
    $region19: #{semichar_rnn_forward.1} parent=1 // pred_check_branch
      %44 = sbr.rel (0) target = $region21
    $region20: #{semichar_rnn_forward.1} parent=1 // pred_region
      %46 = vsyncadd [#allocation7], 0
      %s47 = sshll.u32 %s4, 4
      %s48 = int_to_ptr.hbm [resolvable:$true] %s47
      %s49 = sshll.u32 [#allocation6], 4
      %s50 = int_to_ptr.vmem [resolvable:$true] %s49
      %55 = dma.hbm_to_vmem [thread:$0]  %s48, 4096, %s50, [#allocation7], 256, 256, 16
    $region21: #{semichar_rnn_forward.1} parent=1 // pred_fallthru
      _
    // Predicated region
    $region22: #{semichar_rnn_forward.1} parent=1 // pred_check
      _
    $region23: #{semichar_rnn_forward.1} parent=1 // pred_check_branch
      %57 = sbr.rel (0) target = $region25
    $region24: #{semichar_rnn_forward.1} parent=1 // pred_region
      _
    $region25: #{semichar_rnn_forward.1} parent=1 // pred_fallthru
      _
    // Predicated region
    $region26: #{semichar_rnn_forward.1} parent=1 // pred_check
      _
    $region27: #{semichar_rnn_forward.1} parent=1 // pred_check_branch
      %59 = sbr.rel (0) target = $region29
    $region28: #{semichar_rnn_forward.1} parent=1 // pred_region
      %61 = vsyncadd [#allocation7], 0
      %s62 = sshll.u32 %s6, 4
      %s63 = int_to_ptr.hbm [resolvable:$true] %s62
      %s64 = sshll.u32 [#allocation8], 4
      %s65 = int_to_ptr.vmem [resolvable:$true] %s64
      %70 = dma.hbm_to_vmem [thread:$0]  %s63, 4096, %s65, [#allocation7], 256, 256, 16
    $region29: #{semichar_rnn_forward.1} parent=1 // pred_fallthru
      _
    // Predicated region
    $region30: #{semichar_rnn_forward.1} parent=1 // pred_check
      _
    $region31: #{semichar_rnn_forward.1} parent=1 // pred_check_branch
      %72 = sbr.rel (0) target = $region33
    $region32: #{semichar_rnn_forward.1} parent=1 // pred_region
      %74 = vsyncadd [#allocation10], 0
      %s75 = sshll.u32 %s7, 4
      %s76 = int_to_ptr.hbm [resolvable:$true] %s75
      %s77 = sshll.u32 [#allocation9], 4
      %s78 = int_to_ptr.vmem [resolvable:$true] %s77
      %83 = dma.hbm_to_vmem [thread:$0]  %s76, 4096, %s78, [#allocation10], 256, 256, 16
    $region33: #{semichar_rnn_forward.1} parent=1 // pred_fallthru
      _
    // Predicated region
    $region34: #{semichar_rnn_forward.1} parent=1 // pred_check
      _
    $region35: #{semichar_rnn_forward.1} parent=1 // pred_check_branch
      %85 = sbr.rel (0) target = $region37
    $region36: #{semichar_rnn_forward.1} parent=1 // pred_region
      _
    $region37: #{semichar_rnn_forward.1} parent=1 // pred_fallthru
      _
    // Predicated region
    $region38: #{semichar_rnn_forward.1} parent=1 // pred_check
      _
    $region39: #{semichar_rnn_forward.1} parent=1 // pred_check_branch
      %87 = sbr.rel (0) target = $region41
    $region40: #{semichar_rnn_forward.1} parent=1 // pred_region
      %89 = vsyncadd [#allocation10], 0
      %s90 = sshll.u32 %s9, 4
      %s91 = int_to_ptr.hbm [resolvable:$true] %s90
      %s92 = sshll.u32 [#allocation11], 4
      %s93 = int_to_ptr.vmem [resolvable:$true] %s92
      %98 = dma.hbm_to_vmem [thread:$0]  %s91, 1024, %s93, [#allocation10], 64, 64, 4
    $region41: #{semichar_rnn_forward.1} parent=1 // pred_fallthru
      _
    // Predicated region
    $region42: #{semichar_rnn_forward.1} parent=1 // pred_check
      _
    $region43: #{semichar_rnn_forward.1} parent=1 // pred_check_branch
      %100 = sbr.rel (0) target = $region45
    $region44: #{semichar_rnn_forward.1} parent=1 // pred_region
      _
    $region45: #{semichar_rnn_forward.1} parent=1 // pred_fallthru
      _
    // Predicated region
    $region46: #{semichar_rnn_forward.1} parent=1 // pred_check
      _
    $region47: #{semichar_rnn_forward.1} parent=1 // pred_check_branch
      %102 = sbr.rel (0) target = $region49
    $region48: #{semichar_rnn_forward.1} parent=1 // pred_region
      %104 = dma.done [#allocation4], 1536
    $region49: #{semichar_rnn_forward.1} parent=1 // pred_fallthru
      _
    // Predicated region
    $region50: #{semichar_rnn_forward.1} parent=1 // pred_check
      _
    $region51: #{semichar_rnn_forward.1} parent=1 // pred_check_branch
      %106 = sbr.rel (0) target = $region53
    $region52: #{semichar_rnn_forward.1} parent=1 // pred_region
      %108 = dma.done [#allocation7], 4096
    $region53: #{semichar_rnn_forward.1} parent=1 // pred_fallthru
      _
    // Predicated region
    $region54: #{semichar_rnn_forward.1} parent=1 // pred_check
      _
    $region55: #{semichar_rnn_forward.1} parent=1 // pred_check_branch
      %110 = sbr.rel (0) target = $region57
    $region56: #{semichar_rnn_forward.1} parent=1 // pred_region
      %112 = dma.done [#allocation7], 4096
    $region57: #{semichar_rnn_forward.1} parent=1 // pred_fallthru
      _
    // Predicated region
    $region58: #{semichar_rnn_forward.1} parent=1 // pred_check
      _
    $region59: #{semichar_rnn_forward.1} parent=1 // pred_check_branch
      %114 = sbr.rel (0) target = $region61
    $region60: #{semichar_rnn_forward.1} parent=1 // pred_region
      %116 = dma.done [#allocation10], 4096
    $region61: #{semichar_rnn_forward.1} parent=1 // pred_fallthru
      _
    // Predicated region
    $region62: #{semichar_rnn_forward.1} parent=1 // pred_check
      _
    $region63: #{semichar_rnn_forward.1} parent=1 // pred_check_branch
      %118 = sbr.rel (0) target = $region65
    $region64: #{semichar_rnn_forward.1} parent=1 // pred_region
      %120 = dma.done [#allocation10], 1024
    $region65: #{semichar_rnn_forward.1} parent=1 // pred_fallthru
      _
    %v122 = vld [vmem:[%s0] sm:$0xf]
    %v123 = vld [vmem:[%s0 + $0x4] sm:$0xf]
    %v124 = vld [vmem:[#allocation3] sm:$0xff]
    %v125 = vld [vmem:[#allocation3 + $0x8] sm:$0xff]
    %v126 = vld [vmem:[#allocation3 + $0x10] sm:$0xff]
    %v127 = vld [vmem:[#allocation3 + $0x18] sm:$0xff]
    %v128 = vld [vmem:[#allocation3 + $0x20] sm:$0xff]
    %v129 = vld [vmem:[#allocation3 + $0x28] sm:$0xff]
    %v130 = vld [vmem:[#allocation3 + $0x30] sm:$0xff]
    %v131 = vld [vmem:[#allocation3 + $0x38] sm:$0xff]
    %v132 = vld [vmem:[#allocation3 + $0x40] sm:$0xff]
    %v133 = vld [vmem:[#allocation3 + $0x48] sm:$0xff]
    %v134 = vld [vmem:[#allocation3 + $0x50] sm:$0xff]
    %v135 = vld [vmem:[#allocation3 + $0x58] sm:$0xff]
    %v136 = vld [vmem:[#allocation6] sm:$0xff]
    %v137 = vld [vmem:[#allocation6 + $0x8] sm:$0xff]
    %v138 = vld [vmem:[#allocation6 + $0x10] sm:$0xff]
    %v139 = vld [vmem:[#allocation6 + $0x18] sm:$0xff]
    %v140 = vld [vmem:[#allocation6 + $0x20] sm:$0xff]
    %v141 = vld [vmem:[#allocation6 + $0x28] sm:$0xff]
    %v142 = vld [vmem:[#allocation6 + $0x30] sm:$0xff]
    %v143 = vld [vmem:[#allocation6 + $0x38] sm:$0xff]
    %v144 = vld [vmem:[#allocation6 + $0x40] sm:$0xff]
    %v145 = vld [vmem:[#allocation6 + $0x48] sm:$0xff]
    %v146 = vld [vmem:[#allocation6 + $0x50] sm:$0xff]
    %v147 = vld [vmem:[#allocation6 + $0x58] sm:$0xff]
    %v148 = vld [vmem:[#allocation6 + $0x60] sm:$0xff]
    %v149 = vld [vmem:[#allocation6 + $0x68] sm:$0xff]
    %v150 = vld [vmem:[#allocation6 + $0x70] sm:$0xff]
    %v151 = vld [vmem:[#allocation6 + $0x78] sm:$0xff]
    %v152 = vld [vmem:[#allocation6 + $0x80] sm:$0xff]
    %v153 = vld [vmem:[#allocation6 + $0x88] sm:$0xff]
    %v154 = vld [vmem:[#allocation6 + $0x90] sm:$0xff]
    %v155 = vld [vmem:[#allocation6 + $0x98] sm:$0xff]
    %v156 = vld [vmem:[#allocation6 + $0xa0] sm:$0xff]
    %v157 = vld [vmem:[#allocation6 + $0xa8] sm:$0xff]
    %v158 = vld [vmem:[#allocation6 + $0xb0] sm:$0xff]
    %v159 = vld [vmem:[#allocation6 + $0xb8] sm:$0xff]
    %v160 = vld [vmem:[#allocation6 + $0xc0] sm:$0xff]
    %v161 = vld [vmem:[#allocation6 + $0xc8] sm:$0xff]
    %v162 = vld [vmem:[#allocation6 + $0xd0] sm:$0xff]
    %v163 = vld [vmem:[#allocation6 + $0xd8] sm:$0xff]
    %v164 = vld [vmem:[#allocation6 + $0xe0] sm:$0xff]
    %v165 = vld [vmem:[#allocation6 + $0xe8] sm:$0xff]
    %v166 = vld [vmem:[#allocation6 + $0xf0] sm:$0xff]
    %v167 = vld [vmem:[#allocation6 + $0xf8] sm:$0xff]
    %v168 = vld [vmem:[%s5] sm:$0xf]
    %v170 = vperm.slane %v168, 0
    %v171 = vperm.slane %v168, 1
    %v172 = vperm.slane %v168, 2
    %v173 = vperm.slane %v168, 3
    %v180 = vunpack.c.l.b16 %v122
    %v181 = vunpack.c.l.b16 %v123
    %v182 = vpack.c.b16 %v181, %v180
    %v195 = vunpack.c.l.b16 %v124
    %v196 = vunpack.c.h.b16 %v124
    %v197 = vunpack.c.l.b16 %v125
    %v198 = vunpack.c.h.b16 %v125
    %v199 = vunpack.c.l.b16 %v126
    %v200 = vunpack.c.h.b16 %v126
    %v201 = vunpack.c.l.b16 %v127
    %v202 = vunpack.c.h.b16 %v127
    %v203 = vunpack.c.l.b16 %v128
    %v204 = vunpack.c.h.b16 %v128
    %v205 = vunpack.c.l.b16 %v129
    %v206 = vunpack.c.h.b16 %v129
    %v207 = vunpack.c.l.b16 %v130
    %v208 = vunpack.c.h.b16 %v130
    %v209 = vunpack.c.l.b16 %v131
    %v210 = vunpack.c.h.b16 %v131
    %v211 = vunpack.c.l.b16 %v132
    %v212 = vunpack.c.h.b16 %v132
    %v213 = vunpack.c.l.b16 %v133
    %v214 = vunpack.c.h.b16 %v133
    %v215 = vunpack.c.l.b16 %v134
    %v216 = vunpack.c.h.b16 %v134
    %v217 = vunpack.c.l.b16 %v135
    %v218 = vunpack.c.h.b16 %v135
    %v219 = vpack.c.b16 %v199, %v195
    %v220 = vpack.c.b16 %v200, %v196
    %v221 = vpack.c.b16 %v201, %v197
    %v222 = vpack.c.b16 %v202, %v198
    %v223 = vpack.c.b16 %v207, %v203
    %v224 = vpack.c.b16 %v208, %v204
    %v225 = vpack.c.b16 %v209, %v205
    %v226 = vpack.c.b16 %v210, %v206
    %v227 = vpack.c.b16 %v215, %v211
    %v228 = vpack.c.b16 %v216, %v212
    %v229 = vpack.c.b16 %v217, %v213
    %v230 = vpack.c.b16 %v218, %v214
    %vm243 = vcmask 392192
    %v245 = vsel %vm243, %v182, 0
    %247 = vmatpush.bf16.msra.mxu0 0
    %248 = vmatpush.bf16.msra.mxu0 0
    %249 = vmatpush.bf16.msra.mxu0 0
    %250 = vmatpush.bf16.msra.mxu0 0
    %251 = vmatpush.bf16.msra.mxu0 0
    %252 = vmatpush.bf16.msra.mxu0 %v227
    %253 = vmatpush.bf16.msra.mxu0 %v223
    %254 = vmatpush.bf16.msra.mxu0 %v219
    %255 = vmatmul.bf16.gmra.mxu0 %v245
    %v256 = vpop.f32.mrf.mxu0
    %v257 = vadd.f32 %v170, %v256
    %v258 = vpop.f32.mrf.mxu0
    %v259 = vadd.f32 %v170, %v258
    %260 = vdwg.mxu0
    %261 = vmatpush.bf16.msra.mxu0 0
    %262 = vmatpush.bf16.msra.mxu0 0
    %263 = vmatpush.bf16.msra.mxu0 0
    %264 = vmatpush.bf16.msra.mxu0 0
    %265 = vmatpush.bf16.msra.mxu0 0
    %266 = vmatpush.bf16.msra.mxu0 %v228
    %267 = vmatpush.bf16.msra.mxu0 %v224
    %268 = vmatpush.bf16.msra.mxu0 %v220
    %269 = vmatmul.bf16.gmra.mxu0 %v245
    %v270 = vpop.f32.mrf.mxu0
    %v271 = vadd.f32 %v171, %v270
    %v272 = vpop.f32.mrf.mxu0
    %v273 = vadd.f32 %v171, %v272
    %274 = vdwg.mxu0
    %275 = vmatpush.bf16.msra.mxu0 0
    %276 = vmatpush.bf16.msra.mxu0 0
    %277 = vmatpush.bf16.msra.mxu0 0
    %278 = vmatpush.bf16.msra.mxu0 0
    %279 = vmatpush.bf16.msra.mxu0 0
    %280 = vmatpush.bf16.msra.mxu0 %v229
    %281 = vmatpush.bf16.msra.mxu0 %v225
    %282 = vmatpush.bf16.msra.mxu0 %v221
    %283 = vmatmul.bf16.gmra.mxu0 %v245
    %v284 = vpop.f32.mrf.mxu0
    %v285 = vadd.f32 %v172, %v284
    %v286 = vpop.f32.mrf.mxu0
    %v287 = vadd.f32 %v172, %v286
    %288 = vdwg.mxu0
    %289 = vmatpush.bf16.msra.mxu0 0
    %290 = vmatpush.bf16.msra.mxu0 0
    %291 = vmatpush.bf16.msra.mxu0 0
    %292 = vmatpush.bf16.msra.mxu0 0
    %293 = vmatpush.bf16.msra.mxu0 0
    %294 = vmatpush.bf16.msra.mxu0 %v230
    %295 = vmatpush.bf16.msra.mxu0 %v226
    %296 = vmatpush.bf16.msra.mxu0 %v222
    %297 = vmatmul.bf16.gmra.mxu0 %v245
    %v298 = vpop.f32.mrf.mxu0
    %v299 = vadd.f32 %v173, %v298
    %v300 = vpop.f32.mrf.mxu0
    %v301 = vadd.f32 %v173, %v300
    %302 = vdwg.mxu0
    %v303 = vld [vmem:[%s1] sm:$0x3]
    %v304 = vld [vmem:[%s2] sm:$0x3]
    %v305 = vpack.c.bf16 %v303, %v303
    %v338 = vunpack.c.l.b16 %v136
    %v339 = vunpack.c.h.b16 %v136
    %v340 = vunpack.c.l.b16 %v137
    %v341 = vunpack.c.h.b16 %v137
    %v342 = vunpack.c.l.b16 %v138
    %v343 = vunpack.c.h.b16 %v138
    %v344 = vunpack.c.l.b16 %v139
    %v345 = vunpack.c.h.b16 %v139
    %v346 = vunpack.c.l.b16 %v140
    %v347 = vunpack.c.h.b16 %v140
    %v348 = vunpack.c.l.b16 %v141
    %v349 = vunpack.c.h.b16 %v141
    %v350 = vunpack.c.l.b16 %v142
    %v351 = vunpack.c.h.b16 %v142
    %v352 = vunpack.c.l.b16 %v143
    %v353 = vunpack.c.h.b16 %v143
    %v354 = vunpack.c.l.b16 %v144
    %v355 = vunpack.c.h.b16 %v144
    %v356 = vunpack.c.l.b16 %v145
    %v357 = vunpack.c.h.b16 %v145
    %v358 = vunpack.c.l.b16 %v146
    %v359 = vunpack.c.h.b16 %v146
    %v360 = vunpack.c.l.b16 %v147
    %v361 = vunpack.c.h.b16 %v147
    %v362 = vunpack.c.l.b16 %v148
    %v363 = vunpack.c.h.b16 %v148
    %v364 = vunpack.c.l.b16 %v149
    %v365 = vunpack.c.h.b16 %v149
    %v366 = vunpack.c.l.b16 %v150
    %v367 = vunpack.c.h.b16 %v150
    %v368 = vunpack.c.l.b16 %v151
    %v369 = vunpack.c.h.b16 %v151
    %v370 = vunpack.c.l.b16 %v152
    %v371 = vunpack.c.h.b16 %v152
    %v372 = vunpack.c.l.b16 %v153
    %v373 = vunpack.c.h.b16 %v153
    %v374 = vunpack.c.l.b16 %v154
    %v375 = vunpack.c.h.b16 %v154
    %v376 = vunpack.c.l.b16 %v155
    %v377 = vunpack.c.h.b16 %v155
    %v378 = vunpack.c.l.b16 %v156
    %v379 = vunpack.c.h.b16 %v156
    %v380 = vunpack.c.l.b16 %v157
    %v381 = vunpack.c.h.b16 %v157
    %v382 = vunpack.c.l.b16 %v158
    %v383 = vunpack.c.h.b16 %v158
    %v384 = vunpack.c.l.b16 %v159
    %v385 = vunpack.c.h.b16 %v159
    %v386 = vunpack.c.l.b16 %v160
    %v387 = vunpack.c.h.b16 %v160
    %v388 = vunpack.c.l.b16 %v161
    %v389 = vunpack.c.h.b16 %v161
    %v390 = vunpack.c.l.b16 %v162
    %v391 = vunpack.c.h.b16 %v162
    %v392 = vunpack.c.l.b16 %v163
    %v393 = vunpack.c.h.b16 %v163
    %v394 = vunpack.c.l.b16 %v164
    %v395 = vunpack.c.h.b16 %v164
    %v396 = vunpack.c.l.b16 %v165
    %v397 = vunpack.c.h.b16 %v165
    %v398 = vunpack.c.l.b16 %v166
    %v399 = vunpack.c.h.b16 %v166
    %v400 = vunpack.c.l.b16 %v167
    %v401 = vunpack.c.h.b16 %v167
    %v402 = vpack.c.b16 %v342, %v338
    %v403 = vpack.c.b16 %v343, %v339
    %v404 = vpack.c.b16 %v344, %v340
    %v405 = vpack.c.b16 %v345, %v341
    %v406 = vpack.c.b16 %v350, %v346
    %v407 = vpack.c.b16 %v351, %v347
    %v408 = vpack.c.b16 %v352, %v348
    %v409 = vpack.c.b16 %v353, %v349
    %v410 = vpack.c.b16 %v358, %v354
    %v411 = vpack.c.b16 %v359, %v355
    %v412 = vpack.c.b16 %v360, %v356
    %v413 = vpack.c.b16 %v361, %v357
    %v414 = vpack.c.b16 %v366, %v362
    %v415 = vpack.c.b16 %v367, %v363
    %v416 = vpack.c.b16 %v368, %v364
    %v417 = vpack.c.b16 %v369, %v365
    %v418 = vpack.c.b16 %v374, %v370
    %v419 = vpack.c.b16 %v375, %v371
    %v420 = vpack.c.b16 %v376, %v372
    %v421 = vpack.c.b16 %v377, %v373
    %v422 = vpack.c.b16 %v382, %v378
    %v423 = vpack.c.b16 %v383, %v379
    %v424 = vpack.c.b16 %v384, %v380
    %v425 = vpack.c.b16 %v385, %v381
    %v426 = vpack.c.b16 %v390, %v386
    %v427 = vpack.c.b16 %v391, %v387
    %v428 = vpack.c.b16 %v392, %v388
    %v429 = vpack.c.b16 %v393, %v389
    %v430 = vpack.c.b16 %v398, %v394
    %v431 = vpack.c.b16 %v399, %v395
    %v432 = vpack.c.b16 %v400, %v396
    %v433 = vpack.c.b16 %v401, %v397
    %466 = vmatpush.bf16.msra.mxu0 %v430
    %467 = vmatpush.bf16.msra.mxu0 %v426
    %468 = vmatpush.bf16.msra.mxu0 %v422
    %469 = vmatpush.bf16.msra.mxu0 %v418
    %470 = vmatpush.bf16.msra.mxu0 %v414
    %471 = vmatpush.bf16.msra.mxu0 %v410
    %472 = vmatpush.bf16.msra.mxu0 %v406
    %473 = vmatpush.bf16.msra.mxu0 %v402
    %474 = vmatmul.bf16.gmra.mxu0 %v305
    %v475 = vpop.f32.mrf.mxu0
    %v476 = vadd.f32 0.0, %v475
    %v477 = vpop.f32.mrf.mxu0
    %478 = vdwg.mxu0
    %479 = vmatpush.bf16.msra.mxu0 %v431
    %480 = vmatpush.bf16.msra.mxu0 %v427
    %481 = vmatpush.bf16.msra.mxu0 %v423
    %482 = vmatpush.bf16.msra.mxu0 %v419
    %483 = vmatpush.bf16.msra.mxu0 %v415
    %484 = vmatpush.bf16.msra.mxu0 %v411
    %485 = vmatpush.bf16.msra.mxu0 %v407
    %486 = vmatpush.bf16.msra.mxu0 %v403
    %487 = vmatmul.bf16.gmra.mxu0 %v305
    %v488 = vpop.f32.mrf.mxu0
    %v489 = vadd.f32 0.0, %v488
    %v490 = vpop.f32.mrf.mxu0
    %491 = vdwg.mxu0
    %492 = vmatpush.bf16.msra.mxu0 %v432
    %493 = vmatpush.bf16.msra.mxu0 %v428
    %494 = vmatpush.bf16.msra.mxu0 %v424
    %495 = vmatpush.bf16.msra.mxu0 %v420
    %496 = vmatpush.bf16.msra.mxu0 %v416
    %497 = vmatpush.bf16.msra.mxu0 %v412
    %498 = vmatpush.bf16.msra.mxu0 %v408
    %499 = vmatpush.bf16.msra.mxu0 %v404
    %500 = vmatmul.bf16.gmra.mxu0 %v305
    %v501 = vpop.f32.mrf.mxu0
    %v502 = vadd.f32 0.0, %v501
    %v503 = vpop.f32.mrf.mxu0
    %504 = vdwg.mxu0
    %505 = vmatpush.bf16.msra.mxu0 %v433
    %506 = vmatpush.bf16.msra.mxu0 %v429
    %507 = vmatpush.bf16.msra.mxu0 %v425
    %508 = vmatpush.bf16.msra.mxu0 %v421
    %509 = vmatpush.bf16.msra.mxu0 %v417
    %510 = vmatpush.bf16.msra.mxu0 %v413
    %511 = vmatpush.bf16.msra.mxu0 %v409
    %512 = vmatpush.bf16.msra.mxu0 %v405
    %513 = vmatmul.bf16.gmra.mxu0 %v305
    %v514 = vpop.f32.mrf.mxu0
    %v515 = vadd.f32 0.0, %v514
    %v516 = vpop.f32.mrf.mxu0
    %517 = vdwg.mxu0
    %v522 = vrot.slane %v476, 1
    %v523 = vrot.slane %v489, 1
    %v524 = vrot.slane %v502, 1
    %v525 = vrot.slane %v515, 1
    %v534 = vadd.f32 %v257, %v476
    %v535 = vadd.f32 %v271, %v489
    %v536 = vadd.f32 %v285, %v502
    %v537 = vadd.f32 %v299, %v515
    %v538 = vadd.f32 %v259, %v522
    %v539 = vadd.f32 %v273, %v523
    %v540 = vadd.f32 %v287, %v524
    %v541 = vadd.f32 %v301, %v525
    %v542 = vxor.u32 %v534, 2147483648
    %v543 = vxor.u32 %v538, 2147483648
    %v544 = vmul.f32 %v542, 1.442695
    %v545 = vpow.pop %v544
    %v546 = vmul.f32 %v543, 1.442695
    %v547 = vpow.pop %v546
    %v548 = vadd.f32 %v545, 1.0
    %v549 = vadd.f32 %v547, 1.0
    %v550 = vrcp.pop %v548
    %v551 = vmul.f32 %v548, %v550
    %v552 = vsub.f32 1.0, %v551
    %v553 = vmul.f32 %v550, %v552
    %v554 = vadd.f32 %v550, %v553
    %vm555 = vweird.f32 %v548
    %vm556 = vweird.f32 %v550
    %vm557 = vmor %vm555, %vm556
    %v558 = vsel %vm557, %v550, %v554
    %v559 = vand.u32 2147483647, %v548
    %vm560 = vcmp.eq.f32.partialorder %v559, 8.507059e+37
    %v561 = vand.u32 %v548, 2147483648
    %v562 = vor.u32 1.1754944e-38, %v561
    %v563 = vsel %vm560, %v562, %v558
    %v564 = vmul.f32 1.0, %v563
    %v565 = vrcp.pop %v549
    %v566 = vmul.f32 %v549, %v565
    %v567 = vsub.f32 1.0, %v566
    %v568 = vmul.f32 %v565, %v567
    %v569 = vadd.f32 %v565, %v568
    %vm570 = vweird.f32 %v549
    %vm571 = vweird.f32 %v565
    %vm572 = vmor %vm570, %vm571
    %v573 = vsel %vm572, %v565, %v569
    %v574 = vand.u32 2147483647, %v549
    %vm575 = vcmp.eq.f32.partialorder %v574, 8.507059e+37
    %v576 = vand.u32 %v549, 2147483648
    %v577 = vor.u32 1.1754944e-38, %v576
    %v578 = vsel %vm575, %v577, %v573
    %v579 = vmul.f32 1.0, %v578
    %v580 = vxor.u32 %v535, 2147483648
    %v581 = vxor.u32 %v539, 2147483648
    %v582 = vmul.f32 %v580, 1.442695
    %v583 = vpow.pop %v582
    %v584 = vmul.f32 %v581, 1.442695
    %v585 = vpow.pop %v584
    %v586 = vadd.f32 %v583, 1.0
    %v587 = vadd.f32 %v585, 1.0
    %v588 = vrcp.pop %v586
    %v589 = vmul.f32 %v586, %v588
    %v590 = vsub.f32 1.0, %v589
    %v591 = vmul.f32 %v588, %v590
    %v592 = vadd.f32 %v588, %v591
    %vm593 = vweird.f32 %v586
    %vm594 = vweird.f32 %v588
    %vm595 = vmor %vm593, %vm594
    %v596 = vsel %vm595, %v588, %v592
    %v597 = vand.u32 2147483647, %v586
    %vm598 = vcmp.eq.f32.partialorder %v597, 8.507059e+37
    %v599 = vand.u32 %v586, 2147483648
    %v600 = vor.u32 1.1754944e-38, %v599
    %v601 = vsel %vm598, %v600, %v596
    %v602 = vmul.f32 1.0, %v601
    %v603 = vrcp.pop %v587
    %v604 = vmul.f32 %v587, %v603
    %v605 = vsub.f32 1.0, %v604
    %v606 = vmul.f32 %v603, %v605
    %v607 = vadd.f32 %v603, %v606
    %vm608 = vweird.f32 %v587
    %vm609 = vweird.f32 %v603
    %vm610 = vmor %vm608, %vm609
    %v611 = vsel %vm610, %v603, %v607
    %v612 = vand.u32 2147483647, %v587
    %vm613 = vcmp.eq.f32.partialorder %v612, 8.507059e+37
    %v614 = vand.u32 %v587, 2147483648
    %v615 = vor.u32 1.1754944e-38, %v614
    %v616 = vsel %vm613, %v615, %v611
    %v617 = vmul.f32 1.0, %v616
    %v618 = vtanh.pop %v536
    %v619 = vtanh.pop %v540
    %v620 = vxor.u32 %v537, 2147483648
    %v621 = vxor.u32 %v541, 2147483648
    %v622 = vmul.f32 %v620, 1.442695
    %v623 = vpow.pop %v622
    %v624 = vmul.f32 %v621, 1.442695
    %v625 = vpow.pop %v624
    %v626 = vadd.f32 %v623, 1.0
    %v627 = vadd.f32 %v625, 1.0
    %v628 = vrcp.pop %v626
    %v629 = vmul.f32 %v626, %v628
    %v630 = vsub.f32 1.0, %v629
    %v631 = vmul.f32 %v628, %v630
    %v632 = vadd.f32 %v628, %v631
    %vm633 = vweird.f32 %v626
    %vm634 = vweird.f32 %v628
    %vm635 = vmor %vm633, %vm634
    %v636 = vsel %vm635, %v628, %v632
    %v637 = vand.u32 2147483647, %v626
    %vm638 = vcmp.eq.f32.partialorder %v637, 8.507059e+37
    %v639 = vand.u32 %v626, 2147483648
    %v640 = vor.u32 1.1754944e-38, %v639
    %v641 = vsel %vm638, %v640, %v636
    %v642 = vmul.f32 1.0, %v641
    %v643 = vrcp.pop %v627
    %v644 = vmul.f32 %v627, %v643
    %v645 = vsub.f32 1.0, %v644
    %v646 = vmul.f32 %v643, %v645
    %v647 = vadd.f32 %v643, %v646
    %vm648 = vweird.f32 %v627
    %vm649 = vweird.f32 %v643
    %vm650 = vmor %vm648, %vm649
    %v651 = vsel %vm650, %v643, %v647
    %v652 = vand.u32 2147483647, %v627
    %vm653 = vcmp.eq.f32.partialorder %v652, 8.507059e+37
    %v654 = vand.u32 %v627, 2147483648
    %v655 = vor.u32 1.1754944e-38, %v654
    %v656 = vsel %vm653, %v655, %v651
    %v657 = vmul.f32 1.0, %v656
    %v659 = vrot.slane %v304, 1
    %v662 = vmul.f32 %v602, %v304
    %v663 = vmul.f32 %v617, %v659
    %v664 = vmul.f32 %v564, %v618
    %v665 = vmul.f32 %v579, %v619
    %v666 = vadd.f32 %v662, %v664
    %v667 = vadd.f32 %v663, %v665
    %v668 = vtanh.pop %v666
    %v669 = vtanh.pop %v667
    %v670 = vmul.f32 %v642, %v668
    %v671 = vmul.f32 %v657, %v669
    %672 = vst [vmem:[#allocation2] sm:$0x1] %v670
    %673 = vst [vmem:[#allocation2 + $0x8] sm:$0x1] %v671
    %v674 = vpack.c.bf16 %v670, %v670
    %v675 = vpack.c.bf16 %v671, %v671
    %v678 = vunpack.c.l.b16 %v674
    %v679 = vunpack.c.l.b16 %v675
    %v680 = vrot.slane %v679, 7
    %vm681 = vcmask 1041409
    %v682 = vsel %vm681, %v680, %v678
    %v683 = vpack.c.b16 %v682, %v682
    %685 = vmatpush.bf16.msra.mxu0 %v430
    %686 = vmatpush.bf16.msra.mxu0 %v426
    %687 = vmatpush.bf16.msra.mxu0 %v422
    %688 = vmatpush.bf16.msra.mxu0 %v418
    %689 = vmatpush.bf16.msra.mxu0 %v414
    %690 = vmatpush.bf16.msra.mxu0 %v410
    %691 = vmatpush.bf16.msra.mxu0 %v406
    %692 = vmatpush.bf16.msra.mxu0 %v402
    %693 = vmatmul.bf16.gmra.mxu0 %v683
    %v694 = vpop.f32.mrf.mxu0
    %v695 = vadd.f32 0.0, %v694
    %v696 = vpop.f32.mrf.mxu0
    %697 = vdwg.mxu0
    %698 = vmatpush.bf16.msra.mxu0 %v431
    %699 = vmatpush.bf16.msra.mxu0 %v427
    %700 = vmatpush.bf16.msra.mxu0 %v423
    %701 = vmatpush.bf16.msra.mxu0 %v419
    %702 = vmatpush.bf16.msra.mxu0 %v415
    %703 = vmatpush.bf16.msra.mxu0 %v411
    %704 = vmatpush.bf16.msra.mxu0 %v407
    %705 = vmatpush.bf16.msra.mxu0 %v403
    %706 = vmatmul.bf16.gmra.mxu0 %v683
    %v707 = vpop.f32.mrf.mxu0
    %v708 = vadd.f32 0.0, %v707
    %v709 = vpop.f32.mrf.mxu0
    %710 = vdwg.mxu0
    %711 = vmatpush.bf16.msra.mxu0 %v432
    %712 = vmatpush.bf16.msra.mxu0 %v428
    %713 = vmatpush.bf16.msra.mxu0 %v424
    %714 = vmatpush.bf16.msra.mxu0 %v420
    %715 = vmatpush.bf16.msra.mxu0 %v416
    %716 = vmatpush.bf16.msra.mxu0 %v412
    %717 = vmatpush.bf16.msra.mxu0 %v408
    %718 = vmatpush.bf16.msra.mxu0 %v404
    %719 = vmatmul.bf16.gmra.mxu0 %v683
    %v720 = vpop.f32.mrf.mxu0
    %v721 = vadd.f32 0.0, %v720
    %v722 = vpop.f32.mrf.mxu0
    %723 = vdwg.mxu0
    %724 = vmatpush.bf16.msra.mxu0 %v433
    %725 = vmatpush.bf16.msra.mxu0 %v429
    %726 = vmatpush.bf16.msra.mxu0 %v425
    %727 = vmatpush.bf16.msra.mxu0 %v421
    %728 = vmatpush.bf16.msra.mxu0 %v417
    %729 = vmatpush.bf16.msra.mxu0 %v413
    %730 = vmatpush.bf16.msra.mxu0 %v409
    %731 = vmatpush.bf16.msra.mxu0 %v405
    %732 = vmatmul.bf16.gmra.mxu0 %v683
    %v733 = vpop.f32.mrf.mxu0
    %v734 = vadd.f32 0.0, %v733
    %v735 = vpop.f32.mrf.mxu0
    %736 = vdwg.mxu0
    %v741 = vrot.slane %v695, 7
    %v742 = vrot.slane %v708, 7
    %v743 = vrot.slane %v721, 7
    %v744 = vrot.slane %v734, 7
    %v753 = vadd.f32 %v257, %v741
    %v754 = vadd.f32 %v271, %v742
    %v755 = vadd.f32 %v285, %v743
    %v756 = vadd.f32 %v299, %v744
    %v757 = vadd.f32 %v259, %v695
    %v758 = vadd.f32 %v273, %v708
    %v759 = vadd.f32 %v287, %v721
    %v760 = vadd.f32 %v301, %v734
    %v761 = vxor.u32 %v753, 2147483648
    %v762 = vxor.u32 %v757, 2147483648
    %v763 = vmul.f32 %v761, 1.442695
    %v764 = vpow.pop %v763
    %v765 = vmul.f32 %v762, 1.442695
    %v766 = vpow.pop %v765
    %v767 = vadd.f32 %v764, 1.0
    %v768 = vadd.f32 %v766, 1.0
    %v769 = vrcp.pop %v767
    %v770 = vmul.f32 %v767, %v769
    %v771 = vsub.f32 1.0, %v770
    %v772 = vmul.f32 %v769, %v771
    %v773 = vadd.f32 %v769, %v772
    %vm774 = vweird.f32 %v767
    %vm775 = vweird.f32 %v769
    %vm776 = vmor %vm774, %vm775
    %v777 = vsel %vm776, %v769, %v773
    %v778 = vand.u32 2147483647, %v767
    %vm779 = vcmp.eq.f32.partialorder %v778, 8.507059e+37
    %v780 = vand.u32 %v767, 2147483648
    %v781 = vor.u32 1.1754944e-38, %v780
    %v782 = vsel %vm779, %v781, %v777
    %v783 = vmul.f32 1.0, %v782
    %v784 = vrcp.pop %v768
    %v785 = vmul.f32 %v768, %v784
    %v786 = vsub.f32 1.0, %v785
    %v787 = vmul.f32 %v784, %v786
    %v788 = vadd.f32 %v784, %v787
    %vm789 = vweird.f32 %v768
    %vm790 = vweird.f32 %v784
    %vm791 = vmor %vm789, %vm790
    %v792 = vsel %vm791, %v784, %v788
    %v793 = vand.u32 2147483647, %v768
    %vm794 = vcmp.eq.f32.partialorder %v793, 8.507059e+37
    %v795 = vand.u32 %v768, 2147483648
    %v796 = vor.u32 1.1754944e-38, %v795
    %v797 = vsel %vm794, %v796, %v792
    %v798 = vmul.f32 1.0, %v797
    %v799 = vxor.u32 %v754, 2147483648
    %v800 = vxor.u32 %v758, 2147483648
    %v801 = vmul.f32 %v799, 1.442695
    %v802 = vpow.pop %v801
    %v803 = vmul.f32 %v800, 1.442695
    %v804 = vpow.pop %v803
    %v805 = vadd.f32 %v802, 1.0
    %v806 = vadd.f32 %v804, 1.0
    %v807 = vrcp.pop %v805
    %v808 = vmul.f32 %v805, %v807
    %v809 = vsub.f32 1.0, %v808
    %v810 = vmul.f32 %v807, %v809
    %v811 = vadd.f32 %v807, %v810
    %vm812 = vweird.f32 %v805
    %vm813 = vweird.f32 %v807
    %vm814 = vmor %vm812, %vm813
    %v815 = vsel %vm814, %v807, %v811
    %v816 = vand.u32 2147483647, %v805
    %vm817 = vcmp.eq.f32.partialorder %v816, 8.507059e+37
    %v818 = vand.u32 %v805, 2147483648
    %v819 = vor.u32 1.1754944e-38, %v818
    %v820 = vsel %vm817, %v819, %v815
    %v821 = vmul.f32 1.0, %v820
    %v822 = vrcp.pop %v806
    %v823 = vmul.f32 %v806, %v822
    %v824 = vsub.f32 1.0, %v823
    %v825 = vmul.f32 %v822, %v824
    %v826 = vadd.f32 %v822, %v825
    %vm827 = vweird.f32 %v806
    %vm828 = vweird.f32 %v822
    %vm829 = vmor %vm827, %vm828
    %v830 = vsel %vm829, %v822, %v826
    %v831 = vand.u32 2147483647, %v806
    %vm832 = vcmp.eq.f32.partialorder %v831, 8.507059e+37
    %v833 = vand.u32 %v806, 2147483648
    %v834 = vor.u32 1.1754944e-38, %v833
    %v835 = vsel %vm832, %v834, %v830
    %v836 = vmul.f32 1.0, %v835
    %v837 = vtanh.pop %v755
    %v838 = vtanh.pop %v759
    %v839 = vxor.u32 %v756, 2147483648
    %v840 = vxor.u32 %v760, 2147483648
    %v841 = vmul.f32 %v839, 1.442695
    %v842 = vpow.pop %v841
    %v843 = vmul.f32 %v840, 1.442695
    %v844 = vpow.pop %v843
    %v845 = vadd.f32 %v842, 1.0
    %v846 = vadd.f32 %v844, 1.0
    %v847 = vrcp.pop %v845
    %v848 = vmul.f32 %v845, %v847
    %v849 = vsub.f32 1.0, %v848
    %v850 = vmul.f32 %v847, %v849
    %v851 = vadd.f32 %v847, %v850
    %vm852 = vweird.f32 %v845
    %vm853 = vweird.f32 %v847
    %vm854 = vmor %vm852, %vm853
    %v855 = vsel %vm854, %v847, %v851
    %v856 = vand.u32 2147483647, %v845
    %vm857 = vcmp.eq.f32.partialorder %v856, 8.507059e+37
    %v858 = vand.u32 %v845, 2147483648
    %v859 = vor.u32 1.1754944e-38, %v858
    %v860 = vsel %vm857, %v859, %v855
    %v861 = vmul.f32 1.0, %v860
    %v862 = vrcp.pop %v846
    %v863 = vmul.f32 %v846, %v862
    %v864 = vsub.f32 1.0, %v863
    %v865 = vmul.f32 %v862, %v864
    %v866 = vadd.f32 %v862, %v865
    %vm867 = vweird.f32 %v846
    %vm868 = vweird.f32 %v862
    %vm869 = vmor %vm867, %vm868
    %v870 = vsel %vm869, %v862, %v866
    %v871 = vand.u32 2147483647, %v846
    %vm872 = vcmp.eq.f32.partialorder %v871, 8.507059e+37
    %v873 = vand.u32 %v846, 2147483648
    %v874 = vor.u32 1.1754944e-38, %v873
    %v875 = vsel %vm872, %v874, %v870
    %v876 = vmul.f32 1.0, %v875
    %v879 = vrot.slane %v666, 7
    %v880 = vrot.slane %v667, 7
    %v883 = vmul.f32 %v821, %v879
    %v884 = vmul.f32 %v836, %v880
    %v885 = vmul.f32 %v783, %v837
    %v886 = vmul.f32 %v798, %v838
    %v887 = vadd.f32 %v883, %v885
    %v888 = vadd.f32 %v884, %v886
    %v889 = vtanh.pop %v887
    %v890 = vtanh.pop %v888
    %v891 = vmul.f32 %v861, %v889
    %v892 = vmul.f32 %v876, %v890
    %893 = vst [vmem:[#allocation2] sm:$0x2] %v891
    %894 = vst [vmem:[#allocation2 + $0x8] sm:$0x2] %v892
    %v895 = vpack.c.bf16 %v891, %v891
    %v896 = vpack.c.bf16 %v892, %v892
    %v899 = vunpack.c.l.b16 %v895
    %v900 = vunpack.c.l.b16 %v896
    %v901 = vrot.slane %v899, 1
    %v902 = vsel %vm681, %v900, %v901
    %v903 = vpack.c.b16 %v902, %v902
    %905 = vmatpush.bf16.msra.mxu0 %v430
    %906 = vmatpush.bf16.msra.mxu0 %v426
    %907 = vmatpush.bf16.msra.mxu0 %v422
    %908 = vmatpush.bf16.msra.mxu0 %v418
    %909 = vmatpush.bf16.msra.mxu0 %v414
    %910 = vmatpush.bf16.msra.mxu0 %v410
    %911 = vmatpush.bf16.msra.mxu0 %v406
    %912 = vmatpush.bf16.msra.mxu0 %v402
    %913 = vmatmul.bf16.gmra.mxu0 %v903
    %v914 = vpop.f32.mrf.mxu0
    %v915 = vadd.f32 0.0, %v914
    %v916 = vpop.f32.mrf.mxu0
    %917 = vdwg.mxu0
    %918 = vmatpush.bf16.msra.mxu0 %v431
    %919 = vmatpush.bf16.msra.mxu0 %v427
    %920 = vmatpush.bf16.msra.mxu0 %v423
    %921 = vmatpush.bf16.msra.mxu0 %v419
    %922 = vmatpush.bf16.msra.mxu0 %v415
    %923 = vmatpush.bf16.msra.mxu0 %v411
    %924 = vmatpush.bf16.msra.mxu0 %v407
    %925 = vmatpush.bf16.msra.mxu0 %v403
    %926 = vmatmul.bf16.gmra.mxu0 %v903
    %v927 = vpop.f32.mrf.mxu0
    %v928 = vadd.f32 0.0, %v927
    %v929 = vpop.f32.mrf.mxu0
    %930 = vdwg.mxu0
    %931 = vmatpush.bf16.msra.mxu0 %v432
    %932 = vmatpush.bf16.msra.mxu0 %v428
    %933 = vmatpush.bf16.msra.mxu0 %v424
    %934 = vmatpush.bf16.msra.mxu0 %v420
    %935 = vmatpush.bf16.msra.mxu0 %v416
    %936 = vmatpush.bf16.msra.mxu0 %v412
    %937 = vmatpush.bf16.msra.mxu0 %v408
    %938 = vmatpush.bf16.msra.mxu0 %v404
    %939 = vmatmul.bf16.gmra.mxu0 %v903
    %v940 = vpop.f32.mrf.mxu0
    %v941 = vadd.f32 0.0, %v940
    %v942 = vpop.f32.mrf.mxu0
    %943 = vdwg.mxu0
    %944 = vmatpush.bf16.msra.mxu0 %v433
    %945 = vmatpush.bf16.msra.mxu0 %v429
    %946 = vmatpush.bf16.msra.mxu0 %v425
    %947 = vmatpush.bf16.msra.mxu0 %v421
    %948 = vmatpush.bf16.msra.mxu0 %v417
    %949 = vmatpush.bf16.msra.mxu0 %v413
    %950 = vmatpush.bf16.msra.mxu0 %v409
    %951 = vmatpush.bf16.msra.mxu0 %v405
    %952 = vmatmul.bf16.gmra.mxu0 %v903
    %v953 = vpop.f32.mrf.mxu0
    %v954 = vadd.f32 0.0, %v953
    %v955 = vpop.f32.mrf.mxu0
    %956 = vdwg.mxu0
    %v961 = vrot.slane %v915, 6
    %v962 = vrot.slane %v928, 6
    %v963 = vrot.slane %v941, 6
    %v964 = vrot.slane %v954, 6
    %v965 = vrot.slane %v915, 7
    %v966 = vrot.slane %v928, 7
    %v967 = vrot.slane %v941, 7
    %v968 = vrot.slane %v954, 7
    %v977 = vadd.f32 %v257, %v961
    %v978 = vadd.f32 %v271, %v962
    %v979 = vadd.f32 %v285, %v963
    %v980 = vadd.f32 %v299, %v964
    %v981 = vadd.f32 %v259, %v965
    %v982 = vadd.f32 %v273, %v966
    %v983 = vadd.f32 %v287, %v967
    %v984 = vadd.f32 %v301, %v968
    %v985 = vxor.u32 %v977, 2147483648
    %v986 = vxor.u32 %v981, 2147483648
    %v987 = vmul.f32 %v985, 1.442695
    %v988 = vpow.pop %v987
    %v989 = vmul.f32 %v986, 1.442695
    %v990 = vpow.pop %v989
    %v991 = vadd.f32 %v988, 1.0
    %v992 = vadd.f32 %v990, 1.0
    %v993 = vrcp.pop %v991
    %v994 = vmul.f32 %v991, %v993
    %v995 = vsub.f32 1.0, %v994
    %v996 = vmul.f32 %v993, %v995
    %v997 = vadd.f32 %v993, %v996
    %vm998 = vweird.f32 %v991
    %vm999 = vweird.f32 %v993
    %vm1000 = vmor %vm998, %vm999
    %v1001 = vsel %vm1000, %v993, %v997
    %v1002 = vand.u32 2147483647, %v991
    %vm1003 = vcmp.eq.f32.partialorder %v1002, 8.507059e+37
    %v1004 = vand.u32 %v991, 2147483648
    %v1005 = vor.u32 1.1754944e-38, %v1004
    %v1006 = vsel %vm1003, %v1005, %v1001
    %v1007 = vmul.f32 1.0, %v1006
    %v1008 = vrcp.pop %v992
    %v1009 = vmul.f32 %v992, %v1008
    %v1010 = vsub.f32 1.0, %v1009
    %v1011 = vmul.f32 %v1008, %v1010
    %v1012 = vadd.f32 %v1008, %v1011
    %vm1013 = vweird.f32 %v992
    %vm1014 = vweird.f32 %v1008
    %vm1015 = vmor %vm1013, %vm1014
    %v1016 = vsel %vm1015, %v1008, %v1012
    %v1017 = vand.u32 2147483647, %v992
    %vm1018 = vcmp.eq.f32.partialorder %v1017, 8.507059e+37
    %v1019 = vand.u32 %v992, 2147483648
    %v1020 = vor.u32 1.1754944e-38, %v1019
    %v1021 = vsel %vm1018, %v1020, %v1016
    %v1022 = vmul.f32 1.0, %v1021
    %v1023 = vxor.u32 %v978, 2147483648
    %v1024 = vxor.u32 %v982, 2147483648
    %v1025 = vmul.f32 %v1023, 1.442695
    %v1026 = vpow.pop %v1025
    %v1027 = vmul.f32 %v1024, 1.442695
    %v1028 = vpow.pop %v1027
    %v1029 = vadd.f32 %v1026, 1.0
    %v1030 = vadd.f32 %v1028, 1.0
    %v1031 = vrcp.pop %v1029
    %v1032 = vmul.f32 %v1029, %v1031
    %v1033 = vsub.f32 1.0, %v1032
    %v1034 = vmul.f32 %v1031, %v1033
    %v1035 = vadd.f32 %v1031, %v1034
    %vm1036 = vweird.f32 %v1029
    %vm1037 = vweird.f32 %v1031
    %vm1038 = vmor %vm1036, %vm1037
    %v1039 = vsel %vm1038, %v1031, %v1035
    %v1040 = vand.u32 2147483647, %v1029
    %vm1041 = vcmp.eq.f32.partialorder %v1040, 8.507059e+37
    %v1042 = vand.u32 %v1029, 2147483648
    %v1043 = vor.u32 1.1754944e-38, %v1042
    %v1044 = vsel %vm1041, %v1043, %v1039
    %v1045 = vmul.f32 1.0, %v1044
    %v1046 = vrcp.pop %v1030
    %v1047 = vmul.f32 %v1030, %v1046
    %v1048 = vsub.f32 1.0, %v1047
    %v1049 = vmul.f32 %v1046, %v1048
    %v1050 = vadd.f32 %v1046, %v1049
    %vm1051 = vweird.f32 %v1030
    %vm1052 = vweird.f32 %v1046
    %vm1053 = vmor %vm1051, %vm1052
    %v1054 = vsel %vm1053, %v1046, %v1050
    %v1055 = vand.u32 2147483647, %v1030
    %vm1056 = vcmp.eq.f32.partialorder %v1055, 8.507059e+37
    %v1057 = vand.u32 %v1030, 2147483648
    %v1058 = vor.u32 1.1754944e-38, %v1057
    %v1059 = vsel %vm1056, %v1058, %v1054
    %v1060 = vmul.f32 1.0, %v1059
    %v1061 = vtanh.pop %v979
    %v1062 = vtanh.pop %v983
    %v1063 = vxor.u32 %v980, 2147483648
    %v1064 = vxor.u32 %v984, 2147483648
    %v1065 = vmul.f32 %v1063, 1.442695
    %v1066 = vpow.pop %v1065
    %v1067 = vmul.f32 %v1064, 1.442695
    %v1068 = vpow.pop %v1067
    %v1069 = vadd.f32 %v1066, 1.0
    %v1070 = vadd.f32 %v1068, 1.0
    %v1071 = vrcp.pop %v1069
    %v1072 = vmul.f32 %v1069, %v1071
    %v1073 = vsub.f32 1.0, %v1072
    %v1074 = vmul.f32 %v1071, %v1073
    %v1075 = vadd.f32 %v1071, %v1074
    %vm1076 = vweird.f32 %v1069
    %vm1077 = vweird.f32 %v1071
    %vm1078 = vmor %vm1076, %vm1077
    %v1079 = vsel %vm1078, %v1071, %v1075
    %v1080 = vand.u32 2147483647, %v1069
    %vm1081 = vcmp.eq.f32.partialorder %v1080, 8.507059e+37
    %v1082 = vand.u32 %v1069, 2147483648
    %v1083 = vor.u32 1.1754944e-38, %v1082
    %v1084 = vsel %vm1081, %v1083, %v1079
    %v1085 = vmul.f32 1.0, %v1084
    %v1086 = vrcp.pop %v1070
    %v1087 = vmul.f32 %v1070, %v1086
    %v1088 = vsub.f32 1.0, %v1087
    %v1089 = vmul.f32 %v1086, %v1088
    %v1090 = vadd.f32 %v1086, %v1089
    %vm1091 = vweird.f32 %v1070
    %vm1092 = vweird.f32 %v1086
    %vm1093 = vmor %vm1091, %vm1092
    %v1094 = vsel %vm1093, %v1086, %v1090
    %v1095 = vand.u32 2147483647, %v1070
    %vm1096 = vcmp.eq.f32.partialorder %v1095, 8.507059e+37
    %v1097 = vand.u32 %v1070, 2147483648
    %v1098 = vor.u32 1.1754944e-38, %v1097
    %v1099 = vsel %vm1096, %v1098, %v1094
    %v1100 = vmul.f32 1.0, %v1099
    %v1103 = vrot.slane %v887, 7
    %v1104 = vrot.slane %v888, 7
    %v1107 = vmul.f32 %v1045, %v1103
    %v1108 = vmul.f32 %v1060, %v1104
    %v1109 = vmul.f32 %v1007, %v1061
    %v1110 = vmul.f32 %v1022, %v1062
    %v1111 = vadd.f32 %v1107, %v1109
    %v1112 = vadd.f32 %v1108, %v1110
    %v1113 = vtanh.pop %v1111
    %v1114 = vtanh.pop %v1112
    %v1115 = vmul.f32 %v1085, %v1113
    %v1116 = vmul.f32 %v1100, %v1114
    %1117 = vst [vmem:[#allocation2] sm:$0x4] %v1115
    %1118 = vst [vmem:[#allocation2 + $0x8] sm:$0x4] %v1116
    %v1119 = vpack.c.bf16 %v1115, %v1115
    %v1120 = vpack.c.bf16 %v1116, %v1116
    %v1123 = vunpack.c.l.b16 %v1119
    %v1124 = vunpack.c.l.b16 %v1120
    %v1125 = vrot.slane %v1123, 2
    %v1126 = vrot.slane %v1124, 1
    %v1127 = vsel %vm681, %v1126, %v1125
    %v1128 = vpack.c.b16 %v1127, %v1127
    %1130 = vmatpush.bf16.msra.mxu0 %v430
    %1131 = vmatpush.bf16.msra.mxu0 %v426
    %1132 = vmatpush.bf16.msra.mxu0 %v422
    %1133 = vmatpush.bf16.msra.mxu0 %v418
    %1134 = vmatpush.bf16.msra.mxu0 %v414
    %1135 = vmatpush.bf16.msra.mxu0 %v410
    %1136 = vmatpush.bf16.msra.mxu0 %v406
    %1137 = vmatpush.bf16.msra.mxu0 %v402
    %1138 = vmatmul.bf16.gmra.mxu0 %v1128
    %v1139 = vpop.f32.mrf.mxu0
    %v1140 = vadd.f32 0.0, %v1139
    %v1141 = vpop.f32.mrf.mxu0
    %1142 = vdwg.mxu0
    %1143 = vmatpush.bf16.msra.mxu0 %v431
    %1144 = vmatpush.bf16.msra.mxu0 %v427
    %1145 = vmatpush.bf16.msra.mxu0 %v423
    %1146 = vmatpush.bf16.msra.mxu0 %v419
    %1147 = vmatpush.bf16.msra.mxu0 %v415
    %1148 = vmatpush.bf16.msra.mxu0 %v411
    %1149 = vmatpush.bf16.msra.mxu0 %v407
    %1150 = vmatpush.bf16.msra.mxu0 %v403
    %1151 = vmatmul.bf16.gmra.mxu0 %v1128
    %v1152 = vpop.f32.mrf.mxu0
    %v1153 = vadd.f32 0.0, %v1152
    %v1154 = vpop.f32.mrf.mxu0
    %1155 = vdwg.mxu0
    %1156 = vmatpush.bf16.msra.mxu0 %v432
    %1157 = vmatpush.bf16.msra.mxu0 %v428
    %1158 = vmatpush.bf16.msra.mxu0 %v424
    %1159 = vmatpush.bf16.msra.mxu0 %v420
    %1160 = vmatpush.bf16.msra.mxu0 %v416
    %1161 = vmatpush.bf16.msra.mxu0 %v412
    %1162 = vmatpush.bf16.msra.mxu0 %v408
    %1163 = vmatpush.bf16.msra.mxu0 %v404
    %1164 = vmatmul.bf16.gmra.mxu0 %v1128
    %v1165 = vpop.f32.mrf.mxu0
    %v1166 = vadd.f32 0.0, %v1165
    %v1167 = vpop.f32.mrf.mxu0
    %1168 = vdwg.mxu0
    %1169 = vmatpush.bf16.msra.mxu0 %v433
    %1170 = vmatpush.bf16.msra.mxu0 %v429
    %1171 = vmatpush.bf16.msra.mxu0 %v425
    %1172 = vmatpush.bf16.msra.mxu0 %v421
    %1173 = vmatpush.bf16.msra.mxu0 %v417
    %1174 = vmatpush.bf16.msra.mxu0 %v413
    %1175 = vmatpush.bf16.msra.mxu0 %v409
    %1176 = vmatpush.bf16.msra.mxu0 %v405
    %1177 = vmatmul.bf16.gmra.mxu0 %v1128
    %v1178 = vpop.f32.mrf.mxu0
    %v1179 = vadd.f32 0.0, %v1178
    %v1180 = vpop.f32.mrf.mxu0
    %1181 = vdwg.mxu0
    %v1186 = vrot.slane %v1140, 5
    %v1187 = vrot.slane %v1153, 5
    %v1188 = vrot.slane %v1166, 5
    %v1189 = vrot.slane %v1179, 5
    %v1190 = vrot.slane %v1140, 6
    %v1191 = vrot.slane %v1153, 6
    %v1192 = vrot.slane %v1166, 6
    %v1193 = vrot.slane %v1179, 6
    %v1202 = vadd.f32 %v257, %v1186
    %v1203 = vadd.f32 %v271, %v1187
    %v1204 = vadd.f32 %v285, %v1188
    %v1205 = vadd.f32 %v299, %v1189
    %v1206 = vadd.f32 %v259, %v1190
    %v1207 = vadd.f32 %v273, %v1191
    %v1208 = vadd.f32 %v287, %v1192
    %v1209 = vadd.f32 %v301, %v1193
    %v1210 = vxor.u32 %v1202, 2147483648
    %v1211 = vxor.u32 %v1206, 2147483648
    %v1212 = vmul.f32 %v1210, 1.442695
    %v1213 = vpow.pop %v1212
    %v1214 = vmul.f32 %v1211, 1.442695
    %v1215 = vpow.pop %v1214
    %v1216 = vadd.f32 %v1213, 1.0
    %v1217 = vadd.f32 %v1215, 1.0
    %v1218 = vrcp.pop %v1216
    %v1219 = vmul.f32 %v1216, %v1218
    %v1220 = vsub.f32 1.0, %v1219
    %v1221 = vmul.f32 %v1218, %v1220
    %v1222 = vadd.f32 %v1218, %v1221
    %vm1223 = vweird.f32 %v1216
    %vm1224 = vweird.f32 %v1218
    %vm1225 = vmor %vm1223, %vm1224
    %v1226 = vsel %vm1225, %v1218, %v1222
    %v1227 = vand.u32 2147483647, %v1216
    %vm1228 = vcmp.eq.f32.partialorder %v1227, 8.507059e+37
    %v1229 = vand.u32 %v1216, 2147483648
    %v1230 = vor.u32 1.1754944e-38, %v1229
    %v1231 = vsel %vm1228, %v1230, %v1226
    %v1232 = vmul.f32 1.0, %v1231
    %v1233 = vrcp.pop %v1217
    %v1234 = vmul.f32 %v1217, %v1233
    %v1235 = vsub.f32 1.0, %v1234
    %v1236 = vmul.f32 %v1233, %v1235
    %v1237 = vadd.f32 %v1233, %v1236
    %vm1238 = vweird.f32 %v1217
    %vm1239 = vweird.f32 %v1233
    %vm1240 = vmor %vm1238, %vm1239
    %v1241 = vsel %vm1240, %v1233, %v1237
    %v1242 = vand.u32 2147483647, %v1217
    %vm1243 = vcmp.eq.f32.partialorder %v1242, 8.507059e+37
    %v1244 = vand.u32 %v1217, 2147483648
    %v1245 = vor.u32 1.1754944e-38, %v1244
    %v1246 = vsel %vm1243, %v1245, %v1241
    %v1247 = vmul.f32 1.0, %v1246
    %v1248 = vxor.u32 %v1203, 2147483648
    %v1249 = vxor.u32 %v1207, 2147483648
    %v1250 = vmul.f32 %v1248, 1.442695
    %v1251 = vpow.pop %v1250
    %v1252 = vmul.f32 %v1249, 1.442695
    %v1253 = vpow.pop %v1252
    %v1254 = vadd.f32 %v1251, 1.0
    %v1255 = vadd.f32 %v1253, 1.0
    %v1256 = vrcp.pop %v1254
    %v1257 = vmul.f32 %v1254, %v1256
    %v1258 = vsub.f32 1.0, %v1257
    %v1259 = vmul.f32 %v1256, %v1258
    %v1260 = vadd.f32 %v1256, %v1259
    %vm1261 = vweird.f32 %v1254
    %vm1262 = vweird.f32 %v1256
    %vm1263 = vmor %vm1261, %vm1262
    %v1264 = vsel %vm1263, %v1256, %v1260
    %v1265 = vand.u32 2147483647, %v1254
    %vm1266 = vcmp.eq.f32.partialorder %v1265, 8.507059e+37
    %v1267 = vand.u32 %v1254, 2147483648
    %v1268 = vor.u32 1.1754944e-38, %v1267
    %v1269 = vsel %vm1266, %v1268, %v1264
    %v1270 = vmul.f32 1.0, %v1269
    %v1271 = vrcp.pop %v1255
    %v1272 = vmul.f32 %v1255, %v1271
    %v1273 = vsub.f32 1.0, %v1272
    %v1274 = vmul.f32 %v1271, %v1273
    %v1275 = vadd.f32 %v1271, %v1274
    %vm1276 = vweird.f32 %v1255
    %vm1277 = vweird.f32 %v1271
    %vm1278 = vmor %vm1276, %vm1277
    %v1279 = vsel %vm1278, %v1271, %v1275
    %v1280 = vand.u32 2147483647, %v1255
    %vm1281 = vcmp.eq.f32.partialorder %v1280, 8.507059e+37
    %v1282 = vand.u32 %v1255, 2147483648
    %v1283 = vor.u32 1.1754944e-38, %v1282
    %v1284 = vsel %vm1281, %v1283, %v1279
    %v1285 = vmul.f32 1.0, %v1284
    %v1286 = vtanh.pop %v1204
    %v1287 = vtanh.pop %v1208
    %v1288 = vxor.u32 %v1205, 2147483648
    %v1289 = vxor.u32 %v1209, 2147483648
    %v1290 = vmul.f32 %v1288, 1.442695
    %v1291 = vpow.pop %v1290
    %v1292 = vmul.f32 %v1289, 1.442695
    %v1293 = vpow.pop %v1292
    %v1294 = vadd.f32 %v1291, 1.0
    %v1295 = vadd.f32 %v1293, 1.0
    %v1296 = vrcp.pop %v1294
    %v1297 = vmul.f32 %v1294, %v1296
    %v1298 = vsub.f32 1.0, %v1297
    %v1299 = vmul.f32 %v1296, %v1298
    %v1300 = vadd.f32 %v1296, %v1299
    %vm1301 = vweird.f32 %v1294
    %vm1302 = vweird.f32 %v1296
    %vm1303 = vmor %vm1301, %vm1302
    %v1304 = vsel %vm1303, %v1296, %v1300
    %v1305 = vand.u32 2147483647, %v1294
    %vm1306 = vcmp.eq.f32.partialorder %v1305, 8.507059e+37
    %v1307 = vand.u32 %v1294, 2147483648
    %v1308 = vor.u32 1.1754944e-38, %v1307
    %v1309 = vsel %vm1306, %v1308, %v1304
    %v1310 = vmul.f32 1.0, %v1309
    %v1311 = vrcp.pop %v1295
    %v1312 = vmul.f32 %v1295, %v1311
    %v1313 = vsub.f32 1.0, %v1312
    %v1314 = vmul.f32 %v1311, %v1313
    %v1315 = vadd.f32 %v1311, %v1314
    %vm1316 = vweird.f32 %v1295
    %vm1317 = vweird.f32 %v1311
    %vm1318 = vmor %vm1316, %vm1317
    %v1319 = vsel %vm1318, %v1311, %v1315
    %v1320 = vand.u32 2147483647, %v1295
    %vm1321 = vcmp.eq.f32.partialorder %v1320, 8.507059e+37
    %v1322 = vand.u32 %v1295, 2147483648
    %v1323 = vor.u32 1.1754944e-38, %v1322
    %v1324 = vsel %vm1321, %v1323, %v1319
    %v1325 = vmul.f32 1.0, %v1324
    %v1328 = vrot.slane %v1111, 7
    %v1329 = vrot.slane %v1112, 7
    %v1332 = vmul.f32 %v1270, %v1328
    %v1333 = vmul.f32 %v1285, %v1329
    %v1334 = vmul.f32 %v1232, %v1286
    %v1335 = vmul.f32 %v1247, %v1287
    %v1336 = vadd.f32 %v1332, %v1334
    %v1337 = vadd.f32 %v1333, %v1335
    %v1338 = vtanh.pop %v1336
    %v1339 = vtanh.pop %v1337
    %v1340 = vmul.f32 %v1310, %v1338
    %v1341 = vmul.f32 %v1325, %v1339
    %1342 = vst [vmem:[#allocation2] sm:$0x8] %v1340
    %1343 = vst [vmem:[#allocation2 + $0x8] sm:$0x8] %v1341
    %v1344 = vpack.c.bf16 %v1340, %v1340
    %v1345 = vpack.c.bf16 %v1341, %v1341
    %v1348 = vunpack.c.l.b16 %v1344
    %v1349 = vunpack.c.l.b16 %v1345
    %v1350 = vrot.slane %v1348, 3
    %v1351 = vrot.slane %v1349, 2
    %v1352 = vsel %vm681, %v1351, %v1350
    %v1353 = vpack.c.b16 %v1352, %v1352
    %1355 = vmatpush.bf16.msra.mxu0 %v430
    %1356 = vmatpush.bf16.msra.mxu0 %v426
    %1357 = vmatpush.bf16.msra.mxu0 %v422
    %1358 = vmatpush.bf16.msra.mxu0 %v418
    %1359 = vmatpush.bf16.msra.mxu0 %v414
    %1360 = vmatpush.bf16.msra.mxu0 %v410
    %1361 = vmatpush.bf16.msra.mxu0 %v406
    %1362 = vmatpush.bf16.msra.mxu0 %v402
    %1363 = vmatmul.bf16.gmra.mxu0 %v1353
    %v1364 = vpop.f32.mrf.mxu0
    %v1365 = vadd.f32 0.0, %v1364
    %v1366 = vpop.f32.mrf.mxu0
    %1367 = vdwg.mxu0
    %1368 = vmatpush.bf16.msra.mxu0 %v431
    %1369 = vmatpush.bf16.msra.mxu0 %v427
    %1370 = vmatpush.bf16.msra.mxu0 %v423
    %1371 = vmatpush.bf16.msra.mxu0 %v419
    %1372 = vmatpush.bf16.msra.mxu0 %v415
    %1373 = vmatpush.bf16.msra.mxu0 %v411
    %1374 = vmatpush.bf16.msra.mxu0 %v407
    %1375 = vmatpush.bf16.msra.mxu0 %v403
    %1376 = vmatmul.bf16.gmra.mxu0 %v1353
    %v1377 = vpop.f32.mrf.mxu0
    %v1378 = vadd.f32 0.0, %v1377
    %v1379 = vpop.f32.mrf.mxu0
    %1380 = vdwg.mxu0
    %1381 = vmatpush.bf16.msra.mxu0 %v432
    %1382 = vmatpush.bf16.msra.mxu0 %v428
    %1383 = vmatpush.bf16.msra.mxu0 %v424
    %1384 = vmatpush.bf16.msra.mxu0 %v420
    %1385 = vmatpush.bf16.msra.mxu0 %v416
    %1386 = vmatpush.bf16.msra.mxu0 %v412
    %1387 = vmatpush.bf16.msra.mxu0 %v408
    %1388 = vmatpush.bf16.msra.mxu0 %v404
    %1389 = vmatmul.bf16.gmra.mxu0 %v1353
    %v1390 = vpop.f32.mrf.mxu0
    %v1391 = vadd.f32 0.0, %v1390
    %v1392 = vpop.f32.mrf.mxu0
    %1393 = vdwg.mxu0
    %1394 = vmatpush.bf16.msra.mxu0 %v433
    %1395 = vmatpush.bf16.msra.mxu0 %v429
    %1396 = vmatpush.bf16.msra.mxu0 %v425
    %1397 = vmatpush.bf16.msra.mxu0 %v421
    %1398 = vmatpush.bf16.msra.mxu0 %v417
    %1399 = vmatpush.bf16.msra.mxu0 %v413
    %1400 = vmatpush.bf16.msra.mxu0 %v409
    %1401 = vmatpush.bf16.msra.mxu0 %v405
    %1402 = vmatmul.bf16.gmra.mxu0 %v1353
    %v1403 = vpop.f32.mrf.mxu0
    %v1404 = vadd.f32 0.0, %v1403
    %v1405 = vpop.f32.mrf.mxu0
    %1406 = vdwg.mxu0
    %v1411 = vrot.slane %v1365, 4
    %v1412 = vrot.slane %v1378, 4
    %v1413 = vrot.slane %v1391, 4
    %v1414 = vrot.slane %v1404, 4
    %v1415 = vrot.slane %v1365, 5
    %v1416 = vrot.slane %v1378, 5
    %v1417 = vrot.slane %v1391, 5
    %v1418 = vrot.slane %v1404, 5
    %v1427 = vadd.f32 %v257, %v1411
    %v1428 = vadd.f32 %v271, %v1412
    %v1429 = vadd.f32 %v285, %v1413
    %v1430 = vadd.f32 %v299, %v1414
    %v1431 = vadd.f32 %v259, %v1415
    %v1432 = vadd.f32 %v273, %v1416
    %v1433 = vadd.f32 %v287, %v1417
    %v1434 = vadd.f32 %v301, %v1418
    %v1435 = vxor.u32 %v1427, 2147483648
    %v1436 = vxor.u32 %v1431, 2147483648
    %v1437 = vmul.f32 %v1435, 1.442695
    %v1438 = vpow.pop %v1437
    %v1439 = vmul.f32 %v1436, 1.442695
    %v1440 = vpow.pop %v1439
    %v1441 = vadd.f32 %v1438, 1.0
    %v1442 = vadd.f32 %v1440, 1.0
    %v1443 = vrcp.pop %v1441
    %v1444 = vmul.f32 %v1441, %v1443
    %v1445 = vsub.f32 1.0, %v1444
    %v1446 = vmul.f32 %v1443, %v1445
    %v1447 = vadd.f32 %v1443, %v1446
    %vm1448 = vweird.f32 %v1441
    %vm1449 = vweird.f32 %v1443
    %vm1450 = vmor %vm1448, %vm1449
    %v1451 = vsel %vm1450, %v1443, %v1447
    %v1452 = vand.u32 2147483647, %v1441
    %vm1453 = vcmp.eq.f32.partialorder %v1452, 8.507059e+37
    %v1454 = vand.u32 %v1441, 2147483648
    %v1455 = vor.u32 1.1754944e-38, %v1454
    %v1456 = vsel %vm1453, %v1455, %v1451
    %v1457 = vmul.f32 1.0, %v1456
    %v1458 = vrcp.pop %v1442
    %v1459 = vmul.f32 %v1442, %v1458
    %v1460 = vsub.f32 1.0, %v1459
    %v1461 = vmul.f32 %v1458, %v1460
    %v1462 = vadd.f32 %v1458, %v1461
    %vm1463 = vweird.f32 %v1442
    %vm1464 = vweird.f32 %v1458
    %vm1465 = vmor %vm1463, %vm1464
    %v1466 = vsel %vm1465, %v1458, %v1462
    %v1467 = vand.u32 2147483647, %v1442
    %vm1468 = vcmp.eq.f32.partialorder %v1467, 8.507059e+37
    %v1469 = vand.u32 %v1442, 2147483648
    %v1470 = vor.u32 1.1754944e-38, %v1469
    %v1471 = vsel %vm1468, %v1470, %v1466
    %v1472 = vmul.f32 1.0, %v1471
    %v1473 = vxor.u32 %v1428, 2147483648
    %v1474 = vxor.u32 %v1432, 2147483648
    %v1475 = vmul.f32 %v1473, 1.442695
    %v1476 = vpow.pop %v1475
    %v1477 = vmul.f32 %v1474, 1.442695
    %v1478 = vpow.pop %v1477
    %v1479 = vadd.f32 %v1476, 1.0
    %v1480 = vadd.f32 %v1478, 1.0
    %v1481 = vrcp.pop %v1479
    %v1482 = vmul.f32 %v1479, %v1481
    %v1483 = vsub.f32 1.0, %v1482
    %v1484 = vmul.f32 %v1481, %v1483
    %v1485 = vadd.f32 %v1481, %v1484
    %vm1486 = vweird.f32 %v1479
    %vm1487 = vweird.f32 %v1481
    %vm1488 = vmor %vm1486, %vm1487
    %v1489 = vsel %vm1488, %v1481, %v1485
    %v1490 = vand.u32 2147483647, %v1479
    %vm1491 = vcmp.eq.f32.partialorder %v1490, 8.507059e+37
    %v1492 = vand.u32 %v1479, 2147483648
    %v1493 = vor.u32 1.1754944e-38, %v1492
    %v1494 = vsel %vm1491, %v1493, %v1489
    %v1495 = vmul.f32 1.0, %v1494
    %v1496 = vrcp.pop %v1480
    %v1497 = vmul.f32 %v1480, %v1496
    %v1498 = vsub.f32 1.0, %v1497
    %v1499 = vmul.f32 %v1496, %v1498
    %v1500 = vadd.f32 %v1496, %v1499
    %vm1501 = vweird.f32 %v1480
    %vm1502 = vweird.f32 %v1496
    %vm1503 = vmor %vm1501, %vm1502
    %v1504 = vsel %vm1503, %v1496, %v1500
    %v1505 = vand.u32 2147483647, %v1480
    %vm1506 = vcmp.eq.f32.partialorder %v1505, 8.507059e+37
    %v1507 = vand.u32 %v1480, 2147483648
    %v1508 = vor.u32 1.1754944e-38, %v1507
    %v1509 = vsel %vm1506, %v1508, %v1504
    %v1510 = vmul.f32 1.0, %v1509
    %v1511 = vtanh.pop %v1429
    %v1512 = vtanh.pop %v1433
    %v1513 = vxor.u32 %v1430, 2147483648
    %v1514 = vxor.u32 %v1434, 2147483648
    %v1515 = vmul.f32 %v1513, 1.442695
    %v1516 = vpow.pop %v1515
    %v1517 = vmul.f32 %v1514, 1.442695
    %v1518 = vpow.pop %v1517
    %v1519 = vadd.f32 %v1516, 1.0
    %v1520 = vadd.f32 %v1518, 1.0
    %v1521 = vrcp.pop %v1519
    %v1522 = vmul.f32 %v1519, %v1521
    %v1523 = vsub.f32 1.0, %v1522
    %v1524 = vmul.f32 %v1521, %v1523
    %v1525 = vadd.f32 %v1521, %v1524
    %vm1526 = vweird.f32 %v1519
    %vm1527 = vweird.f32 %v1521
    %vm1528 = vmor %vm1526, %vm1527
    %v1529 = vsel %vm1528, %v1521, %v1525
    %v1530 = vand.u32 2147483647, %v1519
    %vm1531 = vcmp.eq.f32.partialorder %v1530, 8.507059e+37
    %v1532 = vand.u32 %v1519, 2147483648
    %v1533 = vor.u32 1.1754944e-38, %v1532
    %v1534 = vsel %vm1531, %v1533, %v1529
    %v1535 = vmul.f32 1.0, %v1534
    %v1536 = vrcp.pop %v1520
    %v1537 = vmul.f32 %v1520, %v1536
    %v1538 = vsub.f32 1.0, %v1537
    %v1539 = vmul.f32 %v1536, %v1538
    %v1540 = vadd.f32 %v1536, %v1539
    %vm1541 = vweird.f32 %v1520
    %vm1542 = vweird.f32 %v1536
    %vm1543 = vmor %vm1541, %vm1542
    %v1544 = vsel %vm1543, %v1536, %v1540
    %v1545 = vand.u32 2147483647, %v1520
    %vm1546 = vcmp.eq.f32.partialorder %v1545, 8.507059e+37
    %v1547 = vand.u32 %v1520, 2147483648
    %v1548 = vor.u32 1.1754944e-38, %v1547
    %v1549 = vsel %vm1546, %v1548, %v1544
    %v1550 = vmul.f32 1.0, %v1549
    %v1553 = vrot.slane %v1336, 7
    %v1554 = vrot.slane %v1337, 7
    %v1557 = vmul.f32 %v1495, %v1553
    %v1558 = vmul.f32 %v1510, %v1554
    %v1559 = vmul.f32 %v1457, %v1511
    %v1560 = vmul.f32 %v1472, %v1512
    %v1561 = vadd.f32 %v1557, %v1559
    %v1562 = vadd.f32 %v1558, %v1560
    %v1563 = vtanh.pop %v1561
    %v1564 = vtanh.pop %v1562
    %v1565 = vmul.f32 %v1535, %v1563
    %v1566 = vmul.f32 %v1550, %v1564
    %1567 = vst [vmem:[#allocation2] sm:$0x10] %v1565
    %1568 = vst [vmem:[#allocation2 + $0x8] sm:$0x10] %v1566
    %v1569 = vpack.c.bf16 %v1565, %v1565
    %v1570 = vpack.c.bf16 %v1566, %v1566
    %v1573 = vunpack.c.l.b16 %v1569
    %v1574 = vunpack.c.l.b16 %v1570
    %v1575 = vrot.slane %v1573, 4
    %v1576 = vrot.slane %v1574, 3
    %v1577 = vsel %vm681, %v1576, %v1575
    %v1578 = vpack.c.b16 %v1577, %v1577
    %1580 = vmatpush.bf16.msra.mxu0 %v430
    %1581 = vmatpush.bf16.msra.mxu0 %v426
    %1582 = vmatpush.bf16.msra.mxu0 %v422
    %1583 = vmatpush.bf16.msra.mxu0 %v418
    %1584 = vmatpush.bf16.msra.mxu0 %v414
    %1585 = vmatpush.bf16.msra.mxu0 %v410
    %1586 = vmatpush.bf16.msra.mxu0 %v406
    %1587 = vmatpush.bf16.msra.mxu0 %v402
    %1588 = vmatmul.bf16.gmra.mxu0 %v1578
    %v1589 = vpop.f32.mrf.mxu0
    %v1590 = vadd.f32 0.0, %v1589
    %v1591 = vpop.f32.mrf.mxu0
    %1592 = vdwg.mxu0
    %1593 = vmatpush.bf16.msra.mxu0 %v431
    %1594 = vmatpush.bf16.msra.mxu0 %v427
    %1595 = vmatpush.bf16.msra.mxu0 %v423
    %1596 = vmatpush.bf16.msra.mxu0 %v419
    %1597 = vmatpush.bf16.msra.mxu0 %v415
    %1598 = vmatpush.bf16.msra.mxu0 %v411
    %1599 = vmatpush.bf16.msra.mxu0 %v407
    %1600 = vmatpush.bf16.msra.mxu0 %v403
    %1601 = vmatmul.bf16.gmra.mxu0 %v1578
    %v1602 = vpop.f32.mrf.mxu0
    %v1603 = vadd.f32 0.0, %v1602
    %v1604 = vpop.f32.mrf.mxu0
    %1605 = vdwg.mxu0
    %1606 = vmatpush.bf16.msra.mxu0 %v432
    %1607 = vmatpush.bf16.msra.mxu0 %v428
    %1608 = vmatpush.bf16.msra.mxu0 %v424
    %1609 = vmatpush.bf16.msra.mxu0 %v420
    %1610 = vmatpush.bf16.msra.mxu0 %v416
    %1611 = vmatpush.bf16.msra.mxu0 %v412
    %1612 = vmatpush.bf16.msra.mxu0 %v408
    %1613 = vmatpush.bf16.msra.mxu0 %v404
    %1614 = vmatmul.bf16.gmra.mxu0 %v1578
    %v1615 = vpop.f32.mrf.mxu0
    %v1616 = vadd.f32 0.0, %v1615
    %v1617 = vpop.f32.mrf.mxu0
    %1618 = vdwg.mxu0
    %1619 = vmatpush.bf16.msra.mxu0 %v433
    %1620 = vmatpush.bf16.msra.mxu0 %v429
    %1621 = vmatpush.bf16.msra.mxu0 %v425
    %1622 = vmatpush.bf16.msra.mxu0 %v421
    %1623 = vmatpush.bf16.msra.mxu0 %v417
    %1624 = vmatpush.bf16.msra.mxu0 %v413
    %1625 = vmatpush.bf16.msra.mxu0 %v409
    %1626 = vmatpush.bf16.msra.mxu0 %v405
    %1627 = vmatmul.bf16.gmra.mxu0 %v1578
    %v1628 = vpop.f32.mrf.mxu0
    %v1629 = vadd.f32 0.0, %v1628
    %v1630 = vpop.f32.mrf.mxu0
    %1631 = vdwg.mxu0
    %v1636 = vrot.slane %v1590, 3
    %v1637 = vrot.slane %v1603, 3
    %v1638 = vrot.slane %v1616, 3
    %v1639 = vrot.slane %v1629, 3
    %v1640 = vrot.slane %v1590, 4
    %v1641 = vrot.slane %v1603, 4
    %v1642 = vrot.slane %v1616, 4
    %v1643 = vrot.slane %v1629, 4
    %v1652 = vadd.f32 %v257, %v1636
    %v1653 = vadd.f32 %v271, %v1637
    %v1654 = vadd.f32 %v285, %v1638
    %v1655 = vadd.f32 %v299, %v1639
    %v1656 = vadd.f32 %v259, %v1640
    %v1657 = vadd.f32 %v273, %v1641
    %v1658 = vadd.f32 %v287, %v1642
    %v1659 = vadd.f32 %v301, %v1643
    %v1660 = vxor.u32 %v1652, 2147483648
    %v1661 = vxor.u32 %v1656, 2147483648
    %v1662 = vmul.f32 %v1660, 1.442695
    %v1663 = vpow.pop %v1662
    %v1664 = vmul.f32 %v1661, 1.442695
    %v1665 = vpow.pop %v1664
    %v1666 = vadd.f32 %v1663, 1.0
    %v1667 = vadd.f32 %v1665, 1.0
    %v1668 = vrcp.pop %v1666
    %v1669 = vmul.f32 %v1666, %v1668
    %v1670 = vsub.f32 1.0, %v1669
    %v1671 = vmul.f32 %v1668, %v1670
    %v1672 = vadd.f32 %v1668, %v1671
    %vm1673 = vweird.f32 %v1666
    %vm1674 = vweird.f32 %v1668
    %vm1675 = vmor %vm1673, %vm1674
    %v1676 = vsel %vm1675, %v1668, %v1672
    %v1677 = vand.u32 2147483647, %v1666
    %vm1678 = vcmp.eq.f32.partialorder %v1677, 8.507059e+37
    %v1679 = vand.u32 %v1666, 2147483648
    %v1680 = vor.u32 1.1754944e-38, %v1679
    %v1681 = vsel %vm1678, %v1680, %v1676
    %v1682 = vmul.f32 1.0, %v1681
    %v1683 = vrcp.pop %v1667
    %v1684 = vmul.f32 %v1667, %v1683
    %v1685 = vsub.f32 1.0, %v1684
    %v1686 = vmul.f32 %v1683, %v1685
    %v1687 = vadd.f32 %v1683, %v1686
    %vm1688 = vweird.f32 %v1667
    %vm1689 = vweird.f32 %v1683
    %vm1690 = vmor %vm1688, %vm1689
    %v1691 = vsel %vm1690, %v1683, %v1687
    %v1692 = vand.u32 2147483647, %v1667
    %vm1693 = vcmp.eq.f32.partialorder %v1692, 8.507059e+37
    %v1694 = vand.u32 %v1667, 2147483648
    %v1695 = vor.u32 1.1754944e-38, %v1694
    %v1696 = vsel %vm1693, %v1695, %v1691
    %v1697 = vmul.f32 1.0, %v1696
    %v1698 = vxor.u32 %v1653, 2147483648
    %v1699 = vxor.u32 %v1657, 2147483648
    %v1700 = vmul.f32 %v1698, 1.442695
    %v1701 = vpow.pop %v1700
    %v1702 = vmul.f32 %v1699, 1.442695
    %v1703 = vpow.pop %v1702
    %v1704 = vadd.f32 %v1701, 1.0
    %v1705 = vadd.f32 %v1703, 1.0
    %v1706 = vrcp.pop %v1704
    %v1707 = vmul.f32 %v1704, %v1706
    %v1708 = vsub.f32 1.0, %v1707
    %v1709 = vmul.f32 %v1706, %v1708
    %v1710 = vadd.f32 %v1706, %v1709
    %vm1711 = vweird.f32 %v1704
    %vm1712 = vweird.f32 %v1706
    %vm1713 = vmor %vm1711, %vm1712
    %v1714 = vsel %vm1713, %v1706, %v1710
    %v1715 = vand.u32 2147483647, %v1704
    %vm1716 = vcmp.eq.f32.partialorder %v1715, 8.507059e+37
    %v1717 = vand.u32 %v1704, 2147483648
    %v1718 = vor.u32 1.1754944e-38, %v1717
    %v1719 = vsel %vm1716, %v1718, %v1714
    %v1720 = vmul.f32 1.0, %v1719
    %v1721 = vrcp.pop %v1705
    %v1722 = vmul.f32 %v1705, %v1721
    %v1723 = vsub.f32 1.0, %v1722
    %v1724 = vmul.f32 %v1721, %v1723
    %v1725 = vadd.f32 %v1721, %v1724
    %vm1726 = vweird.f32 %v1705
    %vm1727 = vweird.f32 %v1721
    %vm1728 = vmor %vm1726, %vm1727
    %v1729 = vsel %vm1728, %v1721, %v1725
    %v1730 = vand.u32 2147483647, %v1705
    %vm1731 = vcmp.eq.f32.partialorder %v1730, 8.507059e+37
    %v1732 = vand.u32 %v1705, 2147483648
    %v1733 = vor.u32 1.1754944e-38, %v1732
    %v1734 = vsel %vm1731, %v1733, %v1729
    %v1735 = vmul.f32 1.0, %v1734
    %v1736 = vtanh.pop %v1654
    %v1737 = vtanh.pop %v1658
    %v1738 = vxor.u32 %v1655, 2147483648
    %v1739 = vxor.u32 %v1659, 2147483648
    %v1740 = vmul.f32 %v1738, 1.442695
    %v1741 = vpow.pop %v1740
    %v1742 = vmul.f32 %v1739, 1.442695
    %v1743 = vpow.pop %v1742
    %v1744 = vadd.f32 %v1741, 1.0
    %v1745 = vadd.f32 %v1743, 1.0
    %v1746 = vrcp.pop %v1744
    %v1747 = vmul.f32 %v1744, %v1746
    %v1748 = vsub.f32 1.0, %v1747
    %v1749 = vmul.f32 %v1746, %v1748
    %v1750 = vadd.f32 %v1746, %v1749
    %vm1751 = vweird.f32 %v1744
    %vm1752 = vweird.f32 %v1746
    %vm1753 = vmor %vm1751, %vm1752
    %v1754 = vsel %vm1753, %v1746, %v1750
    %v1755 = vand.u32 2147483647, %v1744
    %vm1756 = vcmp.eq.f32.partialorder %v1755, 8.507059e+37
    %v1757 = vand.u32 %v1744, 2147483648
    %v1758 = vor.u32 1.1754944e-38, %v1757
    %v1759 = vsel %vm1756, %v1758, %v1754
    %v1760 = vmul.f32 1.0, %v1759
    %v1761 = vrcp.pop %v1745
    %v1762 = vmul.f32 %v1745, %v1761
    %v1763 = vsub.f32 1.0, %v1762
    %v1764 = vmul.f32 %v1761, %v1763
    %v1765 = vadd.f32 %v1761, %v1764
    %vm1766 = vweird.f32 %v1745
    %vm1767 = vweird.f32 %v1761
    %vm1768 = vmor %vm1766, %vm1767
    %v1769 = vsel %vm1768, %v1761, %v1765
    %v1770 = vand.u32 2147483647, %v1745
    %vm1771 = vcmp.eq.f32.partialorder %v1770, 8.507059e+37
    %v1772 = vand.u32 %v1745, 2147483648
    %v1773 = vor.u32 1.1754944e-38, %v1772
    %v1774 = vsel %vm1771, %v1773, %v1769
    %v1775 = vmul.f32 1.0, %v1774
    %v1778 = vrot.slane %v1561, 7
    %v1779 = vrot.slane %v1562, 7
    %v1782 = vmul.f32 %v1720, %v1778
    %v1783 = vmul.f32 %v1735, %v1779
    %v1784 = vmul.f32 %v1682, %v1736
    %v1785 = vmul.f32 %v1697, %v1737
    %v1786 = vadd.f32 %v1782, %v1784
    %v1787 = vadd.f32 %v1783, %v1785
    %v1788 = vtanh.pop %v1786
    %v1789 = vtanh.pop %v1787
    %v1790 = vmul.f32 %v1760, %v1788
    %v1791 = vmul.f32 %v1775, %v1789
    %1792 = vst [vmem:[#allocation2] sm:$0x20] %v1790
    %1793 = vst [vmem:[#allocation2 + $0x8] sm:$0x20] %v1791
    %v1794 = vpack.c.bf16 %v1790, %v1790
    %v1795 = vpack.c.bf16 %v1791, %v1791
    %v1798 = vunpack.c.l.b16 %v1794
    %v1799 = vunpack.c.l.b16 %v1795
    %v1800 = vrot.slane %v1798, 5
    %v1801 = vrot.slane %v1799, 4
    %v1802 = vsel %vm681, %v1801, %v1800
    %v1803 = vpack.c.b16 %v1802, %v1802
    %1805 = vmatpush.bf16.msra.mxu0 %v430
    %1806 = vmatpush.bf16.msra.mxu0 %v426
    %1807 = vmatpush.bf16.msra.mxu0 %v422
    %1808 = vmatpush.bf16.msra.mxu0 %v418
    %1809 = vmatpush.bf16.msra.mxu0 %v414
    %1810 = vmatpush.bf16.msra.mxu0 %v410
    %1811 = vmatpush.bf16.msra.mxu0 %v406
    %1812 = vmatpush.bf16.msra.mxu0 %v402
    %1813 = vmatmul.bf16.gmra.mxu0 %v1803
    %v1814 = vpop.f32.mrf.mxu0
    %v1815 = vadd.f32 0.0, %v1814
    %v1816 = vpop.f32.mrf.mxu0
    %1817 = vdwg.mxu0
    %1818 = vmatpush.bf16.msra.mxu0 %v431
    %1819 = vmatpush.bf16.msra.mxu0 %v427
    %1820 = vmatpush.bf16.msra.mxu0 %v423
    %1821 = vmatpush.bf16.msra.mxu0 %v419
    %1822 = vmatpush.bf16.msra.mxu0 %v415
    %1823 = vmatpush.bf16.msra.mxu0 %v411
    %1824 = vmatpush.bf16.msra.mxu0 %v407
    %1825 = vmatpush.bf16.msra.mxu0 %v403
    %1826 = vmatmul.bf16.gmra.mxu0 %v1803
    %v1827 = vpop.f32.mrf.mxu0
    %v1828 = vadd.f32 0.0, %v1827
    %v1829 = vpop.f32.mrf.mxu0
    %1830 = vdwg.mxu0
    %1831 = vmatpush.bf16.msra.mxu0 %v432
    %1832 = vmatpush.bf16.msra.mxu0 %v428
    %1833 = vmatpush.bf16.msra.mxu0 %v424
    %1834 = vmatpush.bf16.msra.mxu0 %v420
    %1835 = vmatpush.bf16.msra.mxu0 %v416
    %1836 = vmatpush.bf16.msra.mxu0 %v412
    %1837 = vmatpush.bf16.msra.mxu0 %v408
    %1838 = vmatpush.bf16.msra.mxu0 %v404
    %1839 = vmatmul.bf16.gmra.mxu0 %v1803
    %v1840 = vpop.f32.mrf.mxu0
    %v1841 = vadd.f32 0.0, %v1840
    %v1842 = vpop.f32.mrf.mxu0
    %1843 = vdwg.mxu0
    %1844 = vmatpush.bf16.msra.mxu0 %v433
    %1845 = vmatpush.bf16.msra.mxu0 %v429
    %1846 = vmatpush.bf16.msra.mxu0 %v425
    %1847 = vmatpush.bf16.msra.mxu0 %v421
    %1848 = vmatpush.bf16.msra.mxu0 %v417
    %1849 = vmatpush.bf16.msra.mxu0 %v413
    %1850 = vmatpush.bf16.msra.mxu0 %v409
    %1851 = vmatpush.bf16.msra.mxu0 %v405
    %1852 = vmatmul.bf16.gmra.mxu0 %v1803
    %v1853 = vpop.f32.mrf.mxu0
    %v1854 = vadd.f32 0.0, %v1853
    %v1855 = vpop.f32.mrf.mxu0
    %1856 = vdwg.mxu0
    %v1861 = vrot.slane %v1815, 2
    %v1862 = vrot.slane %v1828, 2
    %v1863 = vrot.slane %v1841, 2
    %v1864 = vrot.slane %v1854, 2
    %v1865 = vrot.slane %v1815, 3
    %v1866 = vrot.slane %v1828, 3
    %v1867 = vrot.slane %v1841, 3
    %v1868 = vrot.slane %v1854, 3
    %v1877 = vadd.f32 %v257, %v1861
    %v1878 = vadd.f32 %v271, %v1862
    %v1879 = vadd.f32 %v285, %v1863
    %v1880 = vadd.f32 %v299, %v1864
    %v1881 = vadd.f32 %v259, %v1865
    %v1882 = vadd.f32 %v273, %v1866
    %v1883 = vadd.f32 %v287, %v1867
    %v1884 = vadd.f32 %v301, %v1868
    %v1885 = vxor.u32 %v1877, 2147483648
    %v1886 = vxor.u32 %v1881, 2147483648
    %v1887 = vmul.f32 %v1885, 1.442695
    %v1888 = vpow.pop %v1887
    %v1889 = vmul.f32 %v1886, 1.442695
    %v1890 = vpow.pop %v1889
    %v1891 = vadd.f32 %v1888, 1.0
    %v1892 = vadd.f32 %v1890, 1.0
    %v1893 = vrcp.pop %v1891
    %v1894 = vmul.f32 %v1891, %v1893
    %v1895 = vsub.f32 1.0, %v1894
    %v1896 = vmul.f32 %v1893, %v1895
    %v1897 = vadd.f32 %v1893, %v1896
    %vm1898 = vweird.f32 %v1891
    %vm1899 = vweird.f32 %v1893
    %vm1900 = vmor %vm1898, %vm1899
    %v1901 = vsel %vm1900, %v1893, %v1897
    %v1902 = vand.u32 2147483647, %v1891
    %vm1903 = vcmp.eq.f32.partialorder %v1902, 8.507059e+37
    %v1904 = vand.u32 %v1891, 2147483648
    %v1905 = vor.u32 1.1754944e-38, %v1904
    %v1906 = vsel %vm1903, %v1905, %v1901
    %v1907 = vmul.f32 1.0, %v1906
    %v1908 = vrcp.pop %v1892
    %v1909 = vmul.f32 %v1892, %v1908
    %v1910 = vsub.f32 1.0, %v1909
    %v1911 = vmul.f32 %v1908, %v1910
    %v1912 = vadd.f32 %v1908, %v1911
    %vm1913 = vweird.f32 %v1892
    %vm1914 = vweird.f32 %v1908
    %vm1915 = vmor %vm1913, %vm1914
    %v1916 = vsel %vm1915, %v1908, %v1912
    %v1917 = vand.u32 2147483647, %v1892
    %vm1918 = vcmp.eq.f32.partialorder %v1917, 8.507059e+37
    %v1919 = vand.u32 %v1892, 2147483648
    %v1920 = vor.u32 1.1754944e-38, %v1919
    %v1921 = vsel %vm1918, %v1920, %v1916
    %v1922 = vmul.f32 1.0, %v1921
    %v1923 = vxor.u32 %v1878, 2147483648
    %v1924 = vxor.u32 %v1882, 2147483648
    %v1925 = vmul.f32 %v1923, 1.442695
    %v1926 = vpow.pop %v1925
    %v1927 = vmul.f32 %v1924, 1.442695
    %v1928 = vpow.pop %v1927
    %v1929 = vadd.f32 %v1926, 1.0
    %v1930 = vadd.f32 %v1928, 1.0
    %v1931 = vrcp.pop %v1929
    %v1932 = vmul.f32 %v1929, %v1931
    %v1933 = vsub.f32 1.0, %v1932
    %v1934 = vmul.f32 %v1931, %v1933
    %v1935 = vadd.f32 %v1931, %v1934
    %vm1936 = vweird.f32 %v1929
    %vm1937 = vweird.f32 %v1931
    %vm1938 = vmor %vm1936, %vm1937
    %v1939 = vsel %vm1938, %v1931, %v1935
    %v1940 = vand.u32 2147483647, %v1929
    %vm1941 = vcmp.eq.f32.partialorder %v1940, 8.507059e+37
    %v1942 = vand.u32 %v1929, 2147483648
    %v1943 = vor.u32 1.1754944e-38, %v1942
    %v1944 = vsel %vm1941, %v1943, %v1939
    %v1945 = vmul.f32 1.0, %v1944
    %v1946 = vrcp.pop %v1930
    %v1947 = vmul.f32 %v1930, %v1946
    %v1948 = vsub.f32 1.0, %v1947
    %v1949 = vmul.f32 %v1946, %v1948
    %v1950 = vadd.f32 %v1946, %v1949
    %vm1951 = vweird.f32 %v1930
    %vm1952 = vweird.f32 %v1946
    %vm1953 = vmor %vm1951, %vm1952
    %v1954 = vsel %vm1953, %v1946, %v1950
    %v1955 = vand.u32 2147483647, %v1930
    %vm1956 = vcmp.eq.f32.partialorder %v1955, 8.507059e+37
    %v1957 = vand.u32 %v1930, 2147483648
    %v1958 = vor.u32 1.1754944e-38, %v1957
    %v1959 = vsel %vm1956, %v1958, %v1954
    %v1960 = vmul.f32 1.0, %v1959
    %v1961 = vtanh.pop %v1879
    %v1962 = vtanh.pop %v1883
    %v1963 = vxor.u32 %v1880, 2147483648
    %v1964 = vxor.u32 %v1884, 2147483648
    %v1965 = vmul.f32 %v1963, 1.442695
    %v1966 = vpow.pop %v1965
    %v1967 = vmul.f32 %v1964, 1.442695
    %v1968 = vpow.pop %v1967
    %v1969 = vadd.f32 %v1966, 1.0
    %v1970 = vadd.f32 %v1968, 1.0
    %v1971 = vrcp.pop %v1969
    %v1972 = vmul.f32 %v1969, %v1971
    %v1973 = vsub.f32 1.0, %v1972
    %v1974 = vmul.f32 %v1971, %v1973
    %v1975 = vadd.f32 %v1971, %v1974
    %vm1976 = vweird.f32 %v1969
    %vm1977 = vweird.f32 %v1971
    %vm1978 = vmor %vm1976, %vm1977
    %v1979 = vsel %vm1978, %v1971, %v1975
    %v1980 = vand.u32 2147483647, %v1969
    %vm1981 = vcmp.eq.f32.partialorder %v1980, 8.507059e+37
    %v1982 = vand.u32 %v1969, 2147483648
    %v1983 = vor.u32 1.1754944e-38, %v1982
    %v1984 = vsel %vm1981, %v1983, %v1979
    %v1985 = vmul.f32 1.0, %v1984
    %v1986 = vrcp.pop %v1970
    %v1987 = vmul.f32 %v1970, %v1986
    %v1988 = vsub.f32 1.0, %v1987
    %v1989 = vmul.f32 %v1986, %v1988
    %v1990 = vadd.f32 %v1986, %v1989
    %vm1991 = vweird.f32 %v1970
    %vm1992 = vweird.f32 %v1986
    %vm1993 = vmor %vm1991, %vm1992
    %v1994 = vsel %vm1993, %v1986, %v1990
    %v1995 = vand.u32 2147483647, %v1970
    %vm1996 = vcmp.eq.f32.partialorder %v1995, 8.507059e+37
    %v1997 = vand.u32 %v1970, 2147483648
    %v1998 = vor.u32 1.1754944e-38, %v1997
    %v1999 = vsel %vm1996, %v1998, %v1994
    %v2000 = vmul.f32 1.0, %v1999
    %v2003 = vrot.slane %v1786, 7
    %v2004 = vrot.slane %v1787, 7
    %v2007 = vmul.f32 %v1945, %v2003
    %v2008 = vmul.f32 %v1960, %v2004
    %v2009 = vmul.f32 %v1907, %v1961
    %v2010 = vmul.f32 %v1922, %v1962
    %v2011 = vadd.f32 %v2007, %v2009
    %v2012 = vadd.f32 %v2008, %v2010
    %v2013 = vtanh.pop %v2011
    %v2014 = vtanh.pop %v2012
    %v2015 = vmul.f32 %v1985, %v2013
    %v2016 = vmul.f32 %v2000, %v2014
    %2017 = vst [vmem:[#allocation2] sm:$0x40] %v2015
    %2018 = vst [vmem:[#allocation2 + $0x8] sm:$0x40] %v2016
    %v2019 = vpack.c.bf16 %v2015, %v2015
    %v2020 = vpack.c.bf16 %v2016, %v2016
    %v2023 = vunpack.c.l.b16 %v2019
    %v2024 = vunpack.c.l.b16 %v2020
    %v2025 = vrot.slane %v2023, 6
    %v2026 = vrot.slane %v2024, 5
    %v2027 = vsel %vm681, %v2026, %v2025
    %v2028 = vpack.c.b16 %v2027, %v2027
    %2030 = vmatpush.bf16.msra.mxu0 %v430
    %2031 = vmatpush.bf16.msra.mxu0 %v426
    %2032 = vmatpush.bf16.msra.mxu0 %v422
    %2033 = vmatpush.bf16.msra.mxu0 %v418
    %2034 = vmatpush.bf16.msra.mxu0 %v414
    %2035 = vmatpush.bf16.msra.mxu0 %v410
    %2036 = vmatpush.bf16.msra.mxu0 %v406
    %2037 = vmatpush.bf16.msra.mxu0 %v402
    %2038 = vmatmul.bf16.gmra.mxu0 %v2028
    %v2039 = vpop.f32.mrf.mxu0
    %v2040 = vadd.f32 0.0, %v2039
    %v2041 = vpop.f32.mrf.mxu0
    %2042 = vdwg.mxu0
    %2043 = vmatpush.bf16.msra.mxu0 %v431
    %2044 = vmatpush.bf16.msra.mxu0 %v427
    %2045 = vmatpush.bf16.msra.mxu0 %v423
    %2046 = vmatpush.bf16.msra.mxu0 %v419
    %2047 = vmatpush.bf16.msra.mxu0 %v415
    %2048 = vmatpush.bf16.msra.mxu0 %v411
    %2049 = vmatpush.bf16.msra.mxu0 %v407
    %2050 = vmatpush.bf16.msra.mxu0 %v403
    %2051 = vmatmul.bf16.gmra.mxu0 %v2028
    %v2052 = vpop.f32.mrf.mxu0
    %v2053 = vadd.f32 0.0, %v2052
    %v2054 = vpop.f32.mrf.mxu0
    %2055 = vdwg.mxu0
    %2056 = vmatpush.bf16.msra.mxu0 %v432
    %2057 = vmatpush.bf16.msra.mxu0 %v428
    %2058 = vmatpush.bf16.msra.mxu0 %v424
    %2059 = vmatpush.bf16.msra.mxu0 %v420
    %2060 = vmatpush.bf16.msra.mxu0 %v416
    %2061 = vmatpush.bf16.msra.mxu0 %v412
    %2062 = vmatpush.bf16.msra.mxu0 %v408
    %2063 = vmatpush.bf16.msra.mxu0 %v404
    %2064 = vmatmul.bf16.gmra.mxu0 %v2028
    %v2065 = vpop.f32.mrf.mxu0
    %v2066 = vadd.f32 0.0, %v2065
    %v2067 = vpop.f32.mrf.mxu0
    %2068 = vdwg.mxu0
    %2069 = vmatpush.bf16.msra.mxu0 %v433
    %2070 = vmatpush.bf16.msra.mxu0 %v429
    %2071 = vmatpush.bf16.msra.mxu0 %v425
    %2072 = vmatpush.bf16.msra.mxu0 %v421
    %2073 = vmatpush.bf16.msra.mxu0 %v417
    %2074 = vmatpush.bf16.msra.mxu0 %v413
    %2075 = vmatpush.bf16.msra.mxu0 %v409
    %2076 = vmatpush.bf16.msra.mxu0 %v405
    %2077 = vmatmul.bf16.gmra.mxu0 %v2028
    %v2078 = vpop.f32.mrf.mxu0
    %v2079 = vadd.f32 0.0, %v2078
    %v2080 = vpop.f32.mrf.mxu0
    %2081 = vdwg.mxu0
    %v2086 = vrot.slane %v2040, 1
    %v2087 = vrot.slane %v2053, 1
    %v2088 = vrot.slane %v2066, 1
    %v2089 = vrot.slane %v2079, 1
    %v2090 = vrot.slane %v2040, 2
    %v2091 = vrot.slane %v2053, 2
    %v2092 = vrot.slane %v2066, 2
    %v2093 = vrot.slane %v2079, 2
    %v2102 = vadd.f32 %v257, %v2086
    %v2103 = vadd.f32 %v271, %v2087
    %v2104 = vadd.f32 %v285, %v2088
    %v2105 = vadd.f32 %v299, %v2089
    %v2106 = vadd.f32 %v259, %v2090
    %v2107 = vadd.f32 %v273, %v2091
    %v2108 = vadd.f32 %v287, %v2092
    %v2109 = vadd.f32 %v301, %v2093
    %v2110 = vxor.u32 %v2102, 2147483648
    %v2111 = vxor.u32 %v2106, 2147483648
    %v2112 = vmul.f32 %v2110, 1.442695
    %v2113 = vpow.pop %v2112
    %v2114 = vmul.f32 %v2111, 1.442695
    %v2115 = vpow.pop %v2114
    %v2116 = vadd.f32 %v2113, 1.0
    %v2117 = vadd.f32 %v2115, 1.0
    %v2118 = vrcp.pop %v2116
    %v2119 = vmul.f32 %v2116, %v2118
    %v2120 = vsub.f32 1.0, %v2119
    %v2121 = vmul.f32 %v2118, %v2120
    %v2122 = vadd.f32 %v2118, %v2121
    %vm2123 = vweird.f32 %v2116
    %vm2124 = vweird.f32 %v2118
    %vm2125 = vmor %vm2123, %vm2124
    %v2126 = vsel %vm2125, %v2118, %v2122
    %v2127 = vand.u32 2147483647, %v2116
    %vm2128 = vcmp.eq.f32.partialorder %v2127, 8.507059e+37
    %v2129 = vand.u32 %v2116, 2147483648
    %v2130 = vor.u32 1.1754944e-38, %v2129
    %v2131 = vsel %vm2128, %v2130, %v2126
    %v2132 = vmul.f32 1.0, %v2131
    %v2133 = vrcp.pop %v2117
    %v2134 = vmul.f32 %v2117, %v2133
    %v2135 = vsub.f32 1.0, %v2134
    %v2136 = vmul.f32 %v2133, %v2135
    %v2137 = vadd.f32 %v2133, %v2136
    %vm2138 = vweird.f32 %v2117
    %vm2139 = vweird.f32 %v2133
    %vm2140 = vmor %vm2138, %vm2139
    %v2141 = vsel %vm2140, %v2133, %v2137
    %v2142 = vand.u32 2147483647, %v2117
    %vm2143 = vcmp.eq.f32.partialorder %v2142, 8.507059e+37
    %v2144 = vand.u32 %v2117, 2147483648
    %v2145 = vor.u32 1.1754944e-38, %v2144
    %v2146 = vsel %vm2143, %v2145, %v2141
    %v2147 = vmul.f32 1.0, %v2146
    %v2148 = vxor.u32 %v2103, 2147483648
    %v2149 = vxor.u32 %v2107, 2147483648
    %v2150 = vmul.f32 %v2148, 1.442695
    %v2151 = vpow.pop %v2150
    %v2152 = vmul.f32 %v2149, 1.442695
    %v2153 = vpow.pop %v2152
    %v2154 = vadd.f32 %v2151, 1.0
    %v2155 = vadd.f32 %v2153, 1.0
    %v2156 = vrcp.pop %v2154
    %v2157 = vmul.f32 %v2154, %v2156
    %v2158 = vsub.f32 1.0, %v2157
    %v2159 = vmul.f32 %v2156, %v2158
    %v2160 = vadd.f32 %v2156, %v2159
    %vm2161 = vweird.f32 %v2154
    %vm2162 = vweird.f32 %v2156
    %vm2163 = vmor %vm2161, %vm2162
    %v2164 = vsel %vm2163, %v2156, %v2160
    %v2165 = vand.u32 2147483647, %v2154
    %vm2166 = vcmp.eq.f32.partialorder %v2165, 8.507059e+37
    %v2167 = vand.u32 %v2154, 2147483648
    %v2168 = vor.u32 1.1754944e-38, %v2167
    %v2169 = vsel %vm2166, %v2168, %v2164
    %v2170 = vmul.f32 1.0, %v2169
    %v2171 = vrcp.pop %v2155
    %v2172 = vmul.f32 %v2155, %v2171
    %v2173 = vsub.f32 1.0, %v2172
    %v2174 = vmul.f32 %v2171, %v2173
    %v2175 = vadd.f32 %v2171, %v2174
    %vm2176 = vweird.f32 %v2155
    %vm2177 = vweird.f32 %v2171
    %vm2178 = vmor %vm2176, %vm2177
    %v2179 = vsel %vm2178, %v2171, %v2175
    %v2180 = vand.u32 2147483647, %v2155
    %vm2181 = vcmp.eq.f32.partialorder %v2180, 8.507059e+37
    %v2182 = vand.u32 %v2155, 2147483648
    %v2183 = vor.u32 1.1754944e-38, %v2182
    %v2184 = vsel %vm2181, %v2183, %v2179
    %v2185 = vmul.f32 1.0, %v2184
    %v2186 = vtanh.pop %v2104
    %v2187 = vtanh.pop %v2108
    %v2188 = vxor.u32 %v2105, 2147483648
    %v2189 = vxor.u32 %v2109, 2147483648
    %v2190 = vmul.f32 %v2188, 1.442695
    %v2191 = vpow.pop %v2190
    %v2192 = vmul.f32 %v2189, 1.442695
    %v2193 = vpow.pop %v2192
    %v2194 = vadd.f32 %v2191, 1.0
    %v2195 = vadd.f32 %v2193, 1.0
    %v2196 = vrcp.pop %v2194
    %v2197 = vmul.f32 %v2194, %v2196
    %v2198 = vsub.f32 1.0, %v2197
    %v2199 = vmul.f32 %v2196, %v2198
    %v2200 = vadd.f32 %v2196, %v2199
    %vm2201 = vweird.f32 %v2194
    %vm2202 = vweird.f32 %v2196
    %vm2203 = vmor %vm2201, %vm2202
    %v2204 = vsel %vm2203, %v2196, %v2200
    %v2205 = vand.u32 2147483647, %v2194
    %vm2206 = vcmp.eq.f32.partialorder %v2205, 8.507059e+37
    %v2207 = vand.u32 %v2194, 2147483648
    %v2208 = vor.u32 1.1754944e-38, %v2207
    %v2209 = vsel %vm2206, %v2208, %v2204
    %v2210 = vmul.f32 1.0, %v2209
    %v2211 = vrcp.pop %v2195
    %v2212 = vmul.f32 %v2195, %v2211
    %v2213 = vsub.f32 1.0, %v2212
    %v2214 = vmul.f32 %v2211, %v2213
    %v2215 = vadd.f32 %v2211, %v2214
    %vm2216 = vweird.f32 %v2195
    %vm2217 = vweird.f32 %v2211
    %vm2218 = vmor %vm2216, %vm2217
    %v2219 = vsel %vm2218, %v2211, %v2215
    %v2220 = vand.u32 2147483647, %v2195
    %vm2221 = vcmp.eq.f32.partialorder %v2220, 8.507059e+37
    %v2222 = vand.u32 %v2195, 2147483648
    %v2223 = vor.u32 1.1754944e-38, %v2222
    %v2224 = vsel %vm2221, %v2223, %v2219
    %v2225 = vmul.f32 1.0, %v2224
    %v2228 = vrot.slane %v2011, 7
    %v2229 = vrot.slane %v2012, 7
    %v2232 = vmul.f32 %v2170, %v2228
    %v2233 = vmul.f32 %v2185, %v2229
    %v2234 = vmul.f32 %v2132, %v2186
    %v2235 = vmul.f32 %v2147, %v2187
    %v2236 = vadd.f32 %v2232, %v2234
    %v2237 = vadd.f32 %v2233, %v2235
    %v2238 = vtanh.pop %v2236
    %v2239 = vtanh.pop %v2237
    %v2240 = vmul.f32 %v2210, %v2238
    %v2241 = vmul.f32 %v2225, %v2239
    %2242 = vst [vmem:[#allocation2] sm:$0x80] %v2240
    %2243 = vst [vmem:[#allocation2 + $0x8] sm:$0x80] %v2241
    %v2246 = vrot.slane %v2241, 7
    %2249 = vst [vmem:[#allocation13 - $0x7] sm:$0x80] %v2240
    %2250 = vst [vmem:[#allocation13 + $0x1] sm:$0x1] %v2246
    %v2253 = vrot.slane %v2237, 7
    %2256 = vst [vmem:[#allocation15 - $0x7] sm:$0x80] %v2236
    %2257 = vst [vmem:[#allocation15 + $0x1] sm:$0x1] %v2253
    %v2258 = vld [vmem:[#allocation2] sm:$0xff]
    %v2259 = vld [vmem:[#allocation2 + $0x8] sm:$0xff]
    %v2260 = vpack.c.bf16 %v2259, %v2258
    %v2261 = vld [vmem:[#allocation8] sm:$0xff]
    %v2262 = vld [vmem:[#allocation8 + $0x8] sm:$0xff]
    %v2263 = vld [vmem:[#allocation8 + $0x10] sm:$0xff]
    %v2264 = vld [vmem:[#allocation8 + $0x18] sm:$0xff]
    %v2265 = vld [vmem:[#allocation8 + $0x20] sm:$0xff]
    %v2266 = vld [vmem:[#allocation8 + $0x28] sm:$0xff]
    %v2267 = vld [vmem:[#allocation8 + $0x30] sm:$0xff]
    %v2268 = vld [vmem:[#allocation8 + $0x38] sm:$0xff]
    %v2269 = vld [vmem:[#allocation8 + $0x40] sm:$0xff]
    %v2270 = vld [vmem:[#allocation8 + $0x48] sm:$0xff]
    %v2271 = vld [vmem:[#allocation8 + $0x50] sm:$0xff]
    %v2272 = vld [vmem:[#allocation8 + $0x58] sm:$0xff]
    %v2273 = vld [vmem:[#allocation8 + $0x60] sm:$0xff]
    %v2274 = vld [vmem:[#allocation8 + $0x68] sm:$0xff]
    %v2275 = vld [vmem:[#allocation8 + $0x70] sm:$0xff]
    %v2276 = vld [vmem:[#allocation8 + $0x78] sm:$0xff]
    %v2277 = vld [vmem:[#allocation8 + $0x80] sm:$0xff]
    %v2278 = vld [vmem:[#allocation8 + $0x88] sm:$0xff]
    %v2279 = vld [vmem:[#allocation8 + $0x90] sm:$0xff]
    %v2280 = vld [vmem:[#allocation8 + $0x98] sm:$0xff]
    %v2281 = vld [vmem:[#allocation8 + $0xa0] sm:$0xff]
    %v2282 = vld [vmem:[#allocation8 + $0xa8] sm:$0xff]
    %v2283 = vld [vmem:[#allocation8 + $0xb0] sm:$0xff]
    %v2284 = vld [vmem:[#allocation8 + $0xb8] sm:$0xff]
    %v2285 = vld [vmem:[#allocation8 + $0xc0] sm:$0xff]
    %v2286 = vld [vmem:[#allocation8 + $0xc8] sm:$0xff]
    %v2287 = vld [vmem:[#allocation8 + $0xd0] sm:$0xff]
    %v2288 = vld [vmem:[#allocation8 + $0xd8] sm:$0xff]
    %v2289 = vld [vmem:[#allocation8 + $0xe0] sm:$0xff]
    %v2290 = vld [vmem:[#allocation8 + $0xe8] sm:$0xff]
    %v2291 = vld [vmem:[#allocation8 + $0xf0] sm:$0xff]
    %v2292 = vld [vmem:[#allocation8 + $0xf8] sm:$0xff]
    %v2293 = vld [vmem:[#allocation9] sm:$0xff]
    %v2294 = vld [vmem:[#allocation9 + $0x8] sm:$0xff]
    %v2295 = vld [vmem:[#allocation9 + $0x10] sm:$0xff]
    %v2296 = vld [vmem:[#allocation9 + $0x18] sm:$0xff]
    %v2297 = vld [vmem:[#allocation9 + $0x20] sm:$0xff]
    %v2298 = vld [vmem:[#allocation9 + $0x28] sm:$0xff]
    %v2299 = vld [vmem:[#allocation9 + $0x30] sm:$0xff]
    %v2300 = vld [vmem:[#allocation9 + $0x38] sm:$0xff]
    %v2301 = vld [vmem:[#allocation9 + $0x40] sm:$0xff]
    %v2302 = vld [vmem:[#allocation9 + $0x48] sm:$0xff]
    %v2303 = vld [vmem:[#allocation9 + $0x50] sm:$0xff]
    %v2304 = vld [vmem:[#allocation9 + $0x58] sm:$0xff]
    %v2305 = vld [vmem:[#allocation9 + $0x60] sm:$0xff]
    %v2306 = vld [vmem:[#allocation9 + $0x68] sm:$0xff]
    %v2307 = vld [vmem:[#allocation9 + $0x70] sm:$0xff]
    %v2308 = vld [vmem:[#allocation9 + $0x78] sm:$0xff]
    %v2309 = vld [vmem:[#allocation9 + $0x80] sm:$0xff]
    %v2310 = vld [vmem:[#allocation9 + $0x88] sm:$0xff]
    %v2311 = vld [vmem:[#allocation9 + $0x90] sm:$0xff]
    %v2312 = vld [vmem:[#allocation9 + $0x98] sm:$0xff]
    %v2313 = vld [vmem:[#allocation9 + $0xa0] sm:$0xff]
    %v2314 = vld [vmem:[#allocation9 + $0xa8] sm:$0xff]
    %v2315 = vld [vmem:[#allocation9 + $0xb0] sm:$0xff]
    %v2316 = vld [vmem:[#allocation9 + $0xb8] sm:$0xff]
    %v2317 = vld [vmem:[#allocation9 + $0xc0] sm:$0xff]
    %v2318 = vld [vmem:[#allocation9 + $0xc8] sm:$0xff]
    %v2319 = vld [vmem:[#allocation9 + $0xd0] sm:$0xff]
    %v2320 = vld [vmem:[#allocation9 + $0xd8] sm:$0xff]
    %v2321 = vld [vmem:[#allocation9 + $0xe0] sm:$0xff]
    %v2322 = vld [vmem:[#allocation9 + $0xe8] sm:$0xff]
    %v2323 = vld [vmem:[#allocation9 + $0xf0] sm:$0xff]
    %v2324 = vld [vmem:[#allocation9 + $0xf8] sm:$0xff]
    %v2325 = vld [vmem:[%s8] sm:$0xf]
    %v2327 = vperm.slane %v2325, 0
    %v2328 = vperm.slane %v2325, 1
    %v2329 = vperm.slane %v2325, 2
    %v2330 = vperm.slane %v2325, 3
    %v2367 = vunpack.c.l.b16 %v2261
    %v2368 = vunpack.c.h.b16 %v2261
    %v2369 = vunpack.c.l.b16 %v2262
    %v2370 = vunpack.c.h.b16 %v2262
    %v2371 = vunpack.c.l.b16 %v2263
    %v2372 = vunpack.c.h.b16 %v2263
    %v2373 = vunpack.c.l.b16 %v2264
    %v2374 = vunpack.c.h.b16 %v2264
    %v2375 = vunpack.c.l.b16 %v2265
    %v2376 = vunpack.c.h.b16 %v2265
    %v2377 = vunpack.c.l.b16 %v2266
    %v2378 = vunpack.c.h.b16 %v2266
    %v2379 = vunpack.c.l.b16 %v2267
    %v2380 = vunpack.c.h.b16 %v2267
    %v2381 = vunpack.c.l.b16 %v2268
    %v2382 = vunpack.c.h.b16 %v2268
    %v2383 = vunpack.c.l.b16 %v2269
    %v2384 = vunpack.c.h.b16 %v2269
    %v2385 = vunpack.c.l.b16 %v2270
    %v2386 = vunpack.c.h.b16 %v2270
    %v2387 = vunpack.c.l.b16 %v2271
    %v2388 = vunpack.c.h.b16 %v2271
    %v2389 = vunpack.c.l.b16 %v2272
    %v2390 = vunpack.c.h.b16 %v2272
    %v2391 = vunpack.c.l.b16 %v2273
    %v2392 = vunpack.c.h.b16 %v2273
    %v2393 = vunpack.c.l.b16 %v2274
    %v2394 = vunpack.c.h.b16 %v2274
    %v2395 = vunpack.c.l.b16 %v2275
    %v2396 = vunpack.c.h.b16 %v2275
    %v2397 = vunpack.c.l.b16 %v2276
    %v2398 = vunpack.c.h.b16 %v2276
    %v2399 = vunpack.c.l.b16 %v2277
    %v2400 = vunpack.c.h.b16 %v2277
    %v2401 = vunpack.c.l.b16 %v2278
    %v2402 = vunpack.c.h.b16 %v2278
    %v2403 = vunpack.c.l.b16 %v2279
    %v2404 = vunpack.c.h.b16 %v2279
    %v2405 = vunpack.c.l.b16 %v2280
    %v2406 = vunpack.c.h.b16 %v2280
    %v2407 = vunpack.c.l.b16 %v2281
    %v2408 = vunpack.c.h.b16 %v2281
    %v2409 = vunpack.c.l.b16 %v2282
    %v2410 = vunpack.c.h.b16 %v2282
    %v2411 = vunpack.c.l.b16 %v2283
    %v2412 = vunpack.c.h.b16 %v2283
    %v2413 = vunpack.c.l.b16 %v2284
    %v2414 = vunpack.c.h.b16 %v2284
    %v2415 = vunpack.c.l.b16 %v2285
    %v2416 = vunpack.c.h.b16 %v2285
    %v2417 = vunpack.c.l.b16 %v2286
    %v2418 = vunpack.c.h.b16 %v2286
    %v2419 = vunpack.c.l.b16 %v2287
    %v2420 = vunpack.c.h.b16 %v2287
    %v2421 = vunpack.c.l.b16 %v2288
    %v2422 = vunpack.c.h.b16 %v2288
    %v2423 = vunpack.c.l.b16 %v2289
    %v2424 = vunpack.c.h.b16 %v2289
    %v2425 = vunpack.c.l.b16 %v2290
    %v2426 = vunpack.c.h.b16 %v2290
    %v2427 = vunpack.c.l.b16 %v2291
    %v2428 = vunpack.c.h.b16 %v2291
    %v2429 = vunpack.c.l.b16 %v2292
    %v2430 = vunpack.c.h.b16 %v2292
    %v2431 = vpack.c.b16 %v2371, %v2367
    %v2432 = vpack.c.b16 %v2372, %v2368
    %v2433 = vpack.c.b16 %v2373, %v2369
    %v2434 = vpack.c.b16 %v2374, %v2370
    %v2435 = vpack.c.b16 %v2379, %v2375
    %v2436 = vpack.c.b16 %v2380, %v2376
    %v2437 = vpack.c.b16 %v2381, %v2377
    %v2438 = vpack.c.b16 %v2382, %v2378
    %v2439 = vpack.c.b16 %v2387, %v2383
    %v2440 = vpack.c.b16 %v2388, %v2384
    %v2441 = vpack.c.b16 %v2389, %v2385
    %v2442 = vpack.c.b16 %v2390, %v2386
    %v2443 = vpack.c.b16 %v2395, %v2391
    %v2444 = vpack.c.b16 %v2396, %v2392
    %v2445 = vpack.c.b16 %v2397, %v2393
    %v2446 = vpack.c.b16 %v2398, %v2394
    %v2447 = vpack.c.b16 %v2403, %v2399
    %v2448 = vpack.c.b16 %v2404, %v2400
    %v2449 = vpack.c.b16 %v2405, %v2401
    %v2450 = vpack.c.b16 %v2406, %v2402
    %v2451 = vpack.c.b16 %v2411, %v2407
    %v2452 = vpack.c.b16 %v2412, %v2408
    %v2453 = vpack.c.b16 %v2413, %v2409
    %v2454 = vpack.c.b16 %v2414, %v2410
    %v2455 = vpack.c.b16 %v2419, %v2415
    %v2456 = vpack.c.b16 %v2420, %v2416
    %v2457 = vpack.c.b16 %v2421, %v2417
    %v2458 = vpack.c.b16 %v2422, %v2418
    %v2459 = vpack.c.b16 %v2427, %v2423
    %v2460 = vpack.c.b16 %v2428, %v2424
    %v2461 = vpack.c.b16 %v2429, %v2425
    %v2462 = vpack.c.b16 %v2430, %v2426
    %2495 = vmatpush.bf16.msra.mxu0 %v2459
    %2496 = vmatpush.bf16.msra.mxu0 %v2455
    %2497 = vmatpush.bf16.msra.mxu0 %v2451
    %2498 = vmatpush.bf16.msra.mxu0 %v2447
    %2499 = vmatpush.bf16.msra.mxu0 %v2443
    %2500 = vmatpush.bf16.msra.mxu0 %v2439
    %2501 = vmatpush.bf16.msra.mxu0 %v2435
    %2502 = vmatpush.bf16.msra.mxu0 %v2431
    %2503 = vmatmul.bf16.gmra.mxu0 %v2260
    %v2504 = vpop.f32.mrf.mxu0
    %v2505 = vadd.f32 %v2327, %v2504
    %v2506 = vpop.f32.mrf.mxu0
    %v2507 = vadd.f32 %v2327, %v2506
    %2508 = vdwg.mxu0
    %2509 = vmatpush.bf16.msra.mxu0 %v2460
    %2510 = vmatpush.bf16.msra.mxu0 %v2456
    %2511 = vmatpush.bf16.msra.mxu0 %v2452
    %2512 = vmatpush.bf16.msra.mxu0 %v2448
    %2513 = vmatpush.bf16.msra.mxu0 %v2444
    %2514 = vmatpush.bf16.msra.mxu0 %v2440
    %2515 = vmatpush.bf16.msra.mxu0 %v2436
    %2516 = vmatpush.bf16.msra.mxu0 %v2432
    %2517 = vmatmul.bf16.gmra.mxu0 %v2260
    %v2518 = vpop.f32.mrf.mxu0
    %v2519 = vadd.f32 %v2328, %v2518
    %v2520 = vpop.f32.mrf.mxu0
    %v2521 = vadd.f32 %v2328, %v2520
    %2522 = vdwg.mxu0
    %2523 = vmatpush.bf16.msra.mxu0 %v2461
    %2524 = vmatpush.bf16.msra.mxu0 %v2457
    %2525 = vmatpush.bf16.msra.mxu0 %v2453
    %2526 = vmatpush.bf16.msra.mxu0 %v2449
    %2527 = vmatpush.bf16.msra.mxu0 %v2445
    %2528 = vmatpush.bf16.msra.mxu0 %v2441
    %2529 = vmatpush.bf16.msra.mxu0 %v2437
    %2530 = vmatpush.bf16.msra.mxu0 %v2433
    %2531 = vmatmul.bf16.gmra.mxu0 %v2260
    %v2532 = vpop.f32.mrf.mxu0
    %v2533 = vadd.f32 %v2329, %v2532
    %v2534 = vpop.f32.mrf.mxu0
    %v2535 = vadd.f32 %v2329, %v2534
    %2536 = vdwg.mxu0
    %2537 = vmatpush.bf16.msra.mxu0 %v2462
    %2538 = vmatpush.bf16.msra.mxu0 %v2458
    %2539 = vmatpush.bf16.msra.mxu0 %v2454
    %2540 = vmatpush.bf16.msra.mxu0 %v2450
    %2541 = vmatpush.bf16.msra.mxu0 %v2446
    %2542 = vmatpush.bf16.msra.mxu0 %v2442
    %2543 = vmatpush.bf16.msra.mxu0 %v2438
    %2544 = vmatpush.bf16.msra.mxu0 %v2434
    %2545 = vmatmul.bf16.gmra.mxu0 %v2260
    %v2546 = vpop.f32.mrf.mxu0
    %v2547 = vadd.f32 %v2330, %v2546
    %v2548 = vpop.f32.mrf.mxu0
    %v2549 = vadd.f32 %v2330, %v2548
    %2550 = vdwg.mxu0
    %s2551 = scalar_lea.vmem %s1, 2
    %v2552 = vld [vmem:[%s2551] sm:$0x3]
    %s2553 = scalar_lea.vmem %s2, 2
    %v2554 = vld [vmem:[%s2553] sm:$0x3]
    %v2555 = vpack.c.bf16 %v2552, %v2552
    %v2588 = vunpack.c.l.b16 %v2293
    %v2589 = vunpack.c.h.b16 %v2293
    %v2590 = vunpack.c.l.b16 %v2294
    %v2591 = vunpack.c.h.b16 %v2294
    %v2592 = vunpack.c.l.b16 %v2295
    %v2593 = vunpack.c.h.b16 %v2295
    %v2594 = vunpack.c.l.b16 %v2296
    %v2595 = vunpack.c.h.b16 %v2296
    %v2596 = vunpack.c.l.b16 %v2297
    %v2597 = vunpack.c.h.b16 %v2297
    %v2598 = vunpack.c.l.b16 %v2298
    %v2599 = vunpack.c.h.b16 %v2298
    %v2600 = vunpack.c.l.b16 %v2299
    %v2601 = vunpack.c.h.b16 %v2299
    %v2602 = vunpack.c.l.b16 %v2300
    %v2603 = vunpack.c.h.b16 %v2300
    %v2604 = vunpack.c.l.b16 %v2301
    %v2605 = vunpack.c.h.b16 %v2301
    %v2606 = vunpack.c.l.b16 %v2302
    %v2607 = vunpack.c.h.b16 %v2302
    %v2608 = vunpack.c.l.b16 %v2303
    %v2609 = vunpack.c.h.b16 %v2303
    %v2610 = vunpack.c.l.b16 %v2304
    %v2611 = vunpack.c.h.b16 %v2304
    %v2612 = vunpack.c.l.b16 %v2305
    %v2613 = vunpack.c.h.b16 %v2305
    %v2614 = vunpack.c.l.b16 %v2306
    %v2615 = vunpack.c.h.b16 %v2306
    %v2616 = vunpack.c.l.b16 %v2307
    %v2617 = vunpack.c.h.b16 %v2307
    %v2618 = vunpack.c.l.b16 %v2308
    %v2619 = vunpack.c.h.b16 %v2308
    %v2620 = vunpack.c.l.b16 %v2309
    %v2621 = vunpack.c.h.b16 %v2309
    %v2622 = vunpack.c.l.b16 %v2310
    %v2623 = vunpack.c.h.b16 %v2310
    %v2624 = vunpack.c.l.b16 %v2311
    %v2625 = vunpack.c.h.b16 %v2311
    %v2626 = vunpack.c.l.b16 %v2312
    %v2627 = vunpack.c.h.b16 %v2312
    %v2628 = vunpack.c.l.b16 %v2313
    %v2629 = vunpack.c.h.b16 %v2313
    %v2630 = vunpack.c.l.b16 %v2314
    %v2631 = vunpack.c.h.b16 %v2314
    %v2632 = vunpack.c.l.b16 %v2315
    %v2633 = vunpack.c.h.b16 %v2315
    %v2634 = vunpack.c.l.b16 %v2316
    %v2635 = vunpack.c.h.b16 %v2316
    %v2636 = vunpack.c.l.b16 %v2317
    %v2637 = vunpack.c.h.b16 %v2317
    %v2638 = vunpack.c.l.b16 %v2318
    %v2639 = vunpack.c.h.b16 %v2318
    %v2640 = vunpack.c.l.b16 %v2319
    %v2641 = vunpack.c.h.b16 %v2319
    %v2642 = vunpack.c.l.b16 %v2320
    %v2643 = vunpack.c.h.b16 %v2320
    %v2644 = vunpack.c.l.b16 %v2321
    %v2645 = vunpack.c.h.b16 %v2321
    %v2646 = vunpack.c.l.b16 %v2322
    %v2647 = vunpack.c.h.b16 %v2322
    %v2648 = vunpack.c.l.b16 %v2323
    %v2649 = vunpack.c.h.b16 %v2323
    %v2650 = vunpack.c.l.b16 %v2324
    %v2651 = vunpack.c.h.b16 %v2324
    %v2652 = vpack.c.b16 %v2592, %v2588
    %v2653 = vpack.c.b16 %v2593, %v2589
    %v2654 = vpack.c.b16 %v2594, %v2590
    %v2655 = vpack.c.b16 %v2595, %v2591
    %v2656 = vpack.c.b16 %v2600, %v2596
    %v2657 = vpack.c.b16 %v2601, %v2597
    %v2658 = vpack.c.b16 %v2602, %v2598
    %v2659 = vpack.c.b16 %v2603, %v2599
    %v2660 = vpack.c.b16 %v2608, %v2604
    %v2661 = vpack.c.b16 %v2609, %v2605
    %v2662 = vpack.c.b16 %v2610, %v2606
    %v2663 = vpack.c.b16 %v2611, %v2607
    %v2664 = vpack.c.b16 %v2616, %v2612
    %v2665 = vpack.c.b16 %v2617, %v2613
    %v2666 = vpack.c.b16 %v2618, %v2614
    %v2667 = vpack.c.b16 %v2619, %v2615
    %v2668 = vpack.c.b16 %v2624, %v2620
    %v2669 = vpack.c.b16 %v2625, %v2621
    %v2670 = vpack.c.b16 %v2626, %v2622
    %v2671 = vpack.c.b16 %v2627, %v2623
    %v2672 = vpack.c.b16 %v2632, %v2628
    %v2673 = vpack.c.b16 %v2633, %v2629
    %v2674 = vpack.c.b16 %v2634, %v2630
    %v2675 = vpack.c.b16 %v2635, %v2631
    %v2676 = vpack.c.b16 %v2640, %v2636
    %v2677 = vpack.c.b16 %v2641, %v2637
    %v2678 = vpack.c.b16 %v2642, %v2638
    %v2679 = vpack.c.b16 %v2643, %v2639
    %v2680 = vpack.c.b16 %v2648, %v2644
    %v2681 = vpack.c.b16 %v2649, %v2645
    %v2682 = vpack.c.b16 %v2650, %v2646
    %v2683 = vpack.c.b16 %v2651, %v2647
    %2716 = vmatpush.bf16.msra.mxu0 %v2680
    %2717 = vmatpush.bf16.msra.mxu0 %v2676
    %2718 = vmatpush.bf16.msra.mxu0 %v2672
    %2719 = vmatpush.bf16.msra.mxu0 %v2668
    %2720 = vmatpush.bf16.msra.mxu0 %v2664
    %2721 = vmatpush.bf16.msra.mxu0 %v2660
    %2722 = vmatpush.bf16.msra.mxu0 %v2656
    %2723 = vmatpush.bf16.msra.mxu0 %v2652
    %2724 = vmatmul.bf16.gmra.mxu0 %v2555
    %v2725 = vpop.f32.mrf.mxu0
    %v2726 = vadd.f32 0.0, %v2725
    %v2727 = vpop.f32.mrf.mxu0
    %2728 = vdwg.mxu0
    %2729 = vmatpush.bf16.msra.mxu0 %v2681
    %2730 = vmatpush.bf16.msra.mxu0 %v2677
    %2731 = vmatpush.bf16.msra.mxu0 %v2673
    %2732 = vmatpush.bf16.msra.mxu0 %v2669
    %2733 = vmatpush.bf16.msra.mxu0 %v2665
    %2734 = vmatpush.bf16.msra.mxu0 %v2661
    %2735 = vmatpush.bf16.msra.mxu0 %v2657
    %2736 = vmatpush.bf16.msra.mxu0 %v2653
    %2737 = vmatmul.bf16.gmra.mxu0 %v2555
    %v2738 = vpop.f32.mrf.mxu0
    %v2739 = vadd.f32 0.0, %v2738
    %v2740 = vpop.f32.mrf.mxu0
    %2741 = vdwg.mxu0
    %2742 = vmatpush.bf16.msra.mxu0 %v2682
    %2743 = vmatpush.bf16.msra.mxu0 %v2678
    %2744 = vmatpush.bf16.msra.mxu0 %v2674
    %2745 = vmatpush.bf16.msra.mxu0 %v2670
    %2746 = vmatpush.bf16.msra.mxu0 %v2666
    %2747 = vmatpush.bf16.msra.mxu0 %v2662
    %2748 = vmatpush.bf16.msra.mxu0 %v2658
    %2749 = vmatpush.bf16.msra.mxu0 %v2654
    %2750 = vmatmul.bf16.gmra.mxu0 %v2555
    %v2751 = vpop.f32.mrf.mxu0
    %v2752 = vadd.f32 0.0, %v2751
    %v2753 = vpop.f32.mrf.mxu0
    %2754 = vdwg.mxu0
    %2755 = vmatpush.bf16.msra.mxu0 %v2683
    %2756 = vmatpush.bf16.msra.mxu0 %v2679
    %2757 = vmatpush.bf16.msra.mxu0 %v2675
    %2758 = vmatpush.bf16.msra.mxu0 %v2671
    %2759 = vmatpush.bf16.msra.mxu0 %v2667
    %2760 = vmatpush.bf16.msra.mxu0 %v2663
    %2761 = vmatpush.bf16.msra.mxu0 %v2659
    %2762 = vmatpush.bf16.msra.mxu0 %v2655
    %2763 = vmatmul.bf16.gmra.mxu0 %v2555
    %v2764 = vpop.f32.mrf.mxu0
    %v2765 = vadd.f32 0.0, %v2764
    %v2766 = vpop.f32.mrf.mxu0
    %2767 = vdwg.mxu0
    %v2772 = vrot.slane %v2726, 1
    %v2773 = vrot.slane %v2739, 1
    %v2774 = vrot.slane %v2752, 1
    %v2775 = vrot.slane %v2765, 1
    %v2784 = vadd.f32 %v2505, %v2726
    %v2785 = vadd.f32 %v2519, %v2739
    %v2786 = vadd.f32 %v2533, %v2752
    %v2787 = vadd.f32 %v2547, %v2765
    %v2788 = vadd.f32 %v2507, %v2772
    %v2789 = vadd.f32 %v2521, %v2773
    %v2790 = vadd.f32 %v2535, %v2774
    %v2791 = vadd.f32 %v2549, %v2775
    %v2792 = vxor.u32 %v2784, 2147483648
    %v2793 = vxor.u32 %v2788, 2147483648
    %v2794 = vmul.f32 %v2792, 1.442695
    %v2795 = vpow.pop %v2794
    %v2796 = vmul.f32 %v2793, 1.442695
    %v2797 = vpow.pop %v2796
    %v2798 = vadd.f32 %v2795, 1.0
    %v2799 = vadd.f32 %v2797, 1.0
    %v2800 = vrcp.pop %v2798
    %v2801 = vmul.f32 %v2798, %v2800
    %v2802 = vsub.f32 1.0, %v2801
    %v2803 = vmul.f32 %v2800, %v2802
    %v2804 = vadd.f32 %v2800, %v2803
    %vm2805 = vweird.f32 %v2798
    %vm2806 = vweird.f32 %v2800
    %vm2807 = vmor %vm2805, %vm2806
    %v2808 = vsel %vm2807, %v2800, %v2804
    %v2809 = vand.u32 2147483647, %v2798
    %vm2810 = vcmp.eq.f32.partialorder %v2809, 8.507059e+37
    %v2811 = vand.u32 %v2798, 2147483648
    %v2812 = vor.u32 1.1754944e-38, %v2811
    %v2813 = vsel %vm2810, %v2812, %v2808
    %v2814 = vmul.f32 1.0, %v2813
    %v2815 = vrcp.pop %v2799
    %v2816 = vmul.f32 %v2799, %v2815
    %v2817 = vsub.f32 1.0, %v2816
    %v2818 = vmul.f32 %v2815, %v2817
    %v2819 = vadd.f32 %v2815, %v2818
    %vm2820 = vweird.f32 %v2799
    %vm2821 = vweird.f32 %v2815
    %vm2822 = vmor %vm2820, %vm2821
    %v2823 = vsel %vm2822, %v2815, %v2819
    %v2824 = vand.u32 2147483647, %v2799
    %vm2825 = vcmp.eq.f32.partialorder %v2824, 8.507059e+37
    %v2826 = vand.u32 %v2799, 2147483648
    %v2827 = vor.u32 1.1754944e-38, %v2826
    %v2828 = vsel %vm2825, %v2827, %v2823
    %v2829 = vmul.f32 1.0, %v2828
    %v2830 = vxor.u32 %v2785, 2147483648
    %v2831 = vxor.u32 %v2789, 2147483648
    %v2832 = vmul.f32 %v2830, 1.442695
    %v2833 = vpow.pop %v2832
    %v2834 = vmul.f32 %v2831, 1.442695
    %v2835 = vpow.pop %v2834
    %v2836 = vadd.f32 %v2833, 1.0
    %v2837 = vadd.f32 %v2835, 1.0
    %v2838 = vrcp.pop %v2836
    %v2839 = vmul.f32 %v2836, %v2838
    %v2840 = vsub.f32 1.0, %v2839
    %v2841 = vmul.f32 %v2838, %v2840
    %v2842 = vadd.f32 %v2838, %v2841
    %vm2843 = vweird.f32 %v2836
    %vm2844 = vweird.f32 %v2838
    %vm2845 = vmor %vm2843, %vm2844
    %v2846 = vsel %vm2845, %v2838, %v2842
    %v2847 = vand.u32 2147483647, %v2836
    %vm2848 = vcmp.eq.f32.partialorder %v2847, 8.507059e+37
    %v2849 = vand.u32 %v2836, 2147483648
    %v2850 = vor.u32 1.1754944e-38, %v2849
    %v2851 = vsel %vm2848, %v2850, %v2846
    %v2852 = vmul.f32 1.0, %v2851
    %v2853 = vrcp.pop %v2837
    %v2854 = vmul.f32 %v2837, %v2853
    %v2855 = vsub.f32 1.0, %v2854
    %v2856 = vmul.f32 %v2853, %v2855
    %v2857 = vadd.f32 %v2853, %v2856
    %vm2858 = vweird.f32 %v2837
    %vm2859 = vweird.f32 %v2853
    %vm2860 = vmor %vm2858, %vm2859
    %v2861 = vsel %vm2860, %v2853, %v2857
    %v2862 = vand.u32 2147483647, %v2837
    %vm2863 = vcmp.eq.f32.partialorder %v2862, 8.507059e+37
    %v2864 = vand.u32 %v2837, 2147483648
    %v2865 = vor.u32 1.1754944e-38, %v2864
    %v2866 = vsel %vm2863, %v2865, %v2861
    %v2867 = vmul.f32 1.0, %v2866
    %v2868 = vtanh.pop %v2786
    %v2869 = vtanh.pop %v2790
    %v2870 = vxor.u32 %v2787, 2147483648
    %v2871 = vxor.u32 %v2791, 2147483648
    %v2872 = vmul.f32 %v2870, 1.442695
    %v2873 = vpow.pop %v2872
    %v2874 = vmul.f32 %v2871, 1.442695
    %v2875 = vpow.pop %v2874
    %v2876 = vadd.f32 %v2873, 1.0
    %v2877 = vadd.f32 %v2875, 1.0
    %v2878 = vrcp.pop %v2876
    %v2879 = vmul.f32 %v2876, %v2878
    %v2880 = vsub.f32 1.0, %v2879
    %v2881 = vmul.f32 %v2878, %v2880
    %v2882 = vadd.f32 %v2878, %v2881
    %vm2883 = vweird.f32 %v2876
    %vm2884 = vweird.f32 %v2878
    %vm2885 = vmor %vm2883, %vm2884
    %v2886 = vsel %vm2885, %v2878, %v2882
    %v2887 = vand.u32 2147483647, %v2876
    %vm2888 = vcmp.eq.f32.partialorder %v2887, 8.507059e+37
    %v2889 = vand.u32 %v2876, 2147483648
    %v2890 = vor.u32 1.1754944e-38, %v2889
    %v2891 = vsel %vm2888, %v2890, %v2886
    %v2892 = vmul.f32 1.0, %v2891
    %v2893 = vrcp.pop %v2877
    %v2894 = vmul.f32 %v2877, %v2893
    %v2895 = vsub.f32 1.0, %v2894
    %v2896 = vmul.f32 %v2893, %v2895
    %v2897 = vadd.f32 %v2893, %v2896
    %vm2898 = vweird.f32 %v2877
    %vm2899 = vweird.f32 %v2893
    %vm2900 = vmor %vm2898, %vm2899
    %v2901 = vsel %vm2900, %v2893, %v2897
    %v2902 = vand.u32 2147483647, %v2877
    %vm2903 = vcmp.eq.f32.partialorder %v2902, 8.507059e+37
    %v2904 = vand.u32 %v2877, 2147483648
    %v2905 = vor.u32 1.1754944e-38, %v2904
    %v2906 = vsel %vm2903, %v2905, %v2901
    %v2907 = vmul.f32 1.0, %v2906
    %v2909 = vrot.slane %v2554, 1
    %v2912 = vmul.f32 %v2852, %v2554
    %v2913 = vmul.f32 %v2867, %v2909
    %v2914 = vmul.f32 %v2814, %v2868
    %v2915 = vmul.f32 %v2829, %v2869
    %v2916 = vadd.f32 %v2912, %v2914
    %v2917 = vadd.f32 %v2913, %v2915
    %v2918 = vtanh.pop %v2916
    %v2919 = vtanh.pop %v2917
    %v2920 = vmul.f32 %v2892, %v2918
    %v2921 = vmul.f32 %v2907, %v2919
    %2922 = vst [vmem:[#allocation2] sm:$0x1] %v2920
    %2923 = vst [vmem:[#allocation2 + $0x8] sm:$0x1] %v2921
    %v2924 = vpack.c.bf16 %v2920, %v2920
    %v2925 = vpack.c.bf16 %v2921, %v2921
    %v2928 = vunpack.c.l.b16 %v2924
    %v2929 = vunpack.c.l.b16 %v2925
    %v2930 = vrot.slane %v2929, 7
    %v2931 = vsel %vm681, %v2930, %v2928
    %v2932 = vpack.c.b16 %v2931, %v2931
    %2934 = vmatpush.bf16.msra.mxu0 %v2680
    %2935 = vmatpush.bf16.msra.mxu0 %v2676
    %2936 = vmatpush.bf16.msra.mxu0 %v2672
    %2937 = vmatpush.bf16.msra.mxu0 %v2668
    %2938 = vmatpush.bf16.msra.mxu0 %v2664
    %2939 = vmatpush.bf16.msra.mxu0 %v2660
    %2940 = vmatpush.bf16.msra.mxu0 %v2656
    %2941 = vmatpush.bf16.msra.mxu0 %v2652
    %2942 = vmatmul.bf16.gmra.mxu0 %v2932
    %v2943 = vpop.f32.mrf.mxu0
    %v2944 = vadd.f32 0.0, %v2943
    %v2945 = vpop.f32.mrf.mxu0
    %2946 = vdwg.mxu0
    %2947 = vmatpush.bf16.msra.mxu0 %v2681
    %2948 = vmatpush.bf16.msra.mxu0 %v2677
    %2949 = vmatpush.bf16.msra.mxu0 %v2673
    %2950 = vmatpush.bf16.msra.mxu0 %v2669
    %2951 = vmatpush.bf16.msra.mxu0 %v2665
    %2952 = vmatpush.bf16.msra.mxu0 %v2661
    %2953 = vmatpush.bf16.msra.mxu0 %v2657
    %2954 = vmatpush.bf16.msra.mxu0 %v2653
    %2955 = vmatmul.bf16.gmra.mxu0 %v2932
    %v2956 = vpop.f32.mrf.mxu0
    %v2957 = vadd.f32 0.0, %v2956
    %v2958 = vpop.f32.mrf.mxu0
    %2959 = vdwg.mxu0
    %2960 = vmatpush.bf16.msra.mxu0 %v2682
    %2961 = vmatpush.bf16.msra.mxu0 %v2678
    %2962 = vmatpush.bf16.msra.mxu0 %v2674
    %2963 = vmatpush.bf16.msra.mxu0 %v2670
    %2964 = vmatpush.bf16.msra.mxu0 %v2666
    %2965 = vmatpush.bf16.msra.mxu0 %v2662
    %2966 = vmatpush.bf16.msra.mxu0 %v2658
    %2967 = vmatpush.bf16.msra.mxu0 %v2654
    %2968 = vmatmul.bf16.gmra.mxu0 %v2932
    %v2969 = vpop.f32.mrf.mxu0
    %v2970 = vadd.f32 0.0, %v2969
    %v2971 = vpop.f32.mrf.mxu0
    %2972 = vdwg.mxu0
    %2973 = vmatpush.bf16.msra.mxu0 %v2683
    %2974 = vmatpush.bf16.msra.mxu0 %v2679
    %2975 = vmatpush.bf16.msra.mxu0 %v2675
    %2976 = vmatpush.bf16.msra.mxu0 %v2671
    %2977 = vmatpush.bf16.msra.mxu0 %v2667
    %2978 = vmatpush.bf16.msra.mxu0 %v2663
    %2979 = vmatpush.bf16.msra.mxu0 %v2659
    %2980 = vmatpush.bf16.msra.mxu0 %v2655
    %2981 = vmatmul.bf16.gmra.mxu0 %v2932
    %v2982 = vpop.f32.mrf.mxu0
    %v2983 = vadd.f32 0.0, %v2982
    %v2984 = vpop.f32.mrf.mxu0
    %2985 = vdwg.mxu0
    %v2990 = vrot.slane %v2944, 7
    %v2991 = vrot.slane %v2957, 7
    %v2992 = vrot.slane %v2970, 7
    %v2993 = vrot.slane %v2983, 7
    %v3002 = vadd.f32 %v2505, %v2990
    %v3003 = vadd.f32 %v2519, %v2991
    %v3004 = vadd.f32 %v2533, %v2992
    %v3005 = vadd.f32 %v2547, %v2993
    %v3006 = vadd.f32 %v2507, %v2944
    %v3007 = vadd.f32 %v2521, %v2957
    %v3008 = vadd.f32 %v2535, %v2970
    %v3009 = vadd.f32 %v2549, %v2983
    %v3010 = vxor.u32 %v3002, 2147483648
    %v3011 = vxor.u32 %v3006, 2147483648
    %v3012 = vmul.f32 %v3010, 1.442695
    %v3013 = vpow.pop %v3012
    %v3014 = vmul.f32 %v3011, 1.442695
    %v3015 = vpow.pop %v3014
    %v3016 = vadd.f32 %v3013, 1.0
    %v3017 = vadd.f32 %v3015, 1.0
    %v3018 = vrcp.pop %v3016
    %v3019 = vmul.f32 %v3016, %v3018
    %v3020 = vsub.f32 1.0, %v3019
    %v3021 = vmul.f32 %v3018, %v3020
    %v3022 = vadd.f32 %v3018, %v3021
    %vm3023 = vweird.f32 %v3016
    %vm3024 = vweird.f32 %v3018
    %vm3025 = vmor %vm3023, %vm3024
    %v3026 = vsel %vm3025, %v3018, %v3022
    %v3027 = vand.u32 2147483647, %v3016
    %vm3028 = vcmp.eq.f32.partialorder %v3027, 8.507059e+37
    %v3029 = vand.u32 %v3016, 2147483648
    %v3030 = vor.u32 1.1754944e-38, %v3029
    %v3031 = vsel %vm3028, %v3030, %v3026
    %v3032 = vmul.f32 1.0, %v3031
    %v3033 = vrcp.pop %v3017
    %v3034 = vmul.f32 %v3017, %v3033
    %v3035 = vsub.f32 1.0, %v3034
    %v3036 = vmul.f32 %v3033, %v3035
    %v3037 = vadd.f32 %v3033, %v3036
    %vm3038 = vweird.f32 %v3017
    %vm3039 = vweird.f32 %v3033
    %vm3040 = vmor %vm3038, %vm3039
    %v3041 = vsel %vm3040, %v3033, %v3037
    %v3042 = vand.u32 2147483647, %v3017
    %vm3043 = vcmp.eq.f32.partialorder %v3042, 8.507059e+37
    %v3044 = vand.u32 %v3017, 2147483648
    %v3045 = vor.u32 1.1754944e-38, %v3044
    %v3046 = vsel %vm3043, %v3045, %v3041
    %v3047 = vmul.f32 1.0, %v3046
    %v3048 = vxor.u32 %v3003, 2147483648
    %v3049 = vxor.u32 %v3007, 2147483648
    %v3050 = vmul.f32 %v3048, 1.442695
    %v3051 = vpow.pop %v3050
    %v3052 = vmul.f32 %v3049, 1.442695
    %v3053 = vpow.pop %v3052
    %v3054 = vadd.f32 %v3051, 1.0
    %v3055 = vadd.f32 %v3053, 1.0
    %v3056 = vrcp.pop %v3054
    %v3057 = vmul.f32 %v3054, %v3056
    %v3058 = vsub.f32 1.0, %v3057
    %v3059 = vmul.f32 %v3056, %v3058
    %v3060 = vadd.f32 %v3056, %v3059
    %vm3061 = vweird.f32 %v3054
    %vm3062 = vweird.f32 %v3056
    %vm3063 = vmor %vm3061, %vm3062
    %v3064 = vsel %vm3063, %v3056, %v3060
    %v3065 = vand.u32 2147483647, %v3054
    %vm3066 = vcmp.eq.f32.partialorder %v3065, 8.507059e+37
    %v3067 = vand.u32 %v3054, 2147483648
    %v3068 = vor.u32 1.1754944e-38, %v3067
    %v3069 = vsel %vm3066, %v3068, %v3064
    %v3070 = vmul.f32 1.0, %v3069
    %v3071 = vrcp.pop %v3055
    %v3072 = vmul.f32 %v3055, %v3071
    %v3073 = vsub.f32 1.0, %v3072
    %v3074 = vmul.f32 %v3071, %v3073
    %v3075 = vadd.f32 %v3071, %v3074
    %vm3076 = vweird.f32 %v3055
    %vm3077 = vweird.f32 %v3071
    %vm3078 = vmor %vm3076, %vm3077
    %v3079 = vsel %vm3078, %v3071, %v3075
    %v3080 = vand.u32 2147483647, %v3055
    %vm3081 = vcmp.eq.f32.partialorder %v3080, 8.507059e+37
    %v3082 = vand.u32 %v3055, 2147483648
    %v3083 = vor.u32 1.1754944e-38, %v3082
    %v3084 = vsel %vm3081, %v3083, %v3079
    %v3085 = vmul.f32 1.0, %v3084
    %v3086 = vtanh.pop %v3004
    %v3087 = vtanh.pop %v3008
    %v3088 = vxor.u32 %v3005, 2147483648
    %v3089 = vxor.u32 %v3009, 2147483648
    %v3090 = vmul.f32 %v3088, 1.442695
    %v3091 = vpow.pop %v3090
    %v3092 = vmul.f32 %v3089, 1.442695
    %v3093 = vpow.pop %v3092
    %v3094 = vadd.f32 %v3091, 1.0
    %v3095 = vadd.f32 %v3093, 1.0
    %v3096 = vrcp.pop %v3094
    %v3097 = vmul.f32 %v3094, %v3096
    %v3098 = vsub.f32 1.0, %v3097
    %v3099 = vmul.f32 %v3096, %v3098
    %v3100 = vadd.f32 %v3096, %v3099
    %vm3101 = vweird.f32 %v3094
    %vm3102 = vweird.f32 %v3096
    %vm3103 = vmor %vm3101, %vm3102
    %v3104 = vsel %vm3103, %v3096, %v3100
    %v3105 = vand.u32 2147483647, %v3094
    %vm3106 = vcmp.eq.f32.partialorder %v3105, 8.507059e+37
    %v3107 = vand.u32 %v3094, 2147483648
    %v3108 = vor.u32 1.1754944e-38, %v3107
    %v3109 = vsel %vm3106, %v3108, %v3104
    %v3110 = vmul.f32 1.0, %v3109
    %v3111 = vrcp.pop %v3095
    %v3112 = vmul.f32 %v3095, %v3111
    %v3113 = vsub.f32 1.0, %v3112
    %v3114 = vmul.f32 %v3111, %v3113
    %v3115 = vadd.f32 %v3111, %v3114
    %vm3116 = vweird.f32 %v3095
    %vm3117 = vweird.f32 %v3111
    %vm3118 = vmor %vm3116, %vm3117
    %v3119 = vsel %vm3118, %v3111, %v3115
    %v3120 = vand.u32 2147483647, %v3095
    %vm3121 = vcmp.eq.f32.partialorder %v3120, 8.507059e+37
    %v3122 = vand.u32 %v3095, 2147483648
    %v3123 = vor.u32 1.1754944e-38, %v3122
    %v3124 = vsel %vm3121, %v3123, %v3119
    %v3125 = vmul.f32 1.0, %v3124
    %v3128 = vrot.slane %v2916, 7
    %v3129 = vrot.slane %v2917, 7
    %v3132 = vmul.f32 %v3070, %v3128
    %v3133 = vmul.f32 %v3085, %v3129
    %v3134 = vmul.f32 %v3032, %v3086
    %v3135 = vmul.f32 %v3047, %v3087
    %v3136 = vadd.f32 %v3132, %v3134
    %v3137 = vadd.f32 %v3133, %v3135
    %v3138 = vtanh.pop %v3136
    %v3139 = vtanh.pop %v3137
    %v3140 = vmul.f32 %v3110, %v3138
    %v3141 = vmul.f32 %v3125, %v3139
    %3142 = vst [vmem:[#allocation2] sm:$0x2] %v3140
    %3143 = vst [vmem:[#allocation2 + $0x8] sm:$0x2] %v3141
    %v3144 = vpack.c.bf16 %v3140, %v3140
    %v3145 = vpack.c.bf16 %v3141, %v3141
    %v3148 = vunpack.c.l.b16 %v3144
    %v3149 = vunpack.c.l.b16 %v3145
    %v3150 = vrot.slane %v3148, 1
    %v3151 = vsel %vm681, %v3149, %v3150
    %v3152 = vpack.c.b16 %v3151, %v3151
    %3154 = vmatpush.bf16.msra.mxu0 %v2680
    %3155 = vmatpush.bf16.msra.mxu0 %v2676
    %3156 = vmatpush.bf16.msra.mxu0 %v2672
    %3157 = vmatpush.bf16.msra.mxu0 %v2668
    %3158 = vmatpush.bf16.msra.mxu0 %v2664
    %3159 = vmatpush.bf16.msra.mxu0 %v2660
    %3160 = vmatpush.bf16.msra.mxu0 %v2656
    %3161 = vmatpush.bf16.msra.mxu0 %v2652
    %3162 = vmatmul.bf16.gmra.mxu0 %v3152
    %v3163 = vpop.f32.mrf.mxu0
    %v3164 = vadd.f32 0.0, %v3163
    %v3165 = vpop.f32.mrf.mxu0
    %3166 = vdwg.mxu0
    %3167 = vmatpush.bf16.msra.mxu0 %v2681
    %3168 = vmatpush.bf16.msra.mxu0 %v2677
    %3169 = vmatpush.bf16.msra.mxu0 %v2673
    %3170 = vmatpush.bf16.msra.mxu0 %v2669
    %3171 = vmatpush.bf16.msra.mxu0 %v2665
    %3172 = vmatpush.bf16.msra.mxu0 %v2661
    %3173 = vmatpush.bf16.msra.mxu0 %v2657
    %3174 = vmatpush.bf16.msra.mxu0 %v2653
    %3175 = vmatmul.bf16.gmra.mxu0 %v3152
    %v3176 = vpop.f32.mrf.mxu0
    %v3177 = vadd.f32 0.0, %v3176
    %v3178 = vpop.f32.mrf.mxu0
    %3179 = vdwg.mxu0
    %3180 = vmatpush.bf16.msra.mxu0 %v2682
    %3181 = vmatpush.bf16.msra.mxu0 %v2678
    %3182 = vmatpush.bf16.msra.mxu0 %v2674
    %3183 = vmatpush.bf16.msra.mxu0 %v2670
    %3184 = vmatpush.bf16.msra.mxu0 %v2666
    %3185 = vmatpush.bf16.msra.mxu0 %v2662
    %3186 = vmatpush.bf16.msra.mxu0 %v2658
    %3187 = vmatpush.bf16.msra.mxu0 %v2654
    %3188 = vmatmul.bf16.gmra.mxu0 %v3152
    %v3189 = vpop.f32.mrf.mxu0
    %v3190 = vadd.f32 0.0, %v3189
    %v3191 = vpop.f32.mrf.mxu0
    %3192 = vdwg.mxu0
    %3193 = vmatpush.bf16.msra.mxu0 %v2683
    %3194 = vmatpush.bf16.msra.mxu0 %v2679
    %3195 = vmatpush.bf16.msra.mxu0 %v2675
    %3196 = vmatpush.bf16.msra.mxu0 %v2671
    %3197 = vmatpush.bf16.msra.mxu0 %v2667
    %3198 = vmatpush.bf16.msra.mxu0 %v2663
    %3199 = vmatpush.bf16.msra.mxu0 %v2659
    %3200 = vmatpush.bf16.msra.mxu0 %v2655
    %3201 = vmatmul.bf16.gmra.mxu0 %v3152
    %v3202 = vpop.f32.mrf.mxu0
    %v3203 = vadd.f32 0.0, %v3202
    %v3204 = vpop.f32.mrf.mxu0
    %3205 = vdwg.mxu0
    %v3210 = vrot.slane %v3164, 6
    %v3211 = vrot.slane %v3177, 6
    %v3212 = vrot.slane %v3190, 6
    %v3213 = vrot.slane %v3203, 6
    %v3214 = vrot.slane %v3164, 7
    %v3215 = vrot.slane %v3177, 7
    %v3216 = vrot.slane %v3190, 7
    %v3217 = vrot.slane %v3203, 7
    %v3226 = vadd.f32 %v2505, %v3210
    %v3227 = vadd.f32 %v2519, %v3211
    %v3228 = vadd.f32 %v2533, %v3212
    %v3229 = vadd.f32 %v2547, %v3213
    %v3230 = vadd.f32 %v2507, %v3214
    %v3231 = vadd.f32 %v2521, %v3215
    %v3232 = vadd.f32 %v2535, %v3216
    %v3233 = vadd.f32 %v2549, %v3217
    %v3234 = vxor.u32 %v3226, 2147483648
    %v3235 = vxor.u32 %v3230, 2147483648
    %v3236 = vmul.f32 %v3234, 1.442695
    %v3237 = vpow.pop %v3236
    %v3238 = vmul.f32 %v3235, 1.442695
    %v3239 = vpow.pop %v3238
    %v3240 = vadd.f32 %v3237, 1.0
    %v3241 = vadd.f32 %v3239, 1.0
    %v3242 = vrcp.pop %v3240
    %v3243 = vmul.f32 %v3240, %v3242
    %v3244 = vsub.f32 1.0, %v3243
    %v3245 = vmul.f32 %v3242, %v3244
    %v3246 = vadd.f32 %v3242, %v3245
    %vm3247 = vweird.f32 %v3240
    %vm3248 = vweird.f32 %v3242
    %vm3249 = vmor %vm3247, %vm3248
    %v3250 = vsel %vm3249, %v3242, %v3246
    %v3251 = vand.u32 2147483647, %v3240
    %vm3252 = vcmp.eq.f32.partialorder %v3251, 8.507059e+37
    %v3253 = vand.u32 %v3240, 2147483648
    %v3254 = vor.u32 1.1754944e-38, %v3253
    %v3255 = vsel %vm3252, %v3254, %v3250
    %v3256 = vmul.f32 1.0, %v3255
    %v3257 = vrcp.pop %v3241
    %v3258 = vmul.f32 %v3241, %v3257
    %v3259 = vsub.f32 1.0, %v3258
    %v3260 = vmul.f32 %v3257, %v3259
    %v3261 = vadd.f32 %v3257, %v3260
    %vm3262 = vweird.f32 %v3241
    %vm3263 = vweird.f32 %v3257
    %vm3264 = vmor %vm3262, %vm3263
    %v3265 = vsel %vm3264, %v3257, %v3261
    %v3266 = vand.u32 2147483647, %v3241
    %vm3267 = vcmp.eq.f32.partialorder %v3266, 8.507059e+37
    %v3268 = vand.u32 %v3241, 2147483648
    %v3269 = vor.u32 1.1754944e-38, %v3268
    %v3270 = vsel %vm3267, %v3269, %v3265
    %v3271 = vmul.f32 1.0, %v3270
    %v3272 = vxor.u32 %v3227, 2147483648
    %v3273 = vxor.u32 %v3231, 2147483648
    %v3274 = vmul.f32 %v3272, 1.442695
    %v3275 = vpow.pop %v3274
    %v3276 = vmul.f32 %v3273, 1.442695
    %v3277 = vpow.pop %v3276
    %v3278 = vadd.f32 %v3275, 1.0
    %v3279 = vadd.f32 %v3277, 1.0
    %v3280 = vrcp.pop %v3278
    %v3281 = vmul.f32 %v3278, %v3280
    %v3282 = vsub.f32 1.0, %v3281
    %v3283 = vmul.f32 %v3280, %v3282
    %v3284 = vadd.f32 %v3280, %v3283
    %vm3285 = vweird.f32 %v3278
    %vm3286 = vweird.f32 %v3280
    %vm3287 = vmor %vm3285, %vm3286
    %v3288 = vsel %vm3287, %v3280, %v3284
    %v3289 = vand.u32 2147483647, %v3278
    %vm3290 = vcmp.eq.f32.partialorder %v3289, 8.507059e+37
    %v3291 = vand.u32 %v3278, 2147483648
    %v3292 = vor.u32 1.1754944e-38, %v3291
    %v3293 = vsel %vm3290, %v3292, %v3288
    %v3294 = vmul.f32 1.0, %v3293
    %v3295 = vrcp.pop %v3279
    %v3296 = vmul.f32 %v3279, %v3295
    %v3297 = vsub.f32 1.0, %v3296
    %v3298 = vmul.f32 %v3295, %v3297
    %v3299 = vadd.f32 %v3295, %v3298
    %vm3300 = vweird.f32 %v3279
    %vm3301 = vweird.f32 %v3295
    %vm3302 = vmor %vm3300, %vm3301
    %v3303 = vsel %vm3302, %v3295, %v3299
    %v3304 = vand.u32 2147483647, %v3279
    %vm3305 = vcmp.eq.f32.partialorder %v3304, 8.507059e+37
    %v3306 = vand.u32 %v3279, 2147483648
    %v3307 = vor.u32 1.1754944e-38, %v3306
    %v3308 = vsel %vm3305, %v3307, %v3303
    %v3309 = vmul.f32 1.0, %v3308
    %v3310 = vtanh.pop %v3228
    %v3311 = vtanh.pop %v3232
    %v3312 = vxor.u32 %v3229, 2147483648
    %v3313 = vxor.u32 %v3233, 2147483648
    %v3314 = vmul.f32 %v3312, 1.442695
    %v3315 = vpow.pop %v3314
    %v3316 = vmul.f32 %v3313, 1.442695
    %v3317 = vpow.pop %v3316
    %v3318 = vadd.f32 %v3315, 1.0
    %v3319 = vadd.f32 %v3317, 1.0
    %v3320 = vrcp.pop %v3318
    %v3321 = vmul.f32 %v3318, %v3320
    %v3322 = vsub.f32 1.0, %v3321
    %v3323 = vmul.f32 %v3320, %v3322
    %v3324 = vadd.f32 %v3320, %v3323
    %vm3325 = vweird.f32 %v3318
    %vm3326 = vweird.f32 %v3320
    %vm3327 = vmor %vm3325, %vm3326
    %v3328 = vsel %vm3327, %v3320, %v3324
    %v3329 = vand.u32 2147483647, %v3318
    %vm3330 = vcmp.eq.f32.partialorder %v3329, 8.507059e+37
    %v3331 = vand.u32 %v3318, 2147483648
    %v3332 = vor.u32 1.1754944e-38, %v3331
    %v3333 = vsel %vm3330, %v3332, %v3328
    %v3334 = vmul.f32 1.0, %v3333
    %v3335 = vrcp.pop %v3319
    %v3336 = vmul.f32 %v3319, %v3335
    %v3337 = vsub.f32 1.0, %v3336
    %v3338 = vmul.f32 %v3335, %v3337
    %v3339 = vadd.f32 %v3335, %v3338
    %vm3340 = vweird.f32 %v3319
    %vm3341 = vweird.f32 %v3335
    %vm3342 = vmor %vm3340, %vm3341
    %v3343 = vsel %vm3342, %v3335, %v3339
    %v3344 = vand.u32 2147483647, %v3319
    %vm3345 = vcmp.eq.f32.partialorder %v3344, 8.507059e+37
    %v3346 = vand.u32 %v3319, 2147483648
    %v3347 = vor.u32 1.1754944e-38, %v3346
    %v3348 = vsel %vm3345, %v3347, %v3343
    %v3349 = vmul.f32 1.0, %v3348
    %v3352 = vrot.slane %v3136, 7
    %v3353 = vrot.slane %v3137, 7
    %v3356 = vmul.f32 %v3294, %v3352
    %v3357 = vmul.f32 %v3309, %v3353
    %v3358 = vmul.f32 %v3256, %v3310
    %v3359 = vmul.f32 %v3271, %v3311
    %v3360 = vadd.f32 %v3356, %v3358
    %v3361 = vadd.f32 %v3357, %v3359
    %v3362 = vtanh.pop %v3360
    %v3363 = vtanh.pop %v3361
    %v3364 = vmul.f32 %v3334, %v3362
    %v3365 = vmul.f32 %v3349, %v3363
    %3366 = vst [vmem:[#allocation2] sm:$0x4] %v3364
    %3367 = vst [vmem:[#allocation2 + $0x8] sm:$0x4] %v3365
    %v3368 = vpack.c.bf16 %v3364, %v3364
    %v3369 = vpack.c.bf16 %v3365, %v3365
    %v3372 = vunpack.c.l.b16 %v3368
    %v3373 = vunpack.c.l.b16 %v3369
    %v3374 = vrot.slane %v3372, 2
    %v3375 = vrot.slane %v3373, 1
    %v3376 = vsel %vm681, %v3375, %v3374
    %v3377 = vpack.c.b16 %v3376, %v3376
    %3379 = vmatpush.bf16.msra.mxu0 %v2680
    %3380 = vmatpush.bf16.msra.mxu0 %v2676
    %3381 = vmatpush.bf16.msra.mxu0 %v2672
    %3382 = vmatpush.bf16.msra.mxu0 %v2668
    %3383 = vmatpush.bf16.msra.mxu0 %v2664
    %3384 = vmatpush.bf16.msra.mxu0 %v2660
    %3385 = vmatpush.bf16.msra.mxu0 %v2656
    %3386 = vmatpush.bf16.msra.mxu0 %v2652
    %3387 = vmatmul.bf16.gmra.mxu0 %v3377
    %v3388 = vpop.f32.mrf.mxu0
    %v3389 = vadd.f32 0.0, %v3388
    %v3390 = vpop.f32.mrf.mxu0
    %3391 = vdwg.mxu0
    %3392 = vmatpush.bf16.msra.mxu0 %v2681
    %3393 = vmatpush.bf16.msra.mxu0 %v2677
    %3394 = vmatpush.bf16.msra.mxu0 %v2673
    %3395 = vmatpush.bf16.msra.mxu0 %v2669
    %3396 = vmatpush.bf16.msra.mxu0 %v2665
    %3397 = vmatpush.bf16.msra.mxu0 %v2661
    %3398 = vmatpush.bf16.msra.mxu0 %v2657
    %3399 = vmatpush.bf16.msra.mxu0 %v2653
    %3400 = vmatmul.bf16.gmra.mxu0 %v3377
    %v3401 = vpop.f32.mrf.mxu0
    %v3402 = vadd.f32 0.0, %v3401
    %v3403 = vpop.f32.mrf.mxu0
    %3404 = vdwg.mxu0
    %3405 = vmatpush.bf16.msra.mxu0 %v2682
    %3406 = vmatpush.bf16.msra.mxu0 %v2678
    %3407 = vmatpush.bf16.msra.mxu0 %v2674
    %3408 = vmatpush.bf16.msra.mxu0 %v2670
    %3409 = vmatpush.bf16.msra.mxu0 %v2666
    %3410 = vmatpush.bf16.msra.mxu0 %v2662
    %3411 = vmatpush.bf16.msra.mxu0 %v2658
    %3412 = vmatpush.bf16.msra.mxu0 %v2654
    %3413 = vmatmul.bf16.gmra.mxu0 %v3377
    %v3414 = vpop.f32.mrf.mxu0
    %v3415 = vadd.f32 0.0, %v3414
    %v3416 = vpop.f32.mrf.mxu0
    %3417 = vdwg.mxu0
    %3418 = vmatpush.bf16.msra.mxu0 %v2683
    %3419 = vmatpush.bf16.msra.mxu0 %v2679
    %3420 = vmatpush.bf16.msra.mxu0 %v2675
    %3421 = vmatpush.bf16.msra.mxu0 %v2671
    %3422 = vmatpush.bf16.msra.mxu0 %v2667
    %3423 = vmatpush.bf16.msra.mxu0 %v2663
    %3424 = vmatpush.bf16.msra.mxu0 %v2659
    %3425 = vmatpush.bf16.msra.mxu0 %v2655
    %3426 = vmatmul.bf16.gmra.mxu0 %v3377
    %v3427 = vpop.f32.mrf.mxu0
    %v3428 = vadd.f32 0.0, %v3427
    %v3429 = vpop.f32.mrf.mxu0
    %3430 = vdwg.mxu0
    %v3435 = vrot.slane %v3389, 5
    %v3436 = vrot.slane %v3402, 5
    %v3437 = vrot.slane %v3415, 5
    %v3438 = vrot.slane %v3428, 5
    %v3439 = vrot.slane %v3389, 6
    %v3440 = vrot.slane %v3402, 6
    %v3441 = vrot.slane %v3415, 6
    %v3442 = vrot.slane %v3428, 6
    %v3451 = vadd.f32 %v2505, %v3435
    %v3452 = vadd.f32 %v2519, %v3436
    %v3453 = vadd.f32 %v2533, %v3437
    %v3454 = vadd.f32 %v2547, %v3438
    %v3455 = vadd.f32 %v2507, %v3439
    %v3456 = vadd.f32 %v2521, %v3440
    %v3457 = vadd.f32 %v2535, %v3441
    %v3458 = vadd.f32 %v2549, %v3442
    %v3459 = vxor.u32 %v3451, 2147483648
    %v3460 = vxor.u32 %v3455, 2147483648
    %v3461 = vmul.f32 %v3459, 1.442695
    %v3462 = vpow.pop %v3461
    %v3463 = vmul.f32 %v3460, 1.442695
    %v3464 = vpow.pop %v3463
    %v3465 = vadd.f32 %v3462, 1.0
    %v3466 = vadd.f32 %v3464, 1.0
    %v3467 = vrcp.pop %v3465
    %v3468 = vmul.f32 %v3465, %v3467
    %v3469 = vsub.f32 1.0, %v3468
    %v3470 = vmul.f32 %v3467, %v3469
    %v3471 = vadd.f32 %v3467, %v3470
    %vm3472 = vweird.f32 %v3465
    %vm3473 = vweird.f32 %v3467
    %vm3474 = vmor %vm3472, %vm3473
    %v3475 = vsel %vm3474, %v3467, %v3471
    %v3476 = vand.u32 2147483647, %v3465
    %vm3477 = vcmp.eq.f32.partialorder %v3476, 8.507059e+37
    %v3478 = vand.u32 %v3465, 2147483648
    %v3479 = vor.u32 1.1754944e-38, %v3478
    %v3480 = vsel %vm3477, %v3479, %v3475
    %v3481 = vmul.f32 1.0, %v3480
    %v3482 = vrcp.pop %v3466
    %v3483 = vmul.f32 %v3466, %v3482
    %v3484 = vsub.f32 1.0, %v3483
    %v3485 = vmul.f32 %v3482, %v3484
    %v3486 = vadd.f32 %v3482, %v3485
    %vm3487 = vweird.f32 %v3466
    %vm3488 = vweird.f32 %v3482
    %vm3489 = vmor %vm3487, %vm3488
    %v3490 = vsel %vm3489, %v3482, %v3486
    %v3491 = vand.u32 2147483647, %v3466
    %vm3492 = vcmp.eq.f32.partialorder %v3491, 8.507059e+37
    %v3493 = vand.u32 %v3466, 2147483648
    %v3494 = vor.u32 1.1754944e-38, %v3493
    %v3495 = vsel %vm3492, %v3494, %v3490
    %v3496 = vmul.f32 1.0, %v3495
    %v3497 = vxor.u32 %v3452, 2147483648
    %v3498 = vxor.u32 %v3456, 2147483648
    %v3499 = vmul.f32 %v3497, 1.442695
    %v3500 = vpow.pop %v3499
    %v3501 = vmul.f32 %v3498, 1.442695
    %v3502 = vpow.pop %v3501
    %v3503 = vadd.f32 %v3500, 1.0
    %v3504 = vadd.f32 %v3502, 1.0
    %v3505 = vrcp.pop %v3503
    %v3506 = vmul.f32 %v3503, %v3505
    %v3507 = vsub.f32 1.0, %v3506
    %v3508 = vmul.f32 %v3505, %v3507
    %v3509 = vadd.f32 %v3505, %v3508
    %vm3510 = vweird.f32 %v3503
    %vm3511 = vweird.f32 %v3505
    %vm3512 = vmor %vm3510, %vm3511
    %v3513 = vsel %vm3512, %v3505, %v3509
    %v3514 = vand.u32 2147483647, %v3503
    %vm3515 = vcmp.eq.f32.partialorder %v3514, 8.507059e+37
    %v3516 = vand.u32 %v3503, 2147483648
    %v3517 = vor.u32 1.1754944e-38, %v3516
    %v3518 = vsel %vm3515, %v3517, %v3513
    %v3519 = vmul.f32 1.0, %v3518
    %v3520 = vrcp.pop %v3504
    %v3521 = vmul.f32 %v3504, %v3520
    %v3522 = vsub.f32 1.0, %v3521
    %v3523 = vmul.f32 %v3520, %v3522
    %v3524 = vadd.f32 %v3520, %v3523
    %vm3525 = vweird.f32 %v3504
    %vm3526 = vweird.f32 %v3520
    %vm3527 = vmor %vm3525, %vm3526
    %v3528 = vsel %vm3527, %v3520, %v3524
    %v3529 = vand.u32 2147483647, %v3504
    %vm3530 = vcmp.eq.f32.partialorder %v3529, 8.507059e+37
    %v3531 = vand.u32 %v3504, 2147483648
    %v3532 = vor.u32 1.1754944e-38, %v3531
    %v3533 = vsel %vm3530, %v3532, %v3528
    %v3534 = vmul.f32 1.0, %v3533
    %v3535 = vtanh.pop %v3453
    %v3536 = vtanh.pop %v3457
    %v3537 = vxor.u32 %v3454, 2147483648
    %v3538 = vxor.u32 %v3458, 2147483648
    %v3539 = vmul.f32 %v3537, 1.442695
    %v3540 = vpow.pop %v3539
    %v3541 = vmul.f32 %v3538, 1.442695
    %v3542 = vpow.pop %v3541
    %v3543 = vadd.f32 %v3540, 1.0
    %v3544 = vadd.f32 %v3542, 1.0
    %v3545 = vrcp.pop %v3543
    %v3546 = vmul.f32 %v3543, %v3545
    %v3547 = vsub.f32 1.0, %v3546
    %v3548 = vmul.f32 %v3545, %v3547
    %v3549 = vadd.f32 %v3545, %v3548
    %vm3550 = vweird.f32 %v3543
    %vm3551 = vweird.f32 %v3545
    %vm3552 = vmor %vm3550, %vm3551
    %v3553 = vsel %vm3552, %v3545, %v3549
    %v3554 = vand.u32 2147483647, %v3543
    %vm3555 = vcmp.eq.f32.partialorder %v3554, 8.507059e+37
    %v3556 = vand.u32 %v3543, 2147483648
    %v3557 = vor.u32 1.1754944e-38, %v3556
    %v3558 = vsel %vm3555, %v3557, %v3553
    %v3559 = vmul.f32 1.0, %v3558
    %v3560 = vrcp.pop %v3544
    %v3561 = vmul.f32 %v3544, %v3560
    %v3562 = vsub.f32 1.0, %v3561
    %v3563 = vmul.f32 %v3560, %v3562
    %v3564 = vadd.f32 %v3560, %v3563
    %vm3565 = vweird.f32 %v3544
    %vm3566 = vweird.f32 %v3560
    %vm3567 = vmor %vm3565, %vm3566
    %v3568 = vsel %vm3567, %v3560, %v3564
    %v3569 = vand.u32 2147483647, %v3544
    %vm3570 = vcmp.eq.f32.partialorder %v3569, 8.507059e+37
    %v3571 = vand.u32 %v3544, 2147483648
    %v3572 = vor.u32 1.1754944e-38, %v3571
    %v3573 = vsel %vm3570, %v3572, %v3568
    %v3574 = vmul.f32 1.0, %v3573
    %v3577 = vrot.slane %v3360, 7
    %v3578 = vrot.slane %v3361, 7
    %v3581 = vmul.f32 %v3519, %v3577
    %v3582 = vmul.f32 %v3534, %v3578
    %v3583 = vmul.f32 %v3481, %v3535
    %v3584 = vmul.f32 %v3496, %v3536
    %v3585 = vadd.f32 %v3581, %v3583
    %v3586 = vadd.f32 %v3582, %v3584
    %v3587 = vtanh.pop %v3585
    %v3588 = vtanh.pop %v3586
    %v3589 = vmul.f32 %v3559, %v3587
    %v3590 = vmul.f32 %v3574, %v3588
    %3591 = vst [vmem:[#allocation2] sm:$0x8] %v3589
    %3592 = vst [vmem:[#allocation2 + $0x8] sm:$0x8] %v3590
    %v3593 = vpack.c.bf16 %v3589, %v3589
    %v3594 = vpack.c.bf16 %v3590, %v3590
    %v3597 = vunpack.c.l.b16 %v3593
    %v3598 = vunpack.c.l.b16 %v3594
    %v3599 = vrot.slane %v3597, 3
    %v3600 = vrot.slane %v3598, 2
    %v3601 = vsel %vm681, %v3600, %v3599
    %v3602 = vpack.c.b16 %v3601, %v3601
    %3604 = vmatpush.bf16.msra.mxu0 %v2680
    %3605 = vmatpush.bf16.msra.mxu0 %v2676
    %3606 = vmatpush.bf16.msra.mxu0 %v2672
    %3607 = vmatpush.bf16.msra.mxu0 %v2668
    %3608 = vmatpush.bf16.msra.mxu0 %v2664
    %3609 = vmatpush.bf16.msra.mxu0 %v2660
    %3610 = vmatpush.bf16.msra.mxu0 %v2656
    %3611 = vmatpush.bf16.msra.mxu0 %v2652
    %3612 = vmatmul.bf16.gmra.mxu0 %v3602
    %v3613 = vpop.f32.mrf.mxu0
    %v3614 = vadd.f32 0.0, %v3613
    %v3615 = vpop.f32.mrf.mxu0
    %3616 = vdwg.mxu0
    %3617 = vmatpush.bf16.msra.mxu0 %v2681
    %3618 = vmatpush.bf16.msra.mxu0 %v2677
    %3619 = vmatpush.bf16.msra.mxu0 %v2673
    %3620 = vmatpush.bf16.msra.mxu0 %v2669
    %3621 = vmatpush.bf16.msra.mxu0 %v2665
    %3622 = vmatpush.bf16.msra.mxu0 %v2661
    %3623 = vmatpush.bf16.msra.mxu0 %v2657
    %3624 = vmatpush.bf16.msra.mxu0 %v2653
    %3625 = vmatmul.bf16.gmra.mxu0 %v3602
    %v3626 = vpop.f32.mrf.mxu0
    %v3627 = vadd.f32 0.0, %v3626
    %v3628 = vpop.f32.mrf.mxu0
    %3629 = vdwg.mxu0
    %3630 = vmatpush.bf16.msra.mxu0 %v2682
    %3631 = vmatpush.bf16.msra.mxu0 %v2678
    %3632 = vmatpush.bf16.msra.mxu0 %v2674
    %3633 = vmatpush.bf16.msra.mxu0 %v2670
    %3634 = vmatpush.bf16.msra.mxu0 %v2666
    %3635 = vmatpush.bf16.msra.mxu0 %v2662
    %3636 = vmatpush.bf16.msra.mxu0 %v2658
    %3637 = vmatpush.bf16.msra.mxu0 %v2654
    %3638 = vmatmul.bf16.gmra.mxu0 %v3602
    %v3639 = vpop.f32.mrf.mxu0
    %v3640 = vadd.f32 0.0, %v3639
    %v3641 = vpop.f32.mrf.mxu0
    %3642 = vdwg.mxu0
    %3643 = vmatpush.bf16.msra.mxu0 %v2683
    %3644 = vmatpush.bf16.msra.mxu0 %v2679
    %3645 = vmatpush.bf16.msra.mxu0 %v2675
    %3646 = vmatpush.bf16.msra.mxu0 %v2671
    %3647 = vmatpush.bf16.msra.mxu0 %v2667
    %3648 = vmatpush.bf16.msra.mxu0 %v2663
    %3649 = vmatpush.bf16.msra.mxu0 %v2659
    %3650 = vmatpush.bf16.msra.mxu0 %v2655
    %3651 = vmatmul.bf16.gmra.mxu0 %v3602
    %v3652 = vpop.f32.mrf.mxu0
    %v3653 = vadd.f32 0.0, %v3652
    %v3654 = vpop.f32.mrf.mxu0
    %3655 = vdwg.mxu0
    %v3660 = vrot.slane %v3614, 4
    %v3661 = vrot.slane %v3627, 4
    %v3662 = vrot.slane %v3640, 4
    %v3663 = vrot.slane %v3653, 4
    %v3664 = vrot.slane %v3614, 5
    %v3665 = vrot.slane %v3627, 5
    %v3666 = vrot.slane %v3640, 5
    %v3667 = vrot.slane %v3653, 5
    %v3676 = vadd.f32 %v2505, %v3660
    %v3677 = vadd.f32 %v2519, %v3661
    %v3678 = vadd.f32 %v2533, %v3662
    %v3679 = vadd.f32 %v2547, %v3663
    %v3680 = vadd.f32 %v2507, %v3664
    %v3681 = vadd.f32 %v2521, %v3665
    %v3682 = vadd.f32 %v2535, %v3666
    %v3683 = vadd.f32 %v2549, %v3667
    %v3684 = vxor.u32 %v3676, 2147483648
    %v3685 = vxor.u32 %v3680, 2147483648
    %v3686 = vmul.f32 %v3684, 1.442695
    %v3687 = vpow.pop %v3686
    %v3688 = vmul.f32 %v3685, 1.442695
    %v3689 = vpow.pop %v3688
    %v3690 = vadd.f32 %v3687, 1.0
    %v3691 = vadd.f32 %v3689, 1.0
    %v3692 = vrcp.pop %v3690
    %v3693 = vmul.f32 %v3690, %v3692
    %v3694 = vsub.f32 1.0, %v3693
    %v3695 = vmul.f32 %v3692, %v3694
    %v3696 = vadd.f32 %v3692, %v3695
    %vm3697 = vweird.f32 %v3690
    %vm3698 = vweird.f32 %v3692
    %vm3699 = vmor %vm3697, %vm3698
    %v3700 = vsel %vm3699, %v3692, %v3696
    %v3701 = vand.u32 2147483647, %v3690
    %vm3702 = vcmp.eq.f32.partialorder %v3701, 8.507059e+37
    %v3703 = vand.u32 %v3690, 2147483648
    %v3704 = vor.u32 1.1754944e-38, %v3703
    %v3705 = vsel %vm3702, %v3704, %v3700
    %v3706 = vmul.f32 1.0, %v3705
    %v3707 = vrcp.pop %v3691
    %v3708 = vmul.f32 %v3691, %v3707
    %v3709 = vsub.f32 1.0, %v3708
    %v3710 = vmul.f32 %v3707, %v3709
    %v3711 = vadd.f32 %v3707, %v3710
    %vm3712 = vweird.f32 %v3691
    %vm3713 = vweird.f32 %v3707
    %vm3714 = vmor %vm3712, %vm3713
    %v3715 = vsel %vm3714, %v3707, %v3711
    %v3716 = vand.u32 2147483647, %v3691
    %vm3717 = vcmp.eq.f32.partialorder %v3716, 8.507059e+37
    %v3718 = vand.u32 %v3691, 2147483648
    %v3719 = vor.u32 1.1754944e-38, %v3718
    %v3720 = vsel %vm3717, %v3719, %v3715
    %v3721 = vmul.f32 1.0, %v3720
    %v3722 = vxor.u32 %v3677, 2147483648
    %v3723 = vxor.u32 %v3681, 2147483648
    %v3724 = vmul.f32 %v3722, 1.442695
    %v3725 = vpow.pop %v3724
    %v3726 = vmul.f32 %v3723, 1.442695
    %v3727 = vpow.pop %v3726
    %v3728 = vadd.f32 %v3725, 1.0
    %v3729 = vadd.f32 %v3727, 1.0
    %v3730 = vrcp.pop %v3728
    %v3731 = vmul.f32 %v3728, %v3730
    %v3732 = vsub.f32 1.0, %v3731
    %v3733 = vmul.f32 %v3730, %v3732
    %v3734 = vadd.f32 %v3730, %v3733
    %vm3735 = vweird.f32 %v3728
    %vm3736 = vweird.f32 %v3730
    %vm3737 = vmor %vm3735, %vm3736
    %v3738 = vsel %vm3737, %v3730, %v3734
    %v3739 = vand.u32 2147483647, %v3728
    %vm3740 = vcmp.eq.f32.partialorder %v3739, 8.507059e+37
    %v3741 = vand.u32 %v3728, 2147483648
    %v3742 = vor.u32 1.1754944e-38, %v3741
    %v3743 = vsel %vm3740, %v3742, %v3738
    %v3744 = vmul.f32 1.0, %v3743
    %v3745 = vrcp.pop %v3729
    %v3746 = vmul.f32 %v3729, %v3745
    %v3747 = vsub.f32 1.0, %v3746
    %v3748 = vmul.f32 %v3745, %v3747
    %v3749 = vadd.f32 %v3745, %v3748
    %vm3750 = vweird.f32 %v3729
    %vm3751 = vweird.f32 %v3745
    %vm3752 = vmor %vm3750, %vm3751
    %v3753 = vsel %vm3752, %v3745, %v3749
    %v3754 = vand.u32 2147483647, %v3729
    %vm3755 = vcmp.eq.f32.partialorder %v3754, 8.507059e+37
    %v3756 = vand.u32 %v3729, 2147483648
    %v3757 = vor.u32 1.1754944e-38, %v3756
    %v3758 = vsel %vm3755, %v3757, %v3753
    %v3759 = vmul.f32 1.0, %v3758
    %v3760 = vtanh.pop %v3678
    %v3761 = vtanh.pop %v3682
    %v3762 = vxor.u32 %v3679, 2147483648
    %v3763 = vxor.u32 %v3683, 2147483648
    %v3764 = vmul.f32 %v3762, 1.442695
    %v3765 = vpow.pop %v3764
    %v3766 = vmul.f32 %v3763, 1.442695
    %v3767 = vpow.pop %v3766
    %v3768 = vadd.f32 %v3765, 1.0
    %v3769 = vadd.f32 %v3767, 1.0
    %v3770 = vrcp.pop %v3768
    %v3771 = vmul.f32 %v3768, %v3770
    %v3772 = vsub.f32 1.0, %v3771
    %v3773 = vmul.f32 %v3770, %v3772
    %v3774 = vadd.f32 %v3770, %v3773
    %vm3775 = vweird.f32 %v3768
    %vm3776 = vweird.f32 %v3770
    %vm3777 = vmor %vm3775, %vm3776
    %v3778 = vsel %vm3777, %v3770, %v3774
    %v3779 = vand.u32 2147483647, %v3768
    %vm3780 = vcmp.eq.f32.partialorder %v3779, 8.507059e+37
    %v3781 = vand.u32 %v3768, 2147483648
    %v3782 = vor.u32 1.1754944e-38, %v3781
    %v3783 = vsel %vm3780, %v3782, %v3778
    %v3784 = vmul.f32 1.0, %v3783
    %v3785 = vrcp.pop %v3769
    %v3786 = vmul.f32 %v3769, %v3785
    %v3787 = vsub.f32 1.0, %v3786
    %v3788 = vmul.f32 %v3785, %v3787
    %v3789 = vadd.f32 %v3785, %v3788
    %vm3790 = vweird.f32 %v3769
    %vm3791 = vweird.f32 %v3785
    %vm3792 = vmor %vm3790, %vm3791
    %v3793 = vsel %vm3792, %v3785, %v3789
    %v3794 = vand.u32 2147483647, %v3769
    %vm3795 = vcmp.eq.f32.partialorder %v3794, 8.507059e+37
    %v3796 = vand.u32 %v3769, 2147483648
    %v3797 = vor.u32 1.1754944e-38, %v3796
    %v3798 = vsel %vm3795, %v3797, %v3793
    %v3799 = vmul.f32 1.0, %v3798
    %v3802 = vrot.slane %v3585, 7
    %v3803 = vrot.slane %v3586, 7
    %v3806 = vmul.f32 %v3744, %v3802
    %v3807 = vmul.f32 %v3759, %v3803
    %v3808 = vmul.f32 %v3706, %v3760
    %v3809 = vmul.f32 %v3721, %v3761
    %v3810 = vadd.f32 %v3806, %v3808
    %v3811 = vadd.f32 %v3807, %v3809
    %v3812 = vtanh.pop %v3810
    %v3813 = vtanh.pop %v3811
    %v3814 = vmul.f32 %v3784, %v3812
    %v3815 = vmul.f32 %v3799, %v3813
    %3816 = vst [vmem:[#allocation2] sm:$0x10] %v3814
    %3817 = vst [vmem:[#allocation2 + $0x8] sm:$0x10] %v3815
    %v3818 = vpack.c.bf16 %v3814, %v3814
    %v3819 = vpack.c.bf16 %v3815, %v3815
    %v3822 = vunpack.c.l.b16 %v3818
    %v3823 = vunpack.c.l.b16 %v3819
    %v3824 = vrot.slane %v3822, 4
    %v3825 = vrot.slane %v3823, 3
    %v3826 = vsel %vm681, %v3825, %v3824
    %v3827 = vpack.c.b16 %v3826, %v3826
    %3829 = vmatpush.bf16.msra.mxu0 %v2680
    %3830 = vmatpush.bf16.msra.mxu0 %v2676
    %3831 = vmatpush.bf16.msra.mxu0 %v2672
    %3832 = vmatpush.bf16.msra.mxu0 %v2668
    %3833 = vmatpush.bf16.msra.mxu0 %v2664
    %3834 = vmatpush.bf16.msra.mxu0 %v2660
    %3835 = vmatpush.bf16.msra.mxu0 %v2656
    %3836 = vmatpush.bf16.msra.mxu0 %v2652
    %3837 = vmatmul.bf16.gmra.mxu0 %v3827
    %v3838 = vpop.f32.mrf.mxu0
    %v3839 = vadd.f32 0.0, %v3838
    %v3840 = vpop.f32.mrf.mxu0
    %3841 = vdwg.mxu0
    %3842 = vmatpush.bf16.msra.mxu0 %v2681
    %3843 = vmatpush.bf16.msra.mxu0 %v2677
    %3844 = vmatpush.bf16.msra.mxu0 %v2673
    %3845 = vmatpush.bf16.msra.mxu0 %v2669
    %3846 = vmatpush.bf16.msra.mxu0 %v2665
    %3847 = vmatpush.bf16.msra.mxu0 %v2661
    %3848 = vmatpush.bf16.msra.mxu0 %v2657
    %3849 = vmatpush.bf16.msra.mxu0 %v2653
    %3850 = vmatmul.bf16.gmra.mxu0 %v3827
    %v3851 = vpop.f32.mrf.mxu0
    %v3852 = vadd.f32 0.0, %v3851
    %v3853 = vpop.f32.mrf.mxu0
    %3854 = vdwg.mxu0
    %3855 = vmatpush.bf16.msra.mxu0 %v2682
    %3856 = vmatpush.bf16.msra.mxu0 %v2678
    %3857 = vmatpush.bf16.msra.mxu0 %v2674
    %3858 = vmatpush.bf16.msra.mxu0 %v2670
    %3859 = vmatpush.bf16.msra.mxu0 %v2666
    %3860 = vmatpush.bf16.msra.mxu0 %v2662
    %3861 = vmatpush.bf16.msra.mxu0 %v2658
    %3862 = vmatpush.bf16.msra.mxu0 %v2654
    %3863 = vmatmul.bf16.gmra.mxu0 %v3827
    %v3864 = vpop.f32.mrf.mxu0
    %v3865 = vadd.f32 0.0, %v3864
    %v3866 = vpop.f32.mrf.mxu0
    %3867 = vdwg.mxu0
    %3868 = vmatpush.bf16.msra.mxu0 %v2683
    %3869 = vmatpush.bf16.msra.mxu0 %v2679
    %3870 = vmatpush.bf16.msra.mxu0 %v2675
    %3871 = vmatpush.bf16.msra.mxu0 %v2671
    %3872 = vmatpush.bf16.msra.mxu0 %v2667
    %3873 = vmatpush.bf16.msra.mxu0 %v2663
    %3874 = vmatpush.bf16.msra.mxu0 %v2659
    %3875 = vmatpush.bf16.msra.mxu0 %v2655
    %3876 = vmatmul.bf16.gmra.mxu0 %v3827
    %v3877 = vpop.f32.mrf.mxu0
    %v3878 = vadd.f32 0.0, %v3877
    %v3879 = vpop.f32.mrf.mxu0
    %3880 = vdwg.mxu0
    %v3885 = vrot.slane %v3839, 3
    %v3886 = vrot.slane %v3852, 3
    %v3887 = vrot.slane %v3865, 3
    %v3888 = vrot.slane %v3878, 3
    %v3889 = vrot.slane %v3839, 4
    %v3890 = vrot.slane %v3852, 4
    %v3891 = vrot.slane %v3865, 4
    %v3892 = vrot.slane %v3878, 4
    %v3901 = vadd.f32 %v2505, %v3885
    %v3902 = vadd.f32 %v2519, %v3886
    %v3903 = vadd.f32 %v2533, %v3887
    %v3904 = vadd.f32 %v2547, %v3888
    %v3905 = vadd.f32 %v2507, %v3889
    %v3906 = vadd.f32 %v2521, %v3890
    %v3907 = vadd.f32 %v2535, %v3891
    %v3908 = vadd.f32 %v2549, %v3892
    %v3909 = vxor.u32 %v3901, 2147483648
    %v3910 = vxor.u32 %v3905, 2147483648
    %v3911 = vmul.f32 %v3909, 1.442695
    %v3912 = vpow.pop %v3911
    %v3913 = vmul.f32 %v3910, 1.442695
    %v3914 = vpow.pop %v3913
    %v3915 = vadd.f32 %v3912, 1.0
    %v3916 = vadd.f32 %v3914, 1.0
    %v3917 = vrcp.pop %v3915
    %v3918 = vmul.f32 %v3915, %v3917
    %v3919 = vsub.f32 1.0, %v3918
    %v3920 = vmul.f32 %v3917, %v3919
    %v3921 = vadd.f32 %v3917, %v3920
    %vm3922 = vweird.f32 %v3915
    %vm3923 = vweird.f32 %v3917
    %vm3924 = vmor %vm3922, %vm3923
    %v3925 = vsel %vm3924, %v3917, %v3921
    %v3926 = vand.u32 2147483647, %v3915
    %vm3927 = vcmp.eq.f32.partialorder %v3926, 8.507059e+37
    %v3928 = vand.u32 %v3915, 2147483648
    %v3929 = vor.u32 1.1754944e-38, %v3928
    %v3930 = vsel %vm3927, %v3929, %v3925
    %v3931 = vmul.f32 1.0, %v3930
    %v3932 = vrcp.pop %v3916
    %v3933 = vmul.f32 %v3916, %v3932
    %v3934 = vsub.f32 1.0, %v3933
    %v3935 = vmul.f32 %v3932, %v3934
    %v3936 = vadd.f32 %v3932, %v3935
    %vm3937 = vweird.f32 %v3916
    %vm3938 = vweird.f32 %v3932
    %vm3939 = vmor %vm3937, %vm3938
    %v3940 = vsel %vm3939, %v3932, %v3936
    %v3941 = vand.u32 2147483647, %v3916
    %vm3942 = vcmp.eq.f32.partialorder %v3941, 8.507059e+37
    %v3943 = vand.u32 %v3916, 2147483648
    %v3944 = vor.u32 1.1754944e-38, %v3943
    %v3945 = vsel %vm3942, %v3944, %v3940
    %v3946 = vmul.f32 1.0, %v3945
    %v3947 = vxor.u32 %v3902, 2147483648
    %v3948 = vxor.u32 %v3906, 2147483648
    %v3949 = vmul.f32 %v3947, 1.442695
    %v3950 = vpow.pop %v3949
    %v3951 = vmul.f32 %v3948, 1.442695
    %v3952 = vpow.pop %v3951
    %v3953 = vadd.f32 %v3950, 1.0
    %v3954 = vadd.f32 %v3952, 1.0
    %v3955 = vrcp.pop %v3953
    %v3956 = vmul.f32 %v3953, %v3955
    %v3957 = vsub.f32 1.0, %v3956
    %v3958 = vmul.f32 %v3955, %v3957
    %v3959 = vadd.f32 %v3955, %v3958
    %vm3960 = vweird.f32 %v3953
    %vm3961 = vweird.f32 %v3955
    %vm3962 = vmor %vm3960, %vm3961
    %v3963 = vsel %vm3962, %v3955, %v3959
    %v3964 = vand.u32 2147483647, %v3953
    %vm3965 = vcmp.eq.f32.partialorder %v3964, 8.507059e+37
    %v3966 = vand.u32 %v3953, 2147483648
    %v3967 = vor.u32 1.1754944e-38, %v3966
    %v3968 = vsel %vm3965, %v3967, %v3963
    %v3969 = vmul.f32 1.0, %v3968
    %v3970 = vrcp.pop %v3954
    %v3971 = vmul.f32 %v3954, %v3970
    %v3972 = vsub.f32 1.0, %v3971
    %v3973 = vmul.f32 %v3970, %v3972
    %v3974 = vadd.f32 %v3970, %v3973
    %vm3975 = vweird.f32 %v3954
    %vm3976 = vweird.f32 %v3970
    %vm3977 = vmor %vm3975, %vm3976
    %v3978 = vsel %vm3977, %v3970, %v3974
    %v3979 = vand.u32 2147483647, %v3954
    %vm3980 = vcmp.eq.f32.partialorder %v3979, 8.507059e+37
    %v3981 = vand.u32 %v3954, 2147483648
    %v3982 = vor.u32 1.1754944e-38, %v3981
    %v3983 = vsel %vm3980, %v3982, %v3978
    %v3984 = vmul.f32 1.0, %v3983
    %v3985 = vtanh.pop %v3903
    %v3986 = vtanh.pop %v3907
    %v3987 = vxor.u32 %v3904, 2147483648
    %v3988 = vxor.u32 %v3908, 2147483648
    %v3989 = vmul.f32 %v3987, 1.442695
    %v3990 = vpow.pop %v3989
    %v3991 = vmul.f32 %v3988, 1.442695
    %v3992 = vpow.pop %v3991
    %v3993 = vadd.f32 %v3990, 1.0
    %v3994 = vadd.f32 %v3992, 1.0
    %v3995 = vrcp.pop %v3993
    %v3996 = vmul.f32 %v3993, %v3995
    %v3997 = vsub.f32 1.0, %v3996
    %v3998 = vmul.f32 %v3995, %v3997
    %v3999 = vadd.f32 %v3995, %v3998
    %vm4000 = vweird.f32 %v3993
    %vm4001 = vweird.f32 %v3995
    %vm4002 = vmor %vm4000, %vm4001
    %v4003 = vsel %vm4002, %v3995, %v3999
    %v4004 = vand.u32 2147483647, %v3993
    %vm4005 = vcmp.eq.f32.partialorder %v4004, 8.507059e+37
    %v4006 = vand.u32 %v3993, 2147483648
    %v4007 = vor.u32 1.1754944e-38, %v4006
    %v4008 = vsel %vm4005, %v4007, %v4003
    %v4009 = vmul.f32 1.0, %v4008
    %v4010 = vrcp.pop %v3994
    %v4011 = vmul.f32 %v3994, %v4010
    %v4012 = vsub.f32 1.0, %v4011
    %v4013 = vmul.f32 %v4010, %v4012
    %v4014 = vadd.f32 %v4010, %v4013
    %vm4015 = vweird.f32 %v3994
    %vm4016 = vweird.f32 %v4010
    %vm4017 = vmor %vm4015, %vm4016
    %v4018 = vsel %vm4017, %v4010, %v4014
    %v4019 = vand.u32 2147483647, %v3994
    %vm4020 = vcmp.eq.f32.partialorder %v4019, 8.507059e+37
    %v4021 = vand.u32 %v3994, 2147483648
    %v4022 = vor.u32 1.1754944e-38, %v4021
    %v4023 = vsel %vm4020, %v4022, %v4018
    %v4024 = vmul.f32 1.0, %v4023
    %v4027 = vrot.slane %v3810, 7
    %v4028 = vrot.slane %v3811, 7
    %v4031 = vmul.f32 %v3969, %v4027
    %v4032 = vmul.f32 %v3984, %v4028
    %v4033 = vmul.f32 %v3931, %v3985
    %v4034 = vmul.f32 %v3946, %v3986
    %v4035 = vadd.f32 %v4031, %v4033
    %v4036 = vadd.f32 %v4032, %v4034
    %v4037 = vtanh.pop %v4035
    %v4038 = vtanh.pop %v4036
    %v4039 = vmul.f32 %v4009, %v4037
    %v4040 = vmul.f32 %v4024, %v4038
    %4041 = vst [vmem:[#allocation2] sm:$0x20] %v4039
    %4042 = vst [vmem:[#allocation2 + $0x8] sm:$0x20] %v4040
    %v4043 = vpack.c.bf16 %v4039, %v4039
    %v4044 = vpack.c.bf16 %v4040, %v4040
    %v4047 = vunpack.c.l.b16 %v4043
    %v4048 = vunpack.c.l.b16 %v4044
    %v4049 = vrot.slane %v4047, 5
    %v4050 = vrot.slane %v4048, 4
    %v4051 = vsel %vm681, %v4050, %v4049
    %v4052 = vpack.c.b16 %v4051, %v4051
    %4054 = vmatpush.bf16.msra.mxu0 %v2680
    %4055 = vmatpush.bf16.msra.mxu0 %v2676
    %4056 = vmatpush.bf16.msra.mxu0 %v2672
    %4057 = vmatpush.bf16.msra.mxu0 %v2668
    %4058 = vmatpush.bf16.msra.mxu0 %v2664
    %4059 = vmatpush.bf16.msra.mxu0 %v2660
    %4060 = vmatpush.bf16.msra.mxu0 %v2656
    %4061 = vmatpush.bf16.msra.mxu0 %v2652
    %4062 = vmatmul.bf16.gmra.mxu0 %v4052
    %v4063 = vpop.f32.mrf.mxu0
    %v4064 = vadd.f32 0.0, %v4063
    %v4065 = vpop.f32.mrf.mxu0
    %4066 = vdwg.mxu0
    %4067 = vmatpush.bf16.msra.mxu0 %v2681
    %4068 = vmatpush.bf16.msra.mxu0 %v2677
    %4069 = vmatpush.bf16.msra.mxu0 %v2673
    %4070 = vmatpush.bf16.msra.mxu0 %v2669
    %4071 = vmatpush.bf16.msra.mxu0 %v2665
    %4072 = vmatpush.bf16.msra.mxu0 %v2661
    %4073 = vmatpush.bf16.msra.mxu0 %v2657
    %4074 = vmatpush.bf16.msra.mxu0 %v2653
    %4075 = vmatmul.bf16.gmra.mxu0 %v4052
    %v4076 = vpop.f32.mrf.mxu0
    %v4077 = vadd.f32 0.0, %v4076
    %v4078 = vpop.f32.mrf.mxu0
    %4079 = vdwg.mxu0
    %4080 = vmatpush.bf16.msra.mxu0 %v2682
    %4081 = vmatpush.bf16.msra.mxu0 %v2678
    %4082 = vmatpush.bf16.msra.mxu0 %v2674
    %4083 = vmatpush.bf16.msra.mxu0 %v2670
    %4084 = vmatpush.bf16.msra.mxu0 %v2666
    %4085 = vmatpush.bf16.msra.mxu0 %v2662
    %4086 = vmatpush.bf16.msra.mxu0 %v2658
    %4087 = vmatpush.bf16.msra.mxu0 %v2654
    %4088 = vmatmul.bf16.gmra.mxu0 %v4052
    %v4089 = vpop.f32.mrf.mxu0
    %v4090 = vadd.f32 0.0, %v4089
    %v4091 = vpop.f32.mrf.mxu0
    %4092 = vdwg.mxu0
    %4093 = vmatpush.bf16.msra.mxu0 %v2683
    %4094 = vmatpush.bf16.msra.mxu0 %v2679
    %4095 = vmatpush.bf16.msra.mxu0 %v2675
    %4096 = vmatpush.bf16.msra.mxu0 %v2671
    %4097 = vmatpush.bf16.msra.mxu0 %v2667
    %4098 = vmatpush.bf16.msra.mxu0 %v2663
    %4099 = vmatpush.bf16.msra.mxu0 %v2659
    %4100 = vmatpush.bf16.msra.mxu0 %v2655
    %4101 = vmatmul.bf16.gmra.mxu0 %v4052
    %v4102 = vpop.f32.mrf.mxu0
    %v4103 = vadd.f32 0.0, %v4102
    %v4104 = vpop.f32.mrf.mxu0
    %4105 = vdwg.mxu0
    %v4110 = vrot.slane %v4064, 2
    %v4111 = vrot.slane %v4077, 2
    %v4112 = vrot.slane %v4090, 2
    %v4113 = vrot.slane %v4103, 2
    %v4114 = vrot.slane %v4064, 3
    %v4115 = vrot.slane %v4077, 3
    %v4116 = vrot.slane %v4090, 3
    %v4117 = vrot.slane %v4103, 3
    %v4126 = vadd.f32 %v2505, %v4110
    %v4127 = vadd.f32 %v2519, %v4111
    %v4128 = vadd.f32 %v2533, %v4112
    %v4129 = vadd.f32 %v2547, %v4113
    %v4130 = vadd.f32 %v2507, %v4114
    %v4131 = vadd.f32 %v2521, %v4115
    %v4132 = vadd.f32 %v2535, %v4116
    %v4133 = vadd.f32 %v2549, %v4117
    %v4134 = vxor.u32 %v4126, 2147483648
    %v4135 = vxor.u32 %v4130, 2147483648
    %v4136 = vmul.f32 %v4134, 1.442695
    %v4137 = vpow.pop %v4136
    %v4138 = vmul.f32 %v4135, 1.442695
    %v4139 = vpow.pop %v4138
    %v4140 = vadd.f32 %v4137, 1.0
    %v4141 = vadd.f32 %v4139, 1.0
    %v4142 = vrcp.pop %v4140
    %v4143 = vmul.f32 %v4140, %v4142
    %v4144 = vsub.f32 1.0, %v4143
    %v4145 = vmul.f32 %v4142, %v4144
    %v4146 = vadd.f32 %v4142, %v4145
    %vm4147 = vweird.f32 %v4140
    %vm4148 = vweird.f32 %v4142
    %vm4149 = vmor %vm4147, %vm4148
    %v4150 = vsel %vm4149, %v4142, %v4146
    %v4151 = vand.u32 2147483647, %v4140
    %vm4152 = vcmp.eq.f32.partialorder %v4151, 8.507059e+37
    %v4153 = vand.u32 %v4140, 2147483648
    %v4154 = vor.u32 1.1754944e-38, %v4153
    %v4155 = vsel %vm4152, %v4154, %v4150
    %v4156 = vmul.f32 1.0, %v4155
    %v4157 = vrcp.pop %v4141
    %v4158 = vmul.f32 %v4141, %v4157
    %v4159 = vsub.f32 1.0, %v4158
    %v4160 = vmul.f32 %v4157, %v4159
    %v4161 = vadd.f32 %v4157, %v4160
    %vm4162 = vweird.f32 %v4141
    %vm4163 = vweird.f32 %v4157
    %vm4164 = vmor %vm4162, %vm4163
    %v4165 = vsel %vm4164, %v4157, %v4161
    %v4166 = vand.u32 2147483647, %v4141
    %vm4167 = vcmp.eq.f32.partialorder %v4166, 8.507059e+37
    %v4168 = vand.u32 %v4141, 2147483648
    %v4169 = vor.u32 1.1754944e-38, %v4168
    %v4170 = vsel %vm4167, %v4169, %v4165
    %v4171 = vmul.f32 1.0, %v4170
    %v4172 = vxor.u32 %v4127, 2147483648
    %v4173 = vxor.u32 %v4131, 2147483648
    %v4174 = vmul.f32 %v4172, 1.442695
    %v4175 = vpow.pop %v4174
    %v4176 = vmul.f32 %v4173, 1.442695
    %v4177 = vpow.pop %v4176
    %v4178 = vadd.f32 %v4175, 1.0
    %v4179 = vadd.f32 %v4177, 1.0
    %v4180 = vrcp.pop %v4178
    %v4181 = vmul.f32 %v4178, %v4180
    %v4182 = vsub.f32 1.0, %v4181
    %v4183 = vmul.f32 %v4180, %v4182
    %v4184 = vadd.f32 %v4180, %v4183
    %vm4185 = vweird.f32 %v4178
    %vm4186 = vweird.f32 %v4180
    %vm4187 = vmor %vm4185, %vm4186
    %v4188 = vsel %vm4187, %v4180, %v4184
    %v4189 = vand.u32 2147483647, %v4178
    %vm4190 = vcmp.eq.f32.partialorder %v4189, 8.507059e+37
    %v4191 = vand.u32 %v4178, 2147483648
    %v4192 = vor.u32 1.1754944e-38, %v4191
    %v4193 = vsel %vm4190, %v4192, %v4188
    %v4194 = vmul.f32 1.0, %v4193
    %v4195 = vrcp.pop %v4179
    %v4196 = vmul.f32 %v4179, %v4195
    %v4197 = vsub.f32 1.0, %v4196
    %v4198 = vmul.f32 %v4195, %v4197
    %v4199 = vadd.f32 %v4195, %v4198
    %vm4200 = vweird.f32 %v4179
    %vm4201 = vweird.f32 %v4195
    %vm4202 = vmor %vm4200, %vm4201
    %v4203 = vsel %vm4202, %v4195, %v4199
    %v4204 = vand.u32 2147483647, %v4179
    %vm4205 = vcmp.eq.f32.partialorder %v4204, 8.507059e+37
    %v4206 = vand.u32 %v4179, 2147483648
    %v4207 = vor.u32 1.1754944e-38, %v4206
    %v4208 = vsel %vm4205, %v4207, %v4203
    %v4209 = vmul.f32 1.0, %v4208
    %v4210 = vtanh.pop %v4128
    %v4211 = vtanh.pop %v4132
    %v4212 = vxor.u32 %v4129, 2147483648
    %v4213 = vxor.u32 %v4133, 2147483648
    %v4214 = vmul.f32 %v4212, 1.442695
    %v4215 = vpow.pop %v4214
    %v4216 = vmul.f32 %v4213, 1.442695
    %v4217 = vpow.pop %v4216
    %v4218 = vadd.f32 %v4215, 1.0
    %v4219 = vadd.f32 %v4217, 1.0
    %v4220 = vrcp.pop %v4218
    %v4221 = vmul.f32 %v4218, %v4220
    %v4222 = vsub.f32 1.0, %v4221
    %v4223 = vmul.f32 %v4220, %v4222
    %v4224 = vadd.f32 %v4220, %v4223
    %vm4225 = vweird.f32 %v4218
    %vm4226 = vweird.f32 %v4220
    %vm4227 = vmor %vm4225, %vm4226
    %v4228 = vsel %vm4227, %v4220, %v4224
    %v4229 = vand.u32 2147483647, %v4218
    %vm4230 = vcmp.eq.f32.partialorder %v4229, 8.507059e+37
    %v4231 = vand.u32 %v4218, 2147483648
    %v4232 = vor.u32 1.1754944e-38, %v4231
    %v4233 = vsel %vm4230, %v4232, %v4228
    %v4234 = vmul.f32 1.0, %v4233
    %v4235 = vrcp.pop %v4219
    %v4236 = vmul.f32 %v4219, %v4235
    %v4237 = vsub.f32 1.0, %v4236
    %v4238 = vmul.f32 %v4235, %v4237
    %v4239 = vadd.f32 %v4235, %v4238
    %vm4240 = vweird.f32 %v4219
    %vm4241 = vweird.f32 %v4235
    %vm4242 = vmor %vm4240, %vm4241
    %v4243 = vsel %vm4242, %v4235, %v4239
    %v4244 = vand.u32 2147483647, %v4219
    %vm4245 = vcmp.eq.f32.partialorder %v4244, 8.507059e+37
    %v4246 = vand.u32 %v4219, 2147483648
    %v4247 = vor.u32 1.1754944e-38, %v4246
    %v4248 = vsel %vm4245, %v4247, %v4243
    %v4249 = vmul.f32 1.0, %v4248
    %v4252 = vrot.slane %v4035, 7
    %v4253 = vrot.slane %v4036, 7
    %v4256 = vmul.f32 %v4194, %v4252
    %v4257 = vmul.f32 %v4209, %v4253
    %v4258 = vmul.f32 %v4156, %v4210
    %v4259 = vmul.f32 %v4171, %v4211
    %v4260 = vadd.f32 %v4256, %v4258
    %v4261 = vadd.f32 %v4257, %v4259
    %v4262 = vtanh.pop %v4260
    %v4263 = vtanh.pop %v4261
    %v4264 = vmul.f32 %v4234, %v4262
    %v4265 = vmul.f32 %v4249, %v4263
    %4266 = vst [vmem:[#allocation2] sm:$0x40] %v4264
    %4267 = vst [vmem:[#allocation2 + $0x8] sm:$0x40] %v4265
    %v4268 = vpack.c.bf16 %v4264, %v4264
    %v4269 = vpack.c.bf16 %v4265, %v4265
    %v4272 = vunpack.c.l.b16 %v4268
    %v4273 = vunpack.c.l.b16 %v4269
    %v4274 = vrot.slane %v4272, 6
    %v4275 = vrot.slane %v4273, 5
    %v4276 = vsel %vm681, %v4275, %v4274
    %v4277 = vpack.c.b16 %v4276, %v4276
    %4279 = vmatpush.bf16.msra.mxu0 %v2680
    %4280 = vmatpush.bf16.msra.mxu0 %v2676
    %4281 = vmatpush.bf16.msra.mxu0 %v2672
    %4282 = vmatpush.bf16.msra.mxu0 %v2668
    %4283 = vmatpush.bf16.msra.mxu0 %v2664
    %4284 = vmatpush.bf16.msra.mxu0 %v2660
    %4285 = vmatpush.bf16.msra.mxu0 %v2656
    %4286 = vmatpush.bf16.msra.mxu0 %v2652
    %4287 = vmatmul.bf16.gmra.mxu0 %v4277
    %v4288 = vpop.f32.mrf.mxu0
    %v4289 = vadd.f32 0.0, %v4288
    %v4290 = vpop.f32.mrf.mxu0
    %4291 = vdwg.mxu0
    %4292 = vmatpush.bf16.msra.mxu0 %v2681
    %4293 = vmatpush.bf16.msra.mxu0 %v2677
    %4294 = vmatpush.bf16.msra.mxu0 %v2673
    %4295 = vmatpush.bf16.msra.mxu0 %v2669
    %4296 = vmatpush.bf16.msra.mxu0 %v2665
    %4297 = vmatpush.bf16.msra.mxu0 %v2661
    %4298 = vmatpush.bf16.msra.mxu0 %v2657
    %4299 = vmatpush.bf16.msra.mxu0 %v2653
    %4300 = vmatmul.bf16.gmra.mxu0 %v4277
    %v4301 = vpop.f32.mrf.mxu0
    %v4302 = vadd.f32 0.0, %v4301
    %v4303 = vpop.f32.mrf.mxu0
    %4304 = vdwg.mxu0
    %4305 = vmatpush.bf16.msra.mxu0 %v2682
    %4306 = vmatpush.bf16.msra.mxu0 %v2678
    %4307 = vmatpush.bf16.msra.mxu0 %v2674
    %4308 = vmatpush.bf16.msra.mxu0 %v2670
    %4309 = vmatpush.bf16.msra.mxu0 %v2666
    %4310 = vmatpush.bf16.msra.mxu0 %v2662
    %4311 = vmatpush.bf16.msra.mxu0 %v2658
    %4312 = vmatpush.bf16.msra.mxu0 %v2654
    %4313 = vmatmul.bf16.gmra.mxu0 %v4277
    %v4314 = vpop.f32.mrf.mxu0
    %v4315 = vadd.f32 0.0, %v4314
    %v4316 = vpop.f32.mrf.mxu0
    %4317 = vdwg.mxu0
    %4318 = vmatpush.bf16.msra.mxu0 %v2683
    %4319 = vmatpush.bf16.msra.mxu0 %v2679
    %4320 = vmatpush.bf16.msra.mxu0 %v2675
    %4321 = vmatpush.bf16.msra.mxu0 %v2671
    %4322 = vmatpush.bf16.msra.mxu0 %v2667
    %4323 = vmatpush.bf16.msra.mxu0 %v2663
    %4324 = vmatpush.bf16.msra.mxu0 %v2659
    %4325 = vmatpush.bf16.msra.mxu0 %v2655
    %4326 = vmatmul.bf16.gmra.mxu0 %v4277
    %v4327 = vpop.f32.mrf.mxu0
    %v4328 = vadd.f32 0.0, %v4327
    %v4329 = vpop.f32.mrf.mxu0
    %4330 = vdwg.mxu0
    %v4335 = vrot.slane %v4289, 1
    %v4336 = vrot.slane %v4302, 1
    %v4337 = vrot.slane %v4315, 1
    %v4338 = vrot.slane %v4328, 1
    %v4339 = vrot.slane %v4289, 2
    %v4340 = vrot.slane %v4302, 2
    %v4341 = vrot.slane %v4315, 2
    %v4342 = vrot.slane %v4328, 2
    %v4351 = vadd.f32 %v2505, %v4335
    %v4352 = vadd.f32 %v2519, %v4336
    %v4353 = vadd.f32 %v2533, %v4337
    %v4354 = vadd.f32 %v2547, %v4338
    %v4355 = vadd.f32 %v2507, %v4339
    %v4356 = vadd.f32 %v2521, %v4340
    %v4357 = vadd.f32 %v2535, %v4341
    %v4358 = vadd.f32 %v2549, %v4342
    %v4359 = vxor.u32 %v4351, 2147483648
    %v4360 = vxor.u32 %v4355, 2147483648
    %v4361 = vmul.f32 %v4359, 1.442695
    %v4362 = vpow.pop %v4361
    %v4363 = vmul.f32 %v4360, 1.442695
    %v4364 = vpow.pop %v4363
    %v4365 = vadd.f32 %v4362, 1.0
    %v4366 = vadd.f32 %v4364, 1.0
    %v4367 = vrcp.pop %v4365
    %v4368 = vmul.f32 %v4365, %v4367
    %v4369 = vsub.f32 1.0, %v4368
    %v4370 = vmul.f32 %v4367, %v4369
    %v4371 = vadd.f32 %v4367, %v4370
    %vm4372 = vweird.f32 %v4365
    %vm4373 = vweird.f32 %v4367
    %vm4374 = vmor %vm4372, %vm4373
    %v4375 = vsel %vm4374, %v4367, %v4371
    %v4376 = vand.u32 2147483647, %v4365
    %vm4377 = vcmp.eq.f32.partialorder %v4376, 8.507059e+37
    %v4378 = vand.u32 %v4365, 2147483648
    %v4379 = vor.u32 1.1754944e-38, %v4378
    %v4380 = vsel %vm4377, %v4379, %v4375
    %v4381 = vmul.f32 1.0, %v4380
    %v4382 = vrcp.pop %v4366
    %v4383 = vmul.f32 %v4366, %v4382
    %v4384 = vsub.f32 1.0, %v4383
    %v4385 = vmul.f32 %v4382, %v4384
    %v4386 = vadd.f32 %v4382, %v4385
    %vm4387 = vweird.f32 %v4366
    %vm4388 = vweird.f32 %v4382
    %vm4389 = vmor %vm4387, %vm4388
    %v4390 = vsel %vm4389, %v4382, %v4386
    %v4391 = vand.u32 2147483647, %v4366
    %vm4392 = vcmp.eq.f32.partialorder %v4391, 8.507059e+37
    %v4393 = vand.u32 %v4366, 2147483648
    %v4394 = vor.u32 1.1754944e-38, %v4393
    %v4395 = vsel %vm4392, %v4394, %v4390
    %v4396 = vmul.f32 1.0, %v4395
    %v4397 = vxor.u32 %v4352, 2147483648
    %v4398 = vxor.u32 %v4356, 2147483648
    %v4399 = vmul.f32 %v4397, 1.442695
    %v4400 = vpow.pop %v4399
    %v4401 = vmul.f32 %v4398, 1.442695
    %v4402 = vpow.pop %v4401
    %v4403 = vadd.f32 %v4400, 1.0
    %v4404 = vadd.f32 %v4402, 1.0
    %v4405 = vrcp.pop %v4403
    %v4406 = vmul.f32 %v4403, %v4405
    %v4407 = vsub.f32 1.0, %v4406
    %v4408 = vmul.f32 %v4405, %v4407
    %v4409 = vadd.f32 %v4405, %v4408
    %vm4410 = vweird.f32 %v4403
    %vm4411 = vweird.f32 %v4405
    %vm4412 = vmor %vm4410, %vm4411
    %v4413 = vsel %vm4412, %v4405, %v4409
    %v4414 = vand.u32 2147483647, %v4403
    %vm4415 = vcmp.eq.f32.partialorder %v4414, 8.507059e+37
    %v4416 = vand.u32 %v4403, 2147483648
    %v4417 = vor.u32 1.1754944e-38, %v4416
    %v4418 = vsel %vm4415, %v4417, %v4413
    %v4419 = vmul.f32 1.0, %v4418
    %v4420 = vrcp.pop %v4404
    %v4421 = vmul.f32 %v4404, %v4420
    %v4422 = vsub.f32 1.0, %v4421
    %v4423 = vmul.f32 %v4420, %v4422
    %v4424 = vadd.f32 %v4420, %v4423
    %vm4425 = vweird.f32 %v4404
    %vm4426 = vweird.f32 %v4420
    %vm4427 = vmor %vm4425, %vm4426
    %v4428 = vsel %vm4427, %v4420, %v4424
    %v4429 = vand.u32 2147483647, %v4404
    %vm4430 = vcmp.eq.f32.partialorder %v4429, 8.507059e+37
    %v4431 = vand.u32 %v4404, 2147483648
    %v4432 = vor.u32 1.1754944e-38, %v4431
    %v4433 = vsel %vm4430, %v4432, %v4428
    %v4434 = vmul.f32 1.0, %v4433
    %v4435 = vtanh.pop %v4353
    %v4436 = vtanh.pop %v4357
    %v4437 = vxor.u32 %v4354, 2147483648
    %v4438 = vxor.u32 %v4358, 2147483648
    %v4439 = vmul.f32 %v4437, 1.442695
    %v4440 = vpow.pop %v4439
    %v4441 = vmul.f32 %v4438, 1.442695
    %v4442 = vpow.pop %v4441
    %v4443 = vadd.f32 %v4440, 1.0
    %v4444 = vadd.f32 %v4442, 1.0
    %v4445 = vrcp.pop %v4443
    %v4446 = vmul.f32 %v4443, %v4445
    %v4447 = vsub.f32 1.0, %v4446
    %v4448 = vmul.f32 %v4445, %v4447
    %v4449 = vadd.f32 %v4445, %v4448
    %vm4450 = vweird.f32 %v4443
    %vm4451 = vweird.f32 %v4445
    %vm4452 = vmor %vm4450, %vm4451
    %v4453 = vsel %vm4452, %v4445, %v4449
    %v4454 = vand.u32 2147483647, %v4443
    %vm4455 = vcmp.eq.f32.partialorder %v4454, 8.507059e+37
    %v4456 = vand.u32 %v4443, 2147483648
    %v4457 = vor.u32 1.1754944e-38, %v4456
    %v4458 = vsel %vm4455, %v4457, %v4453
    %v4459 = vmul.f32 1.0, %v4458
    %v4460 = vrcp.pop %v4444
    %v4461 = vmul.f32 %v4444, %v4460
    %v4462 = vsub.f32 1.0, %v4461
    %v4463 = vmul.f32 %v4460, %v4462
    %v4464 = vadd.f32 %v4460, %v4463
    %vm4465 = vweird.f32 %v4444
    %vm4466 = vweird.f32 %v4460
    %vm4467 = vmor %vm4465, %vm4466
    %v4468 = vsel %vm4467, %v4460, %v4464
    %v4469 = vand.u32 2147483647, %v4444
    %vm4470 = vcmp.eq.f32.partialorder %v4469, 8.507059e+37
    %v4471 = vand.u32 %v4444, 2147483648
    %v4472 = vor.u32 1.1754944e-38, %v4471
    %v4473 = vsel %vm4470, %v4472, %v4468
    %v4474 = vmul.f32 1.0, %v4473
    %v4477 = vrot.slane %v4260, 7
    %v4478 = vrot.slane %v4261, 7
    %v4481 = vmul.f32 %v4419, %v4477
    %v4482 = vmul.f32 %v4434, %v4478
    %v4483 = vmul.f32 %v4381, %v4435
    %v4484 = vmul.f32 %v4396, %v4436
    %v4485 = vadd.f32 %v4481, %v4483
    %v4486 = vadd.f32 %v4482, %v4484
    %v4487 = vtanh.pop %v4485
    %v4488 = vtanh.pop %v4486
    %v4489 = vmul.f32 %v4459, %v4487
    %v4490 = vmul.f32 %v4474, %v4488
    %4491 = vst [vmem:[#allocation2] sm:$0x80] %v4489
    %4492 = vst [vmem:[#allocation2 + $0x8] sm:$0x80] %v4490
    %v4495 = vrot.slane %v4490, 7
    %s4498 = scalar_lea.vmem [#allocation13], 2
    %4499 = vst [vmem:[%s4498 - $0x7] sm:$0x80] %v4489
    %4500 = vst [vmem:[%s4498 + $0x1] sm:$0x1] %v4495
    %v4503 = vrot.slane %v4486, 7
    %s4506 = scalar_lea.vmem [#allocation15], 2
    %4507 = vst [vmem:[%s4506 - $0x7] sm:$0x80] %v4485
    %4508 = vst [vmem:[%s4506 + $0x1] sm:$0x1] %v4503
    %v4509 = vld [vmem:[#allocation2] sm:$0xff]
    %v4510 = vld [vmem:[#allocation2 + $0x8] sm:$0xff]
    %v4511 = vpack.c.bf16 %v4510, %v4509
    %v4512 = vld [vmem:[#allocation11] sm:$0xf]
    %v4513 = vld [vmem:[#allocation11 + $0x4] sm:$0xf]
    %v4514 = vld [vmem:[#allocation11 + $0x8] sm:$0xf]
    %v4515 = vld [vmem:[#allocation11 + $0xc] sm:$0xf]
    %v4516 = vld [vmem:[#allocation11 + $0x10] sm:$0xf]
    %v4517 = vld [vmem:[#allocation11 + $0x14] sm:$0xf]
    %v4518 = vld [vmem:[#allocation11 + $0x18] sm:$0xf]
    %v4519 = vld [vmem:[#allocation11 + $0x1c] sm:$0xf]
    %v4520 = vld [vmem:[#allocation11 + $0x20] sm:$0xf]
    %v4521 = vld [vmem:[#allocation11 + $0x24] sm:$0xf]
    %v4522 = vld [vmem:[#allocation11 + $0x28] sm:$0xf]
    %v4523 = vld [vmem:[#allocation11 + $0x2c] sm:$0xf]
    %v4524 = vld [vmem:[#allocation11 + $0x30] sm:$0xf]
    %v4525 = vld [vmem:[#allocation11 + $0x34] sm:$0xf]
    %v4526 = vld [vmem:[#allocation11 + $0x38] sm:$0xf]
    %v4527 = vld [vmem:[#allocation11 + $0x3c] sm:$0xf]
    %v4528 = vld [vmem:[%s10] sm:$0x1]
    %v4530 = vperm.slane %v4528, 0
    %v4548 = vunpack.c.l.b16 %v4512
    %v4549 = vunpack.c.l.b16 %v4513
    %v4550 = vunpack.c.l.b16 %v4514
    %v4551 = vunpack.c.l.b16 %v4515
    %v4552 = vunpack.c.l.b16 %v4516
    %v4553 = vunpack.c.l.b16 %v4517
    %v4554 = vunpack.c.l.b16 %v4518
    %v4555 = vunpack.c.l.b16 %v4519
    %v4556 = vunpack.c.l.b16 %v4520
    %v4557 = vunpack.c.l.b16 %v4521
    %v4558 = vunpack.c.l.b16 %v4522
    %v4559 = vunpack.c.l.b16 %v4523
    %v4560 = vunpack.c.l.b16 %v4524
    %v4561 = vunpack.c.l.b16 %v4525
    %v4562 = vunpack.c.l.b16 %v4526
    %v4563 = vunpack.c.l.b16 %v4527
    %v4564 = vpack.c.b16 %v4549, %v4548
    %v4565 = vpack.c.b16 %v4551, %v4550
    %v4566 = vpack.c.b16 %v4553, %v4552
    %v4567 = vpack.c.b16 %v4555, %v4554
    %v4568 = vpack.c.b16 %v4557, %v4556
    %v4569 = vpack.c.b16 %v4559, %v4558
    %v4570 = vpack.c.b16 %v4561, %v4560
    %v4571 = vpack.c.b16 %v4563, %v4562
    %4580 = vmatpush.bf16.msra.mxu0 %v4571
    %4581 = vmatpush.bf16.msra.mxu0 %v4570
    %4582 = vmatpush.bf16.msra.mxu0 %v4569
    %4583 = vmatpush.bf16.msra.mxu0 %v4568
    %4584 = vmatpush.bf16.msra.mxu0 %v4567
    %4585 = vmatpush.bf16.msra.mxu0 %v4566
    %4586 = vmatpush.bf16.msra.mxu0 %v4565
    %4587 = vmatpush.bf16.msra.mxu0 %v4564
    %4588 = vmatmul.bf16.gmra.mxu0 %v4511
    %v4589 = vpop.f32.mrf.mxu0
    %v4590 = vadd.f32 %v4530, %v4589
    %v4591 = vpop.f32.mrf.mxu0
    %v4592 = vadd.f32 %v4530, %v4591
    %4593 = vdwg.mxu0
    %4594 = vmax.xlane.f32.xlu0 %v4590
    %v4595 = vpop.xlane.xlu0 %4594
    %4596 = vmax.xlane.f32.xlu0 %v4592
    %v4597 = vpop.xlane.xlu0 %4596
    %v4598 = vsub.f32 %v4590, %v4595
    %v4599 = vsub.f32 %v4592, %v4597
    %v4600 = vmul.f32 %v4598, 1.442695
    %v4601 = vpow.pop %v4600
    %v4602 = vmul.f32 %v4599, 1.442695
    %v4603 = vpow.pop %v4602
    %4604 = vadd.xlane.f32.xlu0 %v4601
    %v4605 = vpop.xlane.xlu0 %4604
    %4606 = vadd.xlane.f32.xlu0 %v4603
    %v4607 = vpop.xlane.xlu0 %4606
    %v4608 = vlog2.pop %v4605
    %v4609 = vmul.f32 %v4608, 0.6931472
    %v4610 = vlog2.pop %v4607
    %v4611 = vmul.f32 %v4610, 0.6931472
    %v4612 = vsub.f32 %v4598, %v4609
    %v4613 = vsub.f32 %v4599, %v4611
    %4614 = vst [vmem:[#allocation12] sm:$0xff] %v4612
    %4615 = vst [vmem:[#allocation12 + $0x8] sm:$0xff] %v4613
    // Predicated region
    $region66: #{semichar_rnn_forward.1} parent=1 // pred_check
      _
    $region67: #{semichar_rnn_forward.1} parent=1 // pred_check_branch
      %4617 = sbr.rel (0) target = $region69
    $region68: #{semichar_rnn_forward.1} parent=1 // pred_region
      %4619 = vsyncadd [#allocation5], 0
      %s4620 = sshll.u32 [#allocation12], 4
      %s4621 = int_to_ptr.vmem [resolvable:$true] %s4620
      %s4622 = sshll.u32 %s11, 4
      %s4623 = int_to_ptr.hbm [resolvable:$true] %s4622
      %4628 = dma.vmem_to_hbm [thread:$0]  %s4621, 256, %s4623, [#allocation5], 128, 128, 8
    $region69: #{semichar_rnn_forward.1} parent=1 // pred_fallthru
      _
    // Predicated region
    $region70: #{semichar_rnn_forward.1} parent=1 // pred_check
      _
    $region71: #{semichar_rnn_forward.1} parent=1 // pred_check_branch
      %4630 = sbr.rel (0) target = $region73
    $region72: #{semichar_rnn_forward.1} parent=1 // pred_region
      %4632 = vsyncadd [#allocation14], 0
      %s4633 = sshll.u32 [#allocation13], 4
      %s4634 = int_to_ptr.vmem [resolvable:$true] %s4633
      %s4635 = sshll.u32 %s12, 4
      %s4636 = int_to_ptr.hbm [resolvable:$true] %s4635
      %4641 = dma.vmem_to_hbm [thread:$0]  %s4634, 64, %s4636, [#allocation14], 32, 32, 2
    $region73: #{semichar_rnn_forward.1} parent=1 // pred_fallthru
      _
    // Predicated region
    $region74: #{semichar_rnn_forward.1} parent=1 // pred_check
      _
    $region75: #{semichar_rnn_forward.1} parent=1 // pred_check_branch
      %4643 = sbr.rel (0) target = $region77
    $region76: #{semichar_rnn_forward.1} parent=1 // pred_region
      %4645 = vsyncadd [#allocation14], 0
      %s4646 = sshll.u32 [#allocation15], 4
      %s4647 = int_to_ptr.vmem [resolvable:$true] %s4646
      %s4648 = sshll.u32 %s13, 4
      %s4649 = int_to_ptr.hbm [resolvable:$true] %s4648
      %4654 = dma.vmem_to_hbm [thread:$0]  %s4647, 64, %s4649, [#allocation14], 32, 32, 2
    $region77: #{semichar_rnn_forward.1} parent=1 // pred_fallthru
      _
    // Predicated region
    $region78: #{semichar_rnn_forward.1} parent=1 // pred_check
      _
    $region79: #{semichar_rnn_forward.1} parent=1 // pred_check_branch
      %4656 = sbr.rel (0) target = $region81
    $region80: #{semichar_rnn_forward.1} parent=1 // pred_region
      %4658 = dma.done [#allocation5], 256
    $region81: #{semichar_rnn_forward.1} parent=1 // pred_fallthru
      _
    // Predicated region
    $region82: #{semichar_rnn_forward.1} parent=1 // pred_check
      _
    $region83: #{semichar_rnn_forward.1} parent=1 // pred_check_branch
      %4660 = sbr.rel (0) target = $region85
    $region84: #{semichar_rnn_forward.1} parent=1 // pred_region
      %4662 = dma.done [#allocation14], 64
    $region85: #{semichar_rnn_forward.1} parent=1 // pred_fallthru
      _
    // Predicated region
    $region86: #{semichar_rnn_forward.1} parent=1 // pred_check
      _
    $region87: #{semichar_rnn_forward.1} parent=1 // pred_check_branch
      %4664 = sbr.rel (0) target = $region89
    $region88: #{semichar_rnn_forward.1} parent=1 // pred_region
      %4666 = dma.done [#allocation14], 64
    $region89: #{semichar_rnn_forward.1} parent=1 // pred_fallthru
      _
    %4667 = vsyncpa [#allocation4], 1
    %4668 = vsyncpa [#allocation7], 1
    %4669 = vsyncpa [#allocation10], 1
    %4670 = vsyncpa [#allocation5], 1
    %4671 = vsyncpa [#allocation14], 1

</llo_original>
